<compile_context>
chip_gen: v6e
topology: v6e:2x2x1
jax: 0.10.0
libtpu: 0.0.40
codegen_flags: <defaults>
</compile_context>

<pallas_src>
import functools
import math

import jax
import jax.numpy as jnp
from jax.experimental import pallas as pl
from jax.experimental.pallas import tpu as pltpu

# ---- model config (matches PyTorch MultiHeadAttention __init__) ----
D_IN = 16
D_OUT = 32
CONTEXT_LENGTH = 8
NUM_HEADS = 4
HEAD_DIM = D_OUT // NUM_HEADS
DROPOUT = 0.0  # TODO(synk): dropout acts as identity (eval-mode / p=0); training-mode RNG dropout not implemented.


def mha_kernel(x_ref, wqkv_ref, wo_ref, bo_ref, o_ref, *, seq_len, num_heads, head_dim):
    """One batch tile (bt sequences = bt*T rows) per grid step; all heads batched.

    x_ref    : (n_rows, d_in)          VMEM (bf16 or f32)
    wqkv_ref : (H, d_in, 3*hd)         per-head fused [q_h | k_h | v_h] weights
    wo_ref   : (H, hd, d_out)          per-head output-projection rows
    bo_ref   : (1, d_out)              f32
    o_ref    : (n_rows, d_out)         bf16 (use_bf16) or f32
    """
    t = seq_len
    H, hd = num_heads, head_dim
    n_rows = x_ref.shape[0]            # bt * t (static)
    bt = n_rows // t
    d_out = H * hd
    cdt = wqkv_ref.dtype               # MXU input dtype (bf16 or f32)

    x = x_ref[...]                                              # (n_rows, d_in)
    xb = jnp.broadcast_to(x[None], (H, n_rows, x.shape[1]))     # head-batched LHS (leading-dim bcast)

    # Fused per-head QKV projection: one batched MXU matmul, f32 accumulation.
    # Head axis is the *batch* dim of the dot, so no head/time transpose is ever needed.
    qkv = jnp.einsum("hnd,hde->hne", xb, wqkv_ref[...],
                     preferred_element_type=jnp.float32)         # (H, n_rows, 3*hd) f32

    # (H, bt*t, 3hd) -> (H*bt, t, 3hd): pure row-major reinterpretation (t == sublane tile).
    qkv = qkv.reshape(H * bt, t, 3 * hd)
    q = qkv[:, :, :hd].astype(cdt)                               # (H*bt, t, hd)
    k = qkv[:, :, hd:2 * hd].astype(cdt)
    v = qkv[:, :, 2 * hd:].astype(cdt)

    # Scores (bf16 MXU inputs, f32 accumulate) + causal mask, once for all heads/batches.
    scale = jnp.float32(1.0 / math.sqrt(hd))
    s = jnp.einsum("bqd,bkd->bqk", q, k,
                   preferred_element_type=jnp.float32) * scale   # (H*bt, t, t) f32
    row = jax.lax.broadcasted_iota(jnp.int32, (t, t), 0)
    col = jax.lax.broadcasted_iota(jnp.int32, (t, t), 1)
    s = jnp.where((col <= row)[None], s, jnp.float32(-1e30))

    # Numerically stable softmax in f32, exact normalization (EUP/VALU have plenty of slack).
    m = jnp.max(s, axis=-1, keepdims=True)
    p = jnp.exp(s - m)
    p = p / jnp.sum(p, axis=-1, keepdims=True)
    # TODO(synk): attention-weight dropout is identity here (eval mode / p=0.0).

    # Per-head context, again on the bf16 MXU path.
    ctx = jnp.einsum("bqk,bkd->bqd", p.astype(cdt), v,
                     preferred_element_type=jnp.float32)         # (H*bt, t, hd)

    # Output projection folded per head and summed over heads — no VMEM scratch,
    # no masked partial-column stores, no (t<->H) transpose.
    ctx = ctx.reshape(H, n_rows, hd).astype(cdt)                 # layout-preserving merge
    outh = jnp.einsum("hnd,hdo->hno", ctx, wo_ref[...],
                      preferred_element_type=jnp.float32)        # (H, n_rows, d_out)
    out = jnp.sum(outh, axis=0) + bo_ref[...]                    # (n_rows, d_out) f32
    o_ref[...] = out.astype(o_ref.dtype)


def _num_tensorcores():
    """Best-effort TensorCores-per-chip detection (v7x = 2, earlier gens = 1)."""
    try:
        d = jax.devices()[0]
        if "v7" in str(getattr(d, "device_kind", "")).lower():
            return 2
        return min(2, max(1, int(getattr(d, "num_cores", 1))))
    except Exception:
        return 1


def _pick_b_tile(batch, seq_len, *, target_rows=4096, num_tensorcores=1):
    """Pick a batch tile (divisor of `batch`).

    * Single-TC chips (v5e/v6e): prefer one big tile — grid=(1,) for small batches,
      otherwise the largest divisor with b_tile*seq_len <= target_rows (per-step
      pipeline overhead ~0.35us, so bigger tiles amortize better).
    * Dual-TC chips (v7x): additionally shrink so the "parallel" grid has a number of
      steps divisible by the TC count (even split, no idle core).

    target_rows is capped at a few thousand rows because with t=8 / hd=8 / d_in=16 the
    in-kernel intermediates lane-pad 4-16x in VMEM.
    """
    max_bt = max(1, target_rows // seq_len)
    bt = min(batch, max_bt)
    while batch % bt:
        bt -= 1
    if num_tensorcores > 1:
        cand = bt
        while cand >= 1 and (batch % cand or (batch // cand) % num_tensorcores):
            cand -= 1
        if cand >= 1:
            bt = cand
    return bt


def multihead_attention(x, wq, wk, wv, wo, bo, *, b_tile=None, use_bf16=True):
    """x: (B, T, D_IN); weights pre-transposed to (in, out); bo: (D_OUT,).

    Returns (B, T, D_OUT); bfloat16 when use_bf16 (default) else float32.
    """
    B, T, d_in = x.shape
    d_out = wq.shape[1]
    H, hd = NUM_HEADS, HEAD_DIM
    assert d_in == D_IN and d_out == D_OUT and T <= CONTEXT_LENGTH

    if b_tile is None:
        b_tile = _pick_b_tile(B, T, num_tensorcores=_num_tensorcores())
    assert B % b_tile == 0, "b_tile must divide batch"
    n_rows = b_tile * T
    min_rows = 16 if use_bf16 else 8
    assert b_tile == B or n_rows % min_rows == 0, "sublane block must match dtype tiling"

    # Per-head fused QKV weights: (H, d_in, 3*hd), columns per head = [q_h | k_h | v_h].
    wq_h = wq.reshape(d_in, H, hd)
    wk_h = wk.reshape(d_in, H, hd)
    wv_h = wv.reshape(d_in, H, hd)
    wqkv = jnp.transpose(jnp.concatenate([wq_h, wk_h, wv_h], axis=-1), (1, 0, 2))  # (H, d_in, 3hd)
    # Per-head output-projection rows (ctx columns are head-major, matching PyTorch view()).
    wo_h = wo.reshape(H, hd, d_out)
    bo2 = bo.reshape(1, d_out).astype(jnp.float32)

    cdt = jnp.bfloat16 if use_bf16 else jnp.float32
    x2 = x.reshape(B * T, d_in).astype(cdt)          # 2-D row slab; free host-side reshape
    wqkv = wqkv.astype(cdt)
    wo_h = wo_h.astype(cdt)
    out_dtype = cdt                                   # bf16 writeback halves store bytes

    grid = (B // b_tile,)

    cp_kwargs = dict(dimension_semantics=("parallel",))   # megacore-shardable batch-tile axis
    if n_rows >= 2048:
        # Big tiles: give the compiler headroom for the lane-padded f32 intermediates.
        cp_kwargs["vmem_limit_bytes"] = 64 * 1024 * 1024

    out2 = pl.pallas_call(
        functools.partial(mha_kernel, seq_len=T, num_heads=H, head_dim=hd),
        out_shape=jax.ShapeDtypeStruct((B * T, d_out), out_dtype),
        grid_spec=pltpu.PrefetchScalarGridSpec(
            num_scalar_prefetch=0,
            grid=grid,
            in_specs=[
                pl.BlockSpec((n_rows, d_in), lambda i: (i, 0)),
                pl.BlockSpec((H, d_in, 3 * hd), lambda i: (0, 0, 0)),
                pl.BlockSpec((H, hd, d_out), lambda i: (0, 0, 0)),
                pl.BlockSpec((1, d_out), lambda i: (0, 0)),
            ],
            out_specs=pl.BlockSpec((n_rows, d_out), lambda i: (i, 0)),
        ),
        compiler_params=pltpu.CompilerParams(**cp_kwargs),
    )(x2, wqkv, wo_h, bo2)

    return out2.reshape(B, T, d_out)


def reference(x, wq, wk, wv, wo, bo):
    """Pure-JAX reference mirroring the PyTorch forward (eval mode)."""
    B, T, _ = x.shape
    q = x @ wq
    k = x @ wk
    v = x @ wv
    q = q.reshape(B, T, NUM_HEADS, HEAD_DIM).transpose(0, 2, 1, 3)
    k = k.reshape(B, T, NUM_HEADS, HEAD_DIM).transpose(0, 2, 1, 3)
    v = v.reshape(B, T, NUM_HEADS, HEAD_DIM).transpose(0, 2, 1, 3)
    s = jnp.einsum("bhqd,bhkd->bhqk", q, k) / math.sqrt(HEAD_DIM)
    mask = jnp.triu(jnp.ones((T, T), dtype=bool), k=1)
    s = jnp.where(mask[None, None], -jnp.inf, s)
    p = jax.nn.softmax(s, axis=-1)
    ctx = jnp.einsum("bhqk,bhkd->bhqd", p, v)
    ctx = ctx.transpose(0, 2, 1, 3).reshape(B, T, D_OUT)
    return ctx @ wo + bo


if __name__ == "__main__":
    key = jax.random.PRNGKey(0)
    kx, kq, kk, kv, ko, kb = jax.random.split(key, 6)

    B, T = 8, CONTEXT_LENGTH
    x = jax.random.normal(kx, (B, T, D_IN), dtype=jnp.float32)

    # Deterministic parameter init (Linear weights stored as (in, out), i.e. W.T).
    wq = jax.random.normal(kq, (D_IN, D_OUT), dtype=jnp.float32) * 0.1
    wk = jax.random.normal(kk, (D_IN, D_OUT), dtype=jnp.float32) * 0.1
    wv = jax.random.normal(kv, (D_IN, D_OUT), dtype=jnp.float32) * 0.1
    wo = jax.random.normal(ko, (D_OUT, D_OUT), dtype=jnp.float32) * 0.1
    bo = jax.random.normal(kb, (D_OUT,), dtype=jnp.float32) * 0.1

    ref = reference(x, wq, wk, wv, wo, bo)

    # f32 path: exact softmax normalization; residual error comes only from MXU matmul
    # precision defaults, not the softmax.
    out_f32 = jax.block_until_ready(multihead_attention(x, wq, wk, wv, wo, bo, use_bf16=False))
    assert out_f32.shape == (B, T, D_OUT)
    assert jnp.allclose(out_f32, ref, atol=1e-2, rtol=1e-2), "f32 mismatch vs reference"

    # Default bf16 path (half DMA bytes, bf16 MXU for all three matmuls, bf16 writeback).
    out_bf16 = jax.block_until_ready(multihead_attention(x, wq, wk, wv, wo, bo))
    assert out_bf16.shape == (B, T, D_OUT)
    assert out_bf16.dtype == jnp.bfloat16
    assert jnp.allclose(out_bf16.astype(jnp.float32), ref, atol=5e-2, rtol=5e-2), \
        "bf16 mismatch vs reference"

    print("KERNEL_OK")
</pallas_src>

<mosaic_0001>
module attributes {stable_mosaic.version = 11 : i64} {
  func.func @mha_kernel(%arg0: i32, %arg1: memref<64x16xf32, #tpu.memory_space<vmem>>, %arg2: memref<4x16x24xf32, #tpu.memory_space<vmem>>, %arg3: memref<4x8x32xf32, #tpu.memory_space<vmem>>, %arg4: memref<1x32xf32, #tpu.memory_space<vmem>>, %arg5: memref<64x32xf32, #tpu.memory_space<vmem>>) attributes {dimension_semantics = [#tpu.dimension_semantics<parallel>], iteration_bounds = array<i64: 1>, scalar_prefetch = 0 : i64, scratch_operands = 0 : i64, tpu.core_type = #tpu.core_type<tc>, window_params = [{transform_indices = @transform_0, window_bounds = array<i64: 64, 16>}, {pipeline_mode = #tpu.pipeline_mode<synchronous>, transform_indices = @transform_1, window_bounds = array<i64: 4, 16, 24>}, {pipeline_mode = #tpu.pipeline_mode<synchronous>, transform_indices = @transform_2, window_bounds = array<i64: 4, 8, 32>}, {pipeline_mode = #tpu.pipeline_mode<synchronous>, transform_indices = @transform_3, window_bounds = array<i64: 1, 32>}, {transform_indices = @transform_4, window_bounds = array<i64: 64, 32>}]} {
    %c0 = arith.constant 0 : index
    %c0_0 = arith.constant 0 : index
    %0 = vector.load %arg1[%c0, %c0_0] : memref<64x16xf32, #tpu.memory_space<vmem>>, vector<64x16xf32>
    %1 = vector.shape_cast %0 : vector<64x16xf32> to vector<1x64x16xf32>
    %2 = vector.shape_cast %1 : vector<1x64x16xf32> to vector<1x64x16xf32>
    %3 = vector.broadcast %2 : vector<1x64x16xf32> to vector<4x64x16xf32>
    %c0_1 = arith.constant 0 : index
    %c0_2 = arith.constant 0 : index
    %c0_3 = arith.constant 0 : index
    %4 = vector.load %arg2[%c0_1, %c0_2, %c0_3] : memref<4x16x24xf32, #tpu.memory_space<vmem>>, vector<4x16x24xf32>
    "tpu.trace_start"() <{level = 10 : i32, message = "hnd,hde->hne"}> : () -> ()
    %cst = arith.constant dense<0.000000e+00> : vector<4x64x24xf32>
    %5 = tpu.matmul %3, %4, %cst {dimension_numbers = #tpu.dot_dimension_numbers<[2], [1], [1], [2], [0, 0, 0, 1, 1, 2], [0], [0]>} : vector<4x64x16xf32>, vector<4x16x24xf32>, vector<4x64x24xf32> -> vector<4x64x24xf32>
    "tpu.trace_stop"() : () -> ()
    %6 = vector.shape_cast %5 : vector<4x64x24xf32> to vector<32x8x24xf32>
    %7 = vector.extract_strided_slice %6 {offsets = [0, 0, 0], sizes = [32, 8, 8], strides = [1, 1, 1]} : vector<32x8x24xf32> to vector<32x8x8xf32>
    %8 = vector.extract_strided_slice %6 {offsets = [0, 0, 8], sizes = [32, 8, 8], strides = [1, 1, 1]} : vector<32x8x24xf32> to vector<32x8x8xf32>
    %9 = vector.extract_strided_slice %6 {offsets = [0, 0, 16], sizes = [32, 8, 8], strides = [1, 1, 1]} : vector<32x8x24xf32> to vector<32x8x8xf32>
    "tpu.trace_start"() <{level = 10 : i32, message = "bqd,bkd->bqk"}> : () -> ()
    %cst_4 = arith.constant dense<0.000000e+00> : vector<32x8x8xf32>
    %10 = tpu.matmul %7, %8, %cst_4 {dimension_numbers = #tpu.dot_dimension_numbers<[2], [2], [1], [1], [0, 0, 0, 1, 1, 1], [0], [0]>} : vector<32x8x8xf32>, vector<32x8x8xf32>, vector<32x8x8xf32> -> vector<32x8x8xf32>
    "tpu.trace_stop"() : () -> ()
    %cst_5 = arith.constant 0.353553385 : f32
    %11 = vector.broadcast %cst_5 : f32 to vector<32x8x8xf32>
    %12 = arith.mulf %10, %11 : vector<32x8x8xf32>
    %13 = tpu.iota {dimensions = array<i32: 0>} : vector<8x8xi32>
    %14 = tpu.iota {dimensions = array<i32: 1>} : vector<8x8xi32>
    %15 = arith.cmpi sle, %14, %13 : vector<8x8xi32>
    %16 = vector.shape_cast %15 : vector<8x8xi1> to vector<1x8x8xi1>
    %cst_6 = arith.constant -1.000000e+30 : f32
    %17 = vector.shape_cast %16 : vector<1x8x8xi1> to vector<1x8x8xi1>
    %18 = vector.broadcast %17 : vector<1x8x8xi1> to vector<32x8x8xi1>
    %19 = vector.broadcast %cst_6 : f32 to vector<32x8x8xf32>
    %20 = arith.select %18, %12, %19 : vector<32x8x8xi1>, vector<32x8x8xf32>
    %cst_7 = arith.constant dense<0xFF800000> : vector<32x8xf32>
    %21 = vector.multi_reduction <maximumf>, %20, %cst_7 [2] : vector<32x8x8xf32> to vector<32x8xf32>
    %22 = vector.shape_cast %21 : vector<32x8xf32> to vector<32x8x1xf32>
    %23 = vector.broadcast %22 : vector<32x8x1xf32> to vector<32x8x8xf32>
    %24 = arith.subf %20, %23 : vector<32x8x8xf32>
    %25 = math.exp %24 : vector<32x8x8xf32>
    %cst_8 = arith.constant dense<0.000000e+00> : vector<32x8xf32>
    %26 = vector.multi_reduction <add>, %25, %cst_8 [2] : vector<32x8x8xf32> to vector<32x8xf32>
    %27 = vector.shape_cast %26 : vector<32x8xf32> to vector<32x8x1xf32>
    %28 = vector.broadcast %27 : vector<32x8x1xf32> to vector<32x8x8xf32>
    %29 = arith.divf %25, %28 : vector<32x8x8xf32>
    "tpu.trace_start"() <{level = 10 : i32, message = "bqk,bkd->bqd"}> : () -> ()
    %cst_9 = arith.constant dense<0.000000e+00> : vector<32x8x8xf32>
    %30 = tpu.matmul %29, %9, %cst_9 {dimension_numbers = #tpu.dot_dimension_numbers<[2], [1], [1], [2], [0, 0, 0, 1, 1, 2], [0], [0]>} : vector<32x8x8xf32>, vector<32x8x8xf32>, vector<32x8x8xf32> -> vector<32x8x8xf32>
    "tpu.trace_stop"() : () -> ()
    %31 = vector.shape_cast %30 : vector<32x8x8xf32> to vector<4x64x8xf32>
    %c0_10 = arith.constant 0 : index
    %c0_11 = arith.constant 0 : index
    %c0_12 = arith.constant 0 : index
    %32 = vector.load %arg3[%c0_10, %c0_11, %c0_12] : memref<4x8x32xf32, #tpu.memory_space<vmem>>, vector<4x8x32xf32>
    "tpu.trace_start"() <{level = 10 : i32, message = "hnd,hdo->hno"}> : () -> ()
    %cst_13 = arith.constant dense<0.000000e+00> : vector<4x64x32xf32>
    %33 = tpu.matmul %31, %32, %cst_13 {dimension_numbers = #tpu.dot_dimension_numbers<[2], [1], [1], [2], [0, 0, 0, 1, 1, 2], [0], [0]>} : vector<4x64x8xf32>, vector<4x8x32xf32>, vector<4x64x32xf32> -> vector<4x64x32xf32>
    "tpu.trace_stop"() : () -> ()
    %cst_14 = arith.constant dense<0.000000e+00> : vector<64x32xf32>
    %34 = vector.multi_reduction <add>, %33, %cst_14 [0] : vector<4x64x32xf32> to vector<64x32xf32>
    %c0_15 = arith.constant 0 : index
    %c0_16 = arith.constant 0 : index
    %35 = vector.load %arg4[%c0_15, %c0_16] : memref<1x32xf32, #tpu.memory_space<vmem>>, vector<1x32xf32>
    %36 = vector.broadcast %35 : vector<1x32xf32> to vector<64x32xf32>
    %37 = arith.addf %34, %36 : vector<64x32xf32>
    %c0_17 = arith.constant 0 : index
    %c0_18 = arith.constant 0 : index
    %38 = vector.load %arg5[%c0_17, %c0_18] : memref<64x32xf32, #tpu.memory_space<vmem>>, vector<64x32xf32>
    tpu.vector_store %arg5[%c0_17, %c0_18], %37 {strides = array<i32>} : memref<64x32xf32, #tpu.memory_space<vmem>>, vector<64x32xf32>,
    return
  }
  func.func @transform_0(%arg0: i32) -> (i32, i32) {
    %c0_i32 = arith.constant 0 : i32
    %c0_i32_0 = arith.constant 0 : i32
    return %arg0, %c0_i32 : i32, i32
  }
  func.func @transform_1(%arg0: i32) -> (i32, i32, i32) {
    %c0_i32 = arith.constant 0 : i32
    %c0_i32_0 = arith.constant 0 : i32
    %c0_i32_1 = arith.constant 0 : i32
    %c0_i32_2 = arith.constant 0 : i32
    return %c0_i32, %c0_i32_0, %c0_i32_1 : i32, i32, i32
  }
  func.func @transform_2(%arg0: i32) -> (i32, i32, i32) {
    %c0_i32 = arith.constant 0 : i32
    %c0_i32_0 = arith.constant 0 : i32
    %c0_i32_1 = arith.constant 0 : i32
    %c0_i32_2 = arith.constant 0 : i32
    return %c0_i32, %c0_i32_0, %c0_i32_1 : i32, i32, i32
  }
  func.func @transform_3(%arg0: i32) -> (i32, i32) {
    %c0_i32 = arith.constant 0 : i32
    %c0_i32_0 = arith.constant 0 : i32
    %c0_i32_1 = arith.constant 0 : i32
    return %c0_i32, %c0_i32_0 : i32, i32
  }
  func.func @transform_4(%arg0: i32) -> (i32, i32) {
    %c0_i32 = arith.constant 0 : i32
    %c0_i32_0 = arith.constant 0 : i32
    return %arg0, %c0_i32 : i32, i32
  }
}

</mosaic_0001>

<llo_original>
// kernel: tpu_custom_call.1
$region0: #{tpu_custom_call.1}
  #allocation0 [shape = 'u32[]', space=smem, size = 0x4, offset = 0x4, fixed_abs, tag = 'smem constant byte address 0x4 - core index']
  #allocation1 [shape = 'u32[144,128]{1,0:T(1,128)}', space=vmem, size = 0x12000, scoped, tag = 'internal scratch']
  %s0 = inlined_call_operand.vmem [shape: f32[64,16], index: 0, kind: input, shape index: {}]
  %s1 = inlined_call_operand.vmem [shape: f32[4,16,24], index: 1, kind: input, shape index: {}]
  %s2 = inlined_call_operand.hbm [shape: f32[4,8,32], index: 2, kind: input, shape index: {}]
  %s3 = inlined_call_operand.vmem [shape: f32[1,32], index: 3, kind: input, shape index: {}]
  %s4 = inlined_call_operand.vmem [shape: f32[64,32], index: 4, kind: output, shape index: {}]
  %s5 = sld [smem:[#allocation0]]
  $region30: #{tpu_custom_call.1} parent=0
    _
  %s7 = ssub.s32 1, %s5
  %s8 = scalar_select 0, %s7, %s5
  $region1: #{tpu_custom_call.1} parent=0
    #allocation2 [shape = 'u8[16384]{0}', space=vmem, size = 0x4000, scoped, tag = 'input window, operand 2, single buffered']
    #allocation3 [shape = 's32[1]{0}', space=sflag, size = 0x4, scoped, tag = 'scoped memory for tpu_custom_call.1']
    %9 = vsyncpa [#allocation3], 0
    // Predicated region
    $region2: #{tpu_custom_call.1} parent=1 // pred_check
      _
    $region3: #{tpu_custom_call.1} parent=1 // pred_check_branch
      %11 = sbr.rel (0) target = $region5
    $region4: #{tpu_custom_call.1} parent=1 // pred_region
      _
    $region5: #{tpu_custom_call.1} parent=1 // pred_fallthru
      _
    // Predicated region
    $region6: #{tpu_custom_call.1} parent=1 // pred_check
      _
    $region7: #{tpu_custom_call.1} parent=1 // pred_check_branch
      %13 = sbr.rel (0) target = $region9
    $region8: #{tpu_custom_call.1} parent=1 // pred_region
      _
    $region9: #{tpu_custom_call.1} parent=1 // pred_fallthru
      _
    // Predicated region
    $region10: #{tpu_custom_call.1} parent=1 // pred_check
      _
    $region11: #{tpu_custom_call.1} parent=1 // pred_check_branch
      %15 = sbr.rel (0) target = $region13
    $region12: #{tpu_custom_call.1} parent=1 // pred_region
      %s17 = ssub.s32 512, 512
      %18 = vsyncadd [#allocation3], %s17
      %s19 = sshll.u32 [#allocation2], 4
      %s20 = int_to_ptr.vmem [resolvable:$true] %s19
      %25 = dma.hbm_to_vmem [thread:$0]  %s2, 512, %s20, [#allocation3], 128, 128, 8
    $region13: #{tpu_custom_call.1} parent=1 // pred_fallthru
      _
    // Predicated region
    $region14: #{tpu_custom_call.1} parent=1 // pred_check
      _
    $region15: #{tpu_custom_call.1} parent=1 // pred_check_branch
      %27 = sbr.rel (0) target = $region17
    $region16: #{tpu_custom_call.1} parent=1 // pred_region
      _
    $region17: #{tpu_custom_call.1} parent=1 // pred_fallthru
      _
    // Predicated region
    $region18: #{tpu_custom_call.1} parent=1 // pred_check
      _
    $region19: #{tpu_custom_call.1} parent=1 // pred_check_branch
      %29 = sbr.rel (0) target = $region21
    $region20: #{tpu_custom_call.1} parent=1 // pred_region
      %30 = dma.done [#allocation3], 512
    $region21: #{tpu_custom_call.1} parent=1 // pred_fallthru
      _
    %v31 = vld [vmem:[%s0] sm:$0xff]
    %v32 = vld [vmem:[%s0 + $0x8] sm:$0xff]
    %v33 = vld [vmem:[%s0 + $0x10] sm:$0xff]
    %v34 = vld [vmem:[%s0 + $0x18] sm:$0xff]
    %v35 = vld [vmem:[%s0 + $0x20] sm:$0xff]
    %v36 = vld [vmem:[%s0 + $0x28] sm:$0xff]
    %v37 = vld [vmem:[%s0 + $0x30] sm:$0xff]
    %v38 = vld [vmem:[%s0 + $0x38] sm:$0xff]
    %v39 = vld [vmem:[%s1] sm:$0xff]
    %v40 = vld [vmem:[%s1 + $0x8] sm:$0xff]
    %v41 = vld [vmem:[%s1 + $0x10] sm:$0xff]
    %v42 = vld [vmem:[%s1 + $0x18] sm:$0xff]
    %v43 = vld [vmem:[%s1 + $0x20] sm:$0xff]
    %v44 = vld [vmem:[%s1 + $0x28] sm:$0xff]
    %v45 = vld [vmem:[%s1 + $0x30] sm:$0xff]
    %v46 = vld [vmem:[%s1 + $0x38] sm:$0xff]
    %vm47 = vcmask 130048
    %v49 = vsel %vm47, %v31, 0
    %v52 = vsel %vm47, %v32, 0
    %v55 = vsel %vm47, %v33, 0
    %v58 = vsel %vm47, %v34, 0
    %v61 = vsel %vm47, %v35, 0
    %v64 = vsel %vm47, %v36, 0
    %v67 = vsel %vm47, %v37, 0
    %v70 = vsel %vm47, %v38, 0
    %72 = vmatprep.subr.mxu0 0.0
    %73 = vmatpush1.msra.mxu0 0.0
    %74 = vmatprep.subr.mxu0 0.0
    %75 = vmatpush1.msra.mxu0 0.0
    %76 = vmatprep.subr.mxu0 0.0
    %77 = vmatpush1.msra.mxu0 0.0
    %78 = vmatprep.subr.mxu0 0.0
    %79 = vmatpush1.msra.mxu0 0.0
    %80 = vmatprep.subr.mxu0 0.0
    %81 = vmatpush1.msra.mxu0 0.0
    %82 = vmatprep.subr.mxu0 0.0
    %83 = vmatpush1.msra.mxu0 0.0
    %84 = vmatprep.subr.mxu0 0.0
    %85 = vmatpush1.msra.mxu0 0.0
    %86 = vmatprep.subr.mxu0 0.0
    %87 = vmatpush1.msra.mxu0 0.0
    %88 = vmatprep.subr.mxu0 0.0
    %89 = vmatpush1.msra.mxu0 0.0
    %90 = vmatprep.subr.mxu0 0.0
    %91 = vmatpush1.msra.mxu0 0.0
    %92 = vmatprep.subr.mxu0 0.0
    %93 = vmatpush1.msra.mxu0 0.0
    %94 = vmatprep.subr.mxu0 0.0
    %95 = vmatpush1.msra.mxu0 0.0
    %96 = vmatprep.subr.mxu0 0.0
    %97 = vmatpush1.msra.mxu0 0.0
    %98 = vmatprep.subr.mxu0 0.0
    %99 = vmatpush1.msra.mxu0 0.0
    %100 = vmatprep.subr.mxu0 0.0
    %101 = vmatpush1.msra.mxu0 %v40
    %102 = vmatprep.subr.mxu0 0.0
    %103 = vmatpush1.msra.mxu0 %v39
    %104 = vmatprep.subr.mxu0 0.0
    %105 = vmatpush2.msra.mxu0 0.0
    %106 = vmatprep.subr.mxu0 0.0
    %107 = vmatpush2.msra.mxu0 0.0
    %108 = vmatprep.subr.mxu0 0.0
    %109 = vmatpush2.msra.mxu0 0.0
    %110 = vmatprep.subr.mxu0 0.0
    %111 = vmatpush2.msra.mxu0 0.0
    %112 = vmatprep.subr.mxu0 0.0
    %113 = vmatpush2.msra.mxu0 0.0
    %114 = vmatprep.subr.mxu0 0.0
    %115 = vmatpush2.msra.mxu0 0.0
    %116 = vmatprep.subr.mxu0 0.0
    %117 = vmatpush2.msra.mxu0 0.0
    %118 = vmatprep.subr.mxu0 0.0
    %119 = vmatpush2.msra.mxu0 0.0
    %120 = vmatprep.subr.mxu0 0.0
    %121 = vmatpush2.msra.mxu0 0.0
    %122 = vmatprep.subr.mxu0 0.0
    %123 = vmatpush2.msra.mxu0 0.0
    %124 = vmatprep.subr.mxu0 0.0
    %125 = vmatpush2.msra.mxu0 0.0
    %126 = vmatprep.subr.mxu0 0.0
    %127 = vmatpush2.msra.mxu0 0.0
    %128 = vmatprep.subr.mxu0 0.0
    %129 = vmatpush2.msra.mxu0 0.0
    %130 = vmatprep.subr.mxu0 0.0
    %131 = vmatpush2.msra.mxu0 0.0
    %132 = vmatprep.subr.mxu0 0.0
    %133 = vmatpush2.msra.mxu0 0.0
    %134 = vmatprep.subr.mxu0 0.0
    %135 = vmatpush2.msra.mxu0 0.0
    %136 = vmatprep.mubr.f32.mxu0 0.0
    %137 = vmatmul.mubr.f32.gmra.mxu0 %v49
    %v138 = vpop.f32.mrf.mxu0
    %v139 = vadd.f32 0.0, %v138
    %v140 = vpop.f32.mrf.mxu0
    %141 = vmatprep.mubr.f32.mxu0 0.0
    %142 = vmatmul.mubr.f32.gmra.mxu0 %v52
    %v143 = vpop.f32.mrf.mxu0
    %v144 = vadd.f32 0.0, %v143
    %v145 = vpop.f32.mrf.mxu0
    %146 = vmatprep.mubr.f32.mxu0 0.0
    %147 = vmatmul.mubr.f32.gmra.mxu0 %v55
    %v148 = vpop.f32.mrf.mxu0
    %v149 = vadd.f32 0.0, %v148
    %v150 = vpop.f32.mrf.mxu0
    %151 = vmatprep.mubr.f32.mxu0 0.0
    %152 = vmatmul.mubr.f32.gmra.mxu0 %v58
    %v153 = vpop.f32.mrf.mxu0
    %v154 = vadd.f32 0.0, %v153
    %v155 = vpop.f32.mrf.mxu0
    %156 = vmatprep.mubr.f32.mxu0 0.0
    %157 = vmatmul.mubr.f32.gmra.mxu0 %v61
    %v158 = vpop.f32.mrf.mxu0
    %v159 = vadd.f32 0.0, %v158
    %v160 = vpop.f32.mrf.mxu0
    %161 = vmatprep.mubr.f32.mxu0 0.0
    %162 = vmatmul.mubr.f32.gmra.mxu0 %v64
    %v163 = vpop.f32.mrf.mxu0
    %v164 = vadd.f32 0.0, %v163
    %v165 = vpop.f32.mrf.mxu0
    %166 = vmatprep.mubr.f32.mxu0 0.0
    %167 = vmatmul.mubr.f32.gmra.mxu0 %v67
    %v168 = vpop.f32.mrf.mxu0
    %v169 = vadd.f32 0.0, %v168
    %v170 = vpop.f32.mrf.mxu0
    %171 = vmatprep.mubr.f32.mxu0 0.0
    %172 = vmatmul.mubr.f32.gmra.mxu0 %v70
    %v173 = vpop.f32.mrf.mxu0
    %v174 = vadd.f32 0.0, %v173
    %v175 = vpop.f32.mrf.mxu0
    %176 = vdwg.mxu0
    %177 = vmatprep.subr.mxu0 0.0
    %178 = vmatpush1.msra.mxu0 0.0
    %179 = vmatprep.subr.mxu0 0.0
    %180 = vmatpush1.msra.mxu0 0.0
    %181 = vmatprep.subr.mxu0 0.0
    %182 = vmatpush1.msra.mxu0 0.0
    %183 = vmatprep.subr.mxu0 0.0
    %184 = vmatpush1.msra.mxu0 0.0
    %185 = vmatprep.subr.mxu0 0.0
    %186 = vmatpush1.msra.mxu0 0.0
    %187 = vmatprep.subr.mxu0 0.0
    %188 = vmatpush1.msra.mxu0 0.0
    %189 = vmatprep.subr.mxu0 0.0
    %190 = vmatpush1.msra.mxu0 0.0
    %191 = vmatprep.subr.mxu0 0.0
    %192 = vmatpush1.msra.mxu0 0.0
    %193 = vmatprep.subr.mxu0 0.0
    %194 = vmatpush1.msra.mxu0 0.0
    %195 = vmatprep.subr.mxu0 0.0
    %196 = vmatpush1.msra.mxu0 0.0
    %197 = vmatprep.subr.mxu0 0.0
    %198 = vmatpush1.msra.mxu0 0.0
    %199 = vmatprep.subr.mxu0 0.0
    %200 = vmatpush1.msra.mxu0 0.0
    %201 = vmatprep.subr.mxu0 0.0
    %202 = vmatpush1.msra.mxu0 0.0
    %203 = vmatprep.subr.mxu0 0.0
    %204 = vmatpush1.msra.mxu0 0.0
    %205 = vmatprep.subr.mxu0 0.0
    %206 = vmatpush1.msra.mxu0 %v42
    %207 = vmatprep.subr.mxu0 0.0
    %208 = vmatpush1.msra.mxu0 %v41
    %209 = vmatprep.subr.mxu0 0.0
    %210 = vmatpush2.msra.mxu0 0.0
    %211 = vmatprep.subr.mxu0 0.0
    %212 = vmatpush2.msra.mxu0 0.0
    %213 = vmatprep.subr.mxu0 0.0
    %214 = vmatpush2.msra.mxu0 0.0
    %215 = vmatprep.subr.mxu0 0.0
    %216 = vmatpush2.msra.mxu0 0.0
    %217 = vmatprep.subr.mxu0 0.0
    %218 = vmatpush2.msra.mxu0 0.0
    %219 = vmatprep.subr.mxu0 0.0
    %220 = vmatpush2.msra.mxu0 0.0
    %221 = vmatprep.subr.mxu0 0.0
    %222 = vmatpush2.msra.mxu0 0.0
    %223 = vmatprep.subr.mxu0 0.0
    %224 = vmatpush2.msra.mxu0 0.0
    %225 = vmatprep.subr.mxu0 0.0
    %226 = vmatpush2.msra.mxu0 0.0
    %227 = vmatprep.subr.mxu0 0.0
    %228 = vmatpush2.msra.mxu0 0.0
    %229 = vmatprep.subr.mxu0 0.0
    %230 = vmatpush2.msra.mxu0 0.0
    %231 = vmatprep.subr.mxu0 0.0
    %232 = vmatpush2.msra.mxu0 0.0
    %233 = vmatprep.subr.mxu0 0.0
    %234 = vmatpush2.msra.mxu0 0.0
    %235 = vmatprep.subr.mxu0 0.0
    %236 = vmatpush2.msra.mxu0 0.0
    %237 = vmatprep.subr.mxu0 0.0
    %238 = vmatpush2.msra.mxu0 0.0
    %239 = vmatprep.subr.mxu0 0.0
    %240 = vmatpush2.msra.mxu0 0.0
    %241 = vmatprep.mubr.f32.mxu0 0.0
    %242 = vmatmul.mubr.f32.gmra.mxu0 %v49
    %v243 = vpop.f32.mrf.mxu0
    %v244 = vadd.f32 0.0, %v243
    %v245 = vpop.f32.mrf.mxu0
    %246 = vmatprep.mubr.f32.mxu0 0.0
    %247 = vmatmul.mubr.f32.gmra.mxu0 %v52
    %v248 = vpop.f32.mrf.mxu0
    %v249 = vadd.f32 0.0, %v248
    %v250 = vpop.f32.mrf.mxu0
    %251 = vmatprep.mubr.f32.mxu0 0.0
    %252 = vmatmul.mubr.f32.gmra.mxu0 %v55
    %v253 = vpop.f32.mrf.mxu0
    %v254 = vadd.f32 0.0, %v253
    %v255 = vpop.f32.mrf.mxu0
    %256 = vmatprep.mubr.f32.mxu0 0.0
    %257 = vmatmul.mubr.f32.gmra.mxu0 %v58
    %v258 = vpop.f32.mrf.mxu0
    %v259 = vadd.f32 0.0, %v258
    %v260 = vpop.f32.mrf.mxu0
    %261 = vmatprep.mubr.f32.mxu0 0.0
    %262 = vmatmul.mubr.f32.gmra.mxu0 %v61
    %v263 = vpop.f32.mrf.mxu0
    %v264 = vadd.f32 0.0, %v263
    %v265 = vpop.f32.mrf.mxu0
    %266 = vmatprep.mubr.f32.mxu0 0.0
    %267 = vmatmul.mubr.f32.gmra.mxu0 %v64
    %v268 = vpop.f32.mrf.mxu0
    %v269 = vadd.f32 0.0, %v268
    %v270 = vpop.f32.mrf.mxu0
    %271 = vmatprep.mubr.f32.mxu0 0.0
    %272 = vmatmul.mubr.f32.gmra.mxu0 %v67
    %v273 = vpop.f32.mrf.mxu0
    %v274 = vadd.f32 0.0, %v273
    %v275 = vpop.f32.mrf.mxu0
    %276 = vmatprep.mubr.f32.mxu0 0.0
    %277 = vmatmul.mubr.f32.gmra.mxu0 %v70
    %v278 = vpop.f32.mrf.mxu0
    %v279 = vadd.f32 0.0, %v278
    %v280 = vpop.f32.mrf.mxu0
    %281 = vdwg.mxu0
    %282 = vmatprep.subr.mxu0 0.0
    %283 = vmatpush1.msra.mxu0 0.0
    %284 = vmatprep.subr.mxu0 0.0
    %285 = vmatpush1.msra.mxu0 0.0
    %286 = vmatprep.subr.mxu0 0.0
    %287 = vmatpush1.msra.mxu0 0.0
    %288 = vmatprep.subr.mxu0 0.0
    %289 = vmatpush1.msra.mxu0 0.0
    %290 = vmatprep.subr.mxu0 0.0
    %291 = vmatpush1.msra.mxu0 0.0
    %292 = vmatprep.subr.mxu0 0.0
    %293 = vmatpush1.msra.mxu0 0.0
    %294 = vmatprep.subr.mxu0 0.0
    %295 = vmatpush1.msra.mxu0 0.0
    %296 = vmatprep.subr.mxu0 0.0
    %297 = vmatpush1.msra.mxu0 0.0
    %298 = vmatprep.subr.mxu0 0.0
    %299 = vmatpush1.msra.mxu0 0.0
    %300 = vmatprep.subr.mxu0 0.0
    %301 = vmatpush1.msra.mxu0 0.0
    %302 = vmatprep.subr.mxu0 0.0
    %303 = vmatpush1.msra.mxu0 0.0
    %304 = vmatprep.subr.mxu0 0.0
    %305 = vmatpush1.msra.mxu0 0.0
    %306 = vmatprep.subr.mxu0 0.0
    %307 = vmatpush1.msra.mxu0 0.0
    %308 = vmatprep.subr.mxu0 0.0
    %309 = vmatpush1.msra.mxu0 0.0
    %310 = vmatprep.subr.mxu0 0.0
    %311 = vmatpush1.msra.mxu0 %v44
    %312 = vmatprep.subr.mxu0 0.0
    %313 = vmatpush1.msra.mxu0 %v43
    %314 = vmatprep.subr.mxu0 0.0
    %315 = vmatpush2.msra.mxu0 0.0
    %316 = vmatprep.subr.mxu0 0.0
    %317 = vmatpush2.msra.mxu0 0.0
    %318 = vmatprep.subr.mxu0 0.0
    %319 = vmatpush2.msra.mxu0 0.0
    %320 = vmatprep.subr.mxu0 0.0
    %321 = vmatpush2.msra.mxu0 0.0
    %322 = vmatprep.subr.mxu0 0.0
    %323 = vmatpush2.msra.mxu0 0.0
    %324 = vmatprep.subr.mxu0 0.0
    %325 = vmatpush2.msra.mxu0 0.0
    %326 = vmatprep.subr.mxu0 0.0
    %327 = vmatpush2.msra.mxu0 0.0
    %328 = vmatprep.subr.mxu0 0.0
    %329 = vmatpush2.msra.mxu0 0.0
    %330 = vmatprep.subr.mxu0 0.0
    %331 = vmatpush2.msra.mxu0 0.0
    %332 = vmatprep.subr.mxu0 0.0
    %333 = vmatpush2.msra.mxu0 0.0
    %334 = vmatprep.subr.mxu0 0.0
    %335 = vmatpush2.msra.mxu0 0.0
    %336 = vmatprep.subr.mxu0 0.0
    %337 = vmatpush2.msra.mxu0 0.0
    %338 = vmatprep.subr.mxu0 0.0
    %339 = vmatpush2.msra.mxu0 0.0
    %340 = vmatprep.subr.mxu0 0.0
    %341 = vmatpush2.msra.mxu0 0.0
    %342 = vmatprep.subr.mxu0 0.0
    %343 = vmatpush2.msra.mxu0 0.0
    %344 = vmatprep.subr.mxu0 0.0
    %345 = vmatpush2.msra.mxu0 0.0
    %346 = vmatprep.mubr.f32.mxu0 0.0
    %347 = vmatmul.mubr.f32.gmra.mxu0 %v49
    %v348 = vpop.f32.mrf.mxu0
    %v349 = vadd.f32 0.0, %v348
    %v350 = vpop.f32.mrf.mxu0
    %351 = vmatprep.mubr.f32.mxu0 0.0
    %352 = vmatmul.mubr.f32.gmra.mxu0 %v52
    %v353 = vpop.f32.mrf.mxu0
    %v354 = vadd.f32 0.0, %v353
    %v355 = vpop.f32.mrf.mxu0
    %356 = vmatprep.mubr.f32.mxu0 0.0
    %357 = vmatmul.mubr.f32.gmra.mxu0 %v55
    %v358 = vpop.f32.mrf.mxu0
    %v359 = vadd.f32 0.0, %v358
    %v360 = vpop.f32.mrf.mxu0
    %361 = vmatprep.mubr.f32.mxu0 0.0
    %362 = vmatmul.mubr.f32.gmra.mxu0 %v58
    %v363 = vpop.f32.mrf.mxu0
    %v364 = vadd.f32 0.0, %v363
    %v365 = vpop.f32.mrf.mxu0
    %366 = vmatprep.mubr.f32.mxu0 0.0
    %367 = vmatmul.mubr.f32.gmra.mxu0 %v61
    %v368 = vpop.f32.mrf.mxu0
    %v369 = vadd.f32 0.0, %v368
    %v370 = vpop.f32.mrf.mxu0
    %371 = vmatprep.mubr.f32.mxu0 0.0
    %372 = vmatmul.mubr.f32.gmra.mxu0 %v64
    %v373 = vpop.f32.mrf.mxu0
    %v374 = vadd.f32 0.0, %v373
    %v375 = vpop.f32.mrf.mxu0
    %376 = vmatprep.mubr.f32.mxu0 0.0
    %377 = vmatmul.mubr.f32.gmra.mxu0 %v67
    %v378 = vpop.f32.mrf.mxu0
    %v379 = vadd.f32 0.0, %v378
    %v380 = vpop.f32.mrf.mxu0
    %381 = vmatprep.mubr.f32.mxu0 0.0
    %382 = vmatmul.mubr.f32.gmra.mxu0 %v70
    %v383 = vpop.f32.mrf.mxu0
    %v384 = vadd.f32 0.0, %v383
    %v385 = vpop.f32.mrf.mxu0
    %386 = vdwg.mxu0
    %387 = vmatprep.subr.mxu0 0.0
    %388 = vmatpush1.msra.mxu0 0.0
    %389 = vmatprep.subr.mxu0 0.0
    %390 = vmatpush1.msra.mxu0 0.0
    %391 = vmatprep.subr.mxu0 0.0
    %392 = vmatpush1.msra.mxu0 0.0
    %393 = vmatprep.subr.mxu0 0.0
    %394 = vmatpush1.msra.mxu0 0.0
    %395 = vmatprep.subr.mxu0 0.0
    %396 = vmatpush1.msra.mxu0 0.0
    %397 = vmatprep.subr.mxu0 0.0
    %398 = vmatpush1.msra.mxu0 0.0
    %399 = vmatprep.subr.mxu0 0.0
    %400 = vmatpush1.msra.mxu0 0.0
    %401 = vmatprep.subr.mxu0 0.0
    %402 = vmatpush1.msra.mxu0 0.0
    %403 = vmatprep.subr.mxu0 0.0
    %404 = vmatpush1.msra.mxu0 0.0
    %405 = vmatprep.subr.mxu0 0.0
    %406 = vmatpush1.msra.mxu0 0.0
    %407 = vmatprep.subr.mxu0 0.0
    %408 = vmatpush1.msra.mxu0 0.0
    %409 = vmatprep.subr.mxu0 0.0
    %410 = vmatpush1.msra.mxu0 0.0
    %411 = vmatprep.subr.mxu0 0.0
    %412 = vmatpush1.msra.mxu0 0.0
    %413 = vmatprep.subr.mxu0 0.0
    %414 = vmatpush1.msra.mxu0 0.0
    %415 = vmatprep.subr.mxu0 0.0
    %416 = vmatpush1.msra.mxu0 %v46
    %417 = vmatprep.subr.mxu0 0.0
    %418 = vmatpush1.msra.mxu0 %v45
    %419 = vmatprep.subr.mxu0 0.0
    %420 = vmatpush2.msra.mxu0 0.0
    %421 = vmatprep.subr.mxu0 0.0
    %422 = vmatpush2.msra.mxu0 0.0
    %423 = vmatprep.subr.mxu0 0.0
    %424 = vmatpush2.msra.mxu0 0.0
    %425 = vmatprep.subr.mxu0 0.0
    %426 = vmatpush2.msra.mxu0 0.0
    %427 = vmatprep.subr.mxu0 0.0
    %428 = vmatpush2.msra.mxu0 0.0
    %429 = vmatprep.subr.mxu0 0.0
    %430 = vmatpush2.msra.mxu0 0.0
    %431 = vmatprep.subr.mxu0 0.0
    %432 = vmatpush2.msra.mxu0 0.0
    %433 = vmatprep.subr.mxu0 0.0
    %434 = vmatpush2.msra.mxu0 0.0
    %435 = vmatprep.subr.mxu0 0.0
    %436 = vmatpush2.msra.mxu0 0.0
    %437 = vmatprep.subr.mxu0 0.0
    %438 = vmatpush2.msra.mxu0 0.0
    %439 = vmatprep.subr.mxu0 0.0
    %440 = vmatpush2.msra.mxu0 0.0
    %441 = vmatprep.subr.mxu0 0.0
    %442 = vmatpush2.msra.mxu0 0.0
    %443 = vmatprep.subr.mxu0 0.0
    %444 = vmatpush2.msra.mxu0 0.0
    %445 = vmatprep.subr.mxu0 0.0
    %446 = vmatpush2.msra.mxu0 0.0
    %447 = vmatprep.subr.mxu0 0.0
    %448 = vmatpush2.msra.mxu0 0.0
    %449 = vmatprep.subr.mxu0 0.0
    %450 = vmatpush2.msra.mxu0 0.0
    %451 = vmatprep.mubr.f32.mxu0 0.0
    %452 = vmatmul.mubr.f32.gmra.mxu0 %v49
    %v453 = vpop.f32.mrf.mxu0
    %v454 = vadd.f32 0.0, %v453
    %v455 = vpop.f32.mrf.mxu0
    %456 = vmatprep.mubr.f32.mxu0 0.0
    %457 = vmatmul.mubr.f32.gmra.mxu0 %v52
    %v458 = vpop.f32.mrf.mxu0
    %v459 = vadd.f32 0.0, %v458
    %v460 = vpop.f32.mrf.mxu0
    %461 = vmatprep.mubr.f32.mxu0 0.0
    %462 = vmatmul.mubr.f32.gmra.mxu0 %v55
    %v463 = vpop.f32.mrf.mxu0
    %v464 = vadd.f32 0.0, %v463
    %v465 = vpop.f32.mrf.mxu0
    %466 = vmatprep.mubr.f32.mxu0 0.0
    %467 = vmatmul.mubr.f32.gmra.mxu0 %v58
    %v468 = vpop.f32.mrf.mxu0
    %v469 = vadd.f32 0.0, %v468
    %v470 = vpop.f32.mrf.mxu0
    %471 = vmatprep.mubr.f32.mxu0 0.0
    %472 = vmatmul.mubr.f32.gmra.mxu0 %v61
    %v473 = vpop.f32.mrf.mxu0
    %v474 = vadd.f32 0.0, %v473
    %v475 = vpop.f32.mrf.mxu0
    %476 = vmatprep.mubr.f32.mxu0 0.0
    %477 = vmatmul.mubr.f32.gmra.mxu0 %v64
    %v478 = vpop.f32.mrf.mxu0
    %v479 = vadd.f32 0.0, %v478
    %v480 = vpop.f32.mrf.mxu0
    %481 = vmatprep.mubr.f32.mxu0 0.0
    %482 = vmatmul.mubr.f32.gmra.mxu0 %v67
    %v483 = vpop.f32.mrf.mxu0
    %v484 = vadd.f32 0.0, %v483
    %v485 = vpop.f32.mrf.mxu0
    %486 = vmatprep.mubr.f32.mxu0 0.0
    %487 = vmatmul.mubr.f32.gmra.mxu0 %v70
    %v488 = vpop.f32.mrf.mxu0
    %v489 = vadd.f32 0.0, %v488
    %v490 = vpop.f32.mrf.mxu0
    %491 = vdwg.mxu0
    %493 = vrot.lane.b32.xlu0 %v139, 120
    %v494 = vpop.permute.xlu0 %493
    %vm495 = vcmask 64512
    %v496 = vsel %vm495, %v139, 0
    %v498 = vsel %vm495, %v494, 0
    %500 = vmatprep.subr.mxu0 0.0
    %501 = vmatpush1.xpose.msra.mxu0 0.0
    %502 = vmatprep.subr.mxu0 0.0
    %503 = vmatpush1.xpose.msra.mxu0 0.0
    %504 = vmatprep.subr.mxu0 0.0
    %505 = vmatpush1.xpose.msra.mxu0 0.0
    %506 = vmatprep.subr.mxu0 0.0
    %507 = vmatpush1.xpose.msra.mxu0 0.0
    %508 = vmatprep.subr.mxu0 0.0
    %509 = vmatpush1.xpose.msra.mxu0 0.0
    %510 = vmatprep.subr.mxu0 0.0
    %511 = vmatpush1.xpose.msra.mxu0 0.0
    %512 = vmatprep.subr.mxu0 0.0
    %513 = vmatpush1.xpose.msra.mxu0 0.0
    %514 = vmatprep.subr.mxu0 0.0
    %515 = vmatpush1.xpose.msra.mxu0 0.0
    %516 = vmatprep.subr.mxu0 0.0
    %517 = vmatpush1.xpose.msra.mxu0 0.0
    %518 = vmatprep.subr.mxu0 0.0
    %519 = vmatpush1.xpose.msra.mxu0 0.0
    %520 = vmatprep.subr.mxu0 0.0
    %521 = vmatpush1.xpose.msra.mxu0 0.0
    %522 = vmatprep.subr.mxu0 0.0
    %523 = vmatpush1.xpose.msra.mxu0 0.0
    %524 = vmatprep.subr.mxu0 0.0
    %525 = vmatpush1.xpose.msra.mxu0 0.0
    %526 = vmatprep.subr.mxu0 0.0
    %527 = vmatpush1.xpose.msra.mxu0 0.0
    %528 = vmatprep.subr.mxu0 0.0
    %529 = vmatpush1.xpose.msra.mxu0 0.0
    %530 = vmatprep.subr.mxu0 0.0
    %531 = vmatpush1.xpose.msra.mxu0 %v498
    %532 = vmatprep.subr.mxu0 0.0
    %533 = vmatpush2.xpose.msra.mxu0 0.0
    %534 = vmatprep.subr.mxu0 0.0
    %535 = vmatpush2.xpose.msra.mxu0 0.0
    %536 = vmatprep.subr.mxu0 0.0
    %537 = vmatpush2.xpose.msra.mxu0 0.0
    %538 = vmatprep.subr.mxu0 0.0
    %539 = vmatpush2.xpose.msra.mxu0 0.0
    %540 = vmatprep.subr.mxu0 0.0
    %541 = vmatpush2.xpose.msra.mxu0 0.0
    %542 = vmatprep.subr.mxu0 0.0
    %543 = vmatpush2.xpose.msra.mxu0 0.0
    %544 = vmatprep.subr.mxu0 0.0
    %545 = vmatpush2.xpose.msra.mxu0 0.0
    %546 = vmatprep.subr.mxu0 0.0
    %547 = vmatpush2.xpose.msra.mxu0 0.0
    %548 = vmatprep.subr.mxu0 0.0
    %549 = vmatpush2.xpose.msra.mxu0 0.0
    %550 = vmatprep.subr.mxu0 0.0
    %551 = vmatpush2.xpose.msra.mxu0 0.0
    %552 = vmatprep.subr.mxu0 0.0
    %553 = vmatpush2.xpose.msra.mxu0 0.0
    %554 = vmatprep.subr.mxu0 0.0
    %555 = vmatpush2.xpose.msra.mxu0 0.0
    %556 = vmatprep.subr.mxu0 0.0
    %557 = vmatpush2.xpose.msra.mxu0 0.0
    %558 = vmatprep.subr.mxu0 0.0
    %559 = vmatpush2.xpose.msra.mxu0 0.0
    %560 = vmatprep.subr.mxu0 0.0
    %561 = vmatpush2.xpose.msra.mxu0 0.0
    %562 = vmatprep.subr.mxu0 0.0
    %563 = vmatpush2.xpose.msra.mxu0 0.0
    %564 = vmatprep.mubr.f32.mxu0 0.0
    %565 = vmatmul.mubr.f32.gmra.mxu0 %v496
    %v566 = vpop.f32.mrf.mxu0
    %v567 = vadd.f32 0.0, %v566
    %v568 = vpop.f32.mrf.mxu0
    %569 = vdwg.mxu0
    %571 = vrot.lane.b32.xlu0 %v144, 120
    %v572 = vpop.permute.xlu0 %571
    %v573 = vsel %vm495, %v144, 0
    %v575 = vsel %vm495, %v572, 0
    %577 = vmatprep.subr.mxu0 0.0
    %578 = vmatpush1.xpose.msra.mxu0 0.0
    %579 = vmatprep.subr.mxu0 0.0
    %580 = vmatpush1.xpose.msra.mxu0 0.0
    %581 = vmatprep.subr.mxu0 0.0
    %582 = vmatpush1.xpose.msra.mxu0 0.0
    %583 = vmatprep.subr.mxu0 0.0
    %584 = vmatpush1.xpose.msra.mxu0 0.0
    %585 = vmatprep.subr.mxu0 0.0
    %586 = vmatpush1.xpose.msra.mxu0 0.0
    %587 = vmatprep.subr.mxu0 0.0
    %588 = vmatpush1.xpose.msra.mxu0 0.0
    %589 = vmatprep.subr.mxu0 0.0
    %590 = vmatpush1.xpose.msra.mxu0 0.0
    %591 = vmatprep.subr.mxu0 0.0
    %592 = vmatpush1.xpose.msra.mxu0 0.0
    %593 = vmatprep.subr.mxu0 0.0
    %594 = vmatpush1.xpose.msra.mxu0 0.0
    %595 = vmatprep.subr.mxu0 0.0
    %596 = vmatpush1.xpose.msra.mxu0 0.0
    %597 = vmatprep.subr.mxu0 0.0
    %598 = vmatpush1.xpose.msra.mxu0 0.0
    %599 = vmatprep.subr.mxu0 0.0
    %600 = vmatpush1.xpose.msra.mxu0 0.0
    %601 = vmatprep.subr.mxu0 0.0
    %602 = vmatpush1.xpose.msra.mxu0 0.0
    %603 = vmatprep.subr.mxu0 0.0
    %604 = vmatpush1.xpose.msra.mxu0 0.0
    %605 = vmatprep.subr.mxu0 0.0
    %606 = vmatpush1.xpose.msra.mxu0 0.0
    %607 = vmatprep.subr.mxu0 0.0
    %608 = vmatpush1.xpose.msra.mxu0 %v575
    %609 = vmatprep.subr.mxu0 0.0
    %610 = vmatpush2.xpose.msra.mxu0 0.0
    %611 = vmatprep.subr.mxu0 0.0
    %612 = vmatpush2.xpose.msra.mxu0 0.0
    %613 = vmatprep.subr.mxu0 0.0
    %614 = vmatpush2.xpose.msra.mxu0 0.0
    %615 = vmatprep.subr.mxu0 0.0
    %616 = vmatpush2.xpose.msra.mxu0 0.0
    %617 = vmatprep.subr.mxu0 0.0
    %618 = vmatpush2.xpose.msra.mxu0 0.0
    %619 = vmatprep.subr.mxu0 0.0
    %620 = vmatpush2.xpose.msra.mxu0 0.0
    %621 = vmatprep.subr.mxu0 0.0
    %622 = vmatpush2.xpose.msra.mxu0 0.0
    %623 = vmatprep.subr.mxu0 0.0
    %624 = vmatpush2.xpose.msra.mxu0 0.0
    %625 = vmatprep.subr.mxu0 0.0
    %626 = vmatpush2.xpose.msra.mxu0 0.0
    %627 = vmatprep.subr.mxu0 0.0
    %628 = vmatpush2.xpose.msra.mxu0 0.0
    %629 = vmatprep.subr.mxu0 0.0
    %630 = vmatpush2.xpose.msra.mxu0 0.0
    %631 = vmatprep.subr.mxu0 0.0
    %632 = vmatpush2.xpose.msra.mxu0 0.0
    %633 = vmatprep.subr.mxu0 0.0
    %634 = vmatpush2.xpose.msra.mxu0 0.0
    %635 = vmatprep.subr.mxu0 0.0
    %636 = vmatpush2.xpose.msra.mxu0 0.0
    %637 = vmatprep.subr.mxu0 0.0
    %638 = vmatpush2.xpose.msra.mxu0 0.0
    %639 = vmatprep.subr.mxu0 0.0
    %640 = vmatpush2.xpose.msra.mxu0 0.0
    %641 = vmatprep.mubr.f32.mxu0 0.0
    %642 = vmatmul.mubr.f32.gmra.mxu0 %v573
    %v643 = vpop.f32.mrf.mxu0
    %v644 = vadd.f32 0.0, %v643
    %v645 = vpop.f32.mrf.mxu0
    %646 = vdwg.mxu0
    %648 = vrot.lane.b32.xlu0 %v149, 120
    %v649 = vpop.permute.xlu0 %648
    %v650 = vsel %vm495, %v149, 0
    %v652 = vsel %vm495, %v649, 0
    %654 = vmatprep.subr.mxu0 0.0
    %655 = vmatpush1.xpose.msra.mxu0 0.0
    %656 = vmatprep.subr.mxu0 0.0
    %657 = vmatpush1.xpose.msra.mxu0 0.0
    %658 = vmatprep.subr.mxu0 0.0
    %659 = vmatpush1.xpose.msra.mxu0 0.0
    %660 = vmatprep.subr.mxu0 0.0
    %661 = vmatpush1.xpose.msra.mxu0 0.0
    %662 = vmatprep.subr.mxu0 0.0
    %663 = vmatpush1.xpose.msra.mxu0 0.0
    %664 = vmatprep.subr.mxu0 0.0
    %665 = vmatpush1.xpose.msra.mxu0 0.0
    %666 = vmatprep.subr.mxu0 0.0
    %667 = vmatpush1.xpose.msra.mxu0 0.0
    %668 = vmatprep.subr.mxu0 0.0
    %669 = vmatpush1.xpose.msra.mxu0 0.0
    %670 = vmatprep.subr.mxu0 0.0
    %671 = vmatpush1.xpose.msra.mxu0 0.0
    %672 = vmatprep.subr.mxu0 0.0
    %673 = vmatpush1.xpose.msra.mxu0 0.0
    %674 = vmatprep.subr.mxu0 0.0
    %675 = vmatpush1.xpose.msra.mxu0 0.0
    %676 = vmatprep.subr.mxu0 0.0
    %677 = vmatpush1.xpose.msra.mxu0 0.0
    %678 = vmatprep.subr.mxu0 0.0
    %679 = vmatpush1.xpose.msra.mxu0 0.0
    %680 = vmatprep.subr.mxu0 0.0
    %681 = vmatpush1.xpose.msra.mxu0 0.0
    %682 = vmatprep.subr.mxu0 0.0
    %683 = vmatpush1.xpose.msra.mxu0 0.0
    %684 = vmatprep.subr.mxu0 0.0
    %685 = vmatpush1.xpose.msra.mxu0 %v652
    %686 = vmatprep.subr.mxu0 0.0
    %687 = vmatpush2.xpose.msra.mxu0 0.0
    %688 = vmatprep.subr.mxu0 0.0
    %689 = vmatpush2.xpose.msra.mxu0 0.0
    %690 = vmatprep.subr.mxu0 0.0
    %691 = vmatpush2.xpose.msra.mxu0 0.0
    %692 = vmatprep.subr.mxu0 0.0
    %693 = vmatpush2.xpose.msra.mxu0 0.0
    %694 = vmatprep.subr.mxu0 0.0
    %695 = vmatpush2.xpose.msra.mxu0 0.0
    %696 = vmatprep.subr.mxu0 0.0
    %697 = vmatpush2.xpose.msra.mxu0 0.0
    %698 = vmatprep.subr.mxu0 0.0
    %699 = vmatpush2.xpose.msra.mxu0 0.0
    %700 = vmatprep.subr.mxu0 0.0
    %701 = vmatpush2.xpose.msra.mxu0 0.0
    %702 = vmatprep.subr.mxu0 0.0
    %703 = vmatpush2.xpose.msra.mxu0 0.0
    %704 = vmatprep.subr.mxu0 0.0
    %705 = vmatpush2.xpose.msra.mxu0 0.0
    %706 = vmatprep.subr.mxu0 0.0
    %707 = vmatpush2.xpose.msra.mxu0 0.0
    %708 = vmatprep.subr.mxu0 0.0
    %709 = vmatpush2.xpose.msra.mxu0 0.0
    %710 = vmatprep.subr.mxu0 0.0
    %711 = vmatpush2.xpose.msra.mxu0 0.0
    %712 = vmatprep.subr.mxu0 0.0
    %713 = vmatpush2.xpose.msra.mxu0 0.0
    %714 = vmatprep.subr.mxu0 0.0
    %715 = vmatpush2.xpose.msra.mxu0 0.0
    %716 = vmatprep.subr.mxu0 0.0
    %717 = vmatpush2.xpose.msra.mxu0 0.0
    %718 = vmatprep.mubr.f32.mxu0 0.0
    %719 = vmatmul.mubr.f32.gmra.mxu0 %v650
    %v720 = vpop.f32.mrf.mxu0
    %v721 = vadd.f32 0.0, %v720
    %v722 = vpop.f32.mrf.mxu0
    %723 = vdwg.mxu0
    %725 = vrot.lane.b32.xlu0 %v154, 120
    %v726 = vpop.permute.xlu0 %725
    %v727 = vsel %vm495, %v154, 0
    %v729 = vsel %vm495, %v726, 0
    %731 = vmatprep.subr.mxu0 0.0
    %732 = vmatpush1.xpose.msra.mxu0 0.0
    %733 = vmatprep.subr.mxu0 0.0
    %734 = vmatpush1.xpose.msra.mxu0 0.0
    %735 = vmatprep.subr.mxu0 0.0
    %736 = vmatpush1.xpose.msra.mxu0 0.0
    %737 = vmatprep.subr.mxu0 0.0
    %738 = vmatpush1.xpose.msra.mxu0 0.0
    %739 = vmatprep.subr.mxu0 0.0
    %740 = vmatpush1.xpose.msra.mxu0 0.0
    %741 = vmatprep.subr.mxu0 0.0
    %742 = vmatpush1.xpose.msra.mxu0 0.0
    %743 = vmatprep.subr.mxu0 0.0
    %744 = vmatpush1.xpose.msra.mxu0 0.0
    %745 = vmatprep.subr.mxu0 0.0
    %746 = vmatpush1.xpose.msra.mxu0 0.0
    %747 = vmatprep.subr.mxu0 0.0
    %748 = vmatpush1.xpose.msra.mxu0 0.0
    %749 = vmatprep.subr.mxu0 0.0
    %750 = vmatpush1.xpose.msra.mxu0 0.0
    %751 = vmatprep.subr.mxu0 0.0
    %752 = vmatpush1.xpose.msra.mxu0 0.0
    %753 = vmatprep.subr.mxu0 0.0
    %754 = vmatpush1.xpose.msra.mxu0 0.0
    %755 = vmatprep.subr.mxu0 0.0
    %756 = vmatpush1.xpose.msra.mxu0 0.0
    %757 = vmatprep.subr.mxu0 0.0
    %758 = vmatpush1.xpose.msra.mxu0 0.0
    %759 = vmatprep.subr.mxu0 0.0
    %760 = vmatpush1.xpose.msra.mxu0 0.0
    %761 = vmatprep.subr.mxu0 0.0
    %762 = vmatpush1.xpose.msra.mxu0 %v729
    %763 = vmatprep.subr.mxu0 0.0
    %764 = vmatpush2.xpose.msra.mxu0 0.0
    %765 = vmatprep.subr.mxu0 0.0
    %766 = vmatpush2.xpose.msra.mxu0 0.0
    %767 = vmatprep.subr.mxu0 0.0
    %768 = vmatpush2.xpose.msra.mxu0 0.0
    %769 = vmatprep.subr.mxu0 0.0
    %770 = vmatpush2.xpose.msra.mxu0 0.0
    %771 = vmatprep.subr.mxu0 0.0
    %772 = vmatpush2.xpose.msra.mxu0 0.0
    %773 = vmatprep.subr.mxu0 0.0
    %774 = vmatpush2.xpose.msra.mxu0 0.0
    %775 = vmatprep.subr.mxu0 0.0
    %776 = vmatpush2.xpose.msra.mxu0 0.0
    %777 = vmatprep.subr.mxu0 0.0
    %778 = vmatpush2.xpose.msra.mxu0 0.0
    %779 = vmatprep.subr.mxu0 0.0
    %780 = vmatpush2.xpose.msra.mxu0 0.0
    %781 = vmatprep.subr.mxu0 0.0
    %782 = vmatpush2.xpose.msra.mxu0 0.0
    %783 = vmatprep.subr.mxu0 0.0
    %784 = vmatpush2.xpose.msra.mxu0 0.0
    %785 = vmatprep.subr.mxu0 0.0
    %786 = vmatpush2.xpose.msra.mxu0 0.0
    %787 = vmatprep.subr.mxu0 0.0
    %788 = vmatpush2.xpose.msra.mxu0 0.0
    %789 = vmatprep.subr.mxu0 0.0
    %790 = vmatpush2.xpose.msra.mxu0 0.0
    %791 = vmatprep.subr.mxu0 0.0
    %792 = vmatpush2.xpose.msra.mxu0 0.0
    %793 = vmatprep.subr.mxu0 0.0
    %794 = vmatpush2.xpose.msra.mxu0 0.0
    %795 = vmatprep.mubr.f32.mxu0 0.0
    %796 = vmatmul.mubr.f32.gmra.mxu0 %v727
    %v797 = vpop.f32.mrf.mxu0
    %v798 = vadd.f32 0.0, %v797
    %v799 = vpop.f32.mrf.mxu0
    %800 = vdwg.mxu0
    %802 = vrot.lane.b32.xlu0 %v159, 120
    %v803 = vpop.permute.xlu0 %802
    %v804 = vsel %vm495, %v159, 0
    %v806 = vsel %vm495, %v803, 0
    %808 = vmatprep.subr.mxu0 0.0
    %809 = vmatpush1.xpose.msra.mxu0 0.0
    %810 = vmatprep.subr.mxu0 0.0
    %811 = vmatpush1.xpose.msra.mxu0 0.0
    %812 = vmatprep.subr.mxu0 0.0
    %813 = vmatpush1.xpose.msra.mxu0 0.0
    %814 = vmatprep.subr.mxu0 0.0
    %815 = vmatpush1.xpose.msra.mxu0 0.0
    %816 = vmatprep.subr.mxu0 0.0
    %817 = vmatpush1.xpose.msra.mxu0 0.0
    %818 = vmatprep.subr.mxu0 0.0
    %819 = vmatpush1.xpose.msra.mxu0 0.0
    %820 = vmatprep.subr.mxu0 0.0
    %821 = vmatpush1.xpose.msra.mxu0 0.0
    %822 = vmatprep.subr.mxu0 0.0
    %823 = vmatpush1.xpose.msra.mxu0 0.0
    %824 = vmatprep.subr.mxu0 0.0
    %825 = vmatpush1.xpose.msra.mxu0 0.0
    %826 = vmatprep.subr.mxu0 0.0
    %827 = vmatpush1.xpose.msra.mxu0 0.0
    %828 = vmatprep.subr.mxu0 0.0
    %829 = vmatpush1.xpose.msra.mxu0 0.0
    %830 = vmatprep.subr.mxu0 0.0
    %831 = vmatpush1.xpose.msra.mxu0 0.0
    %832 = vmatprep.subr.mxu0 0.0
    %833 = vmatpush1.xpose.msra.mxu0 0.0
    %834 = vmatprep.subr.mxu0 0.0
    %835 = vmatpush1.xpose.msra.mxu0 0.0
    %836 = vmatprep.subr.mxu0 0.0
    %837 = vmatpush1.xpose.msra.mxu0 0.0
    %838 = vmatprep.subr.mxu0 0.0
    %839 = vmatpush1.xpose.msra.mxu0 %v806
    %840 = vmatprep.subr.mxu0 0.0
    %841 = vmatpush2.xpose.msra.mxu0 0.0
    %842 = vmatprep.subr.mxu0 0.0
    %843 = vmatpush2.xpose.msra.mxu0 0.0
    %844 = vmatprep.subr.mxu0 0.0
    %845 = vmatpush2.xpose.msra.mxu0 0.0
    %846 = vmatprep.subr.mxu0 0.0
    %847 = vmatpush2.xpose.msra.mxu0 0.0
    %848 = vmatprep.subr.mxu0 0.0
    %849 = vmatpush2.xpose.msra.mxu0 0.0
    %850 = vmatprep.subr.mxu0 0.0
    %851 = vmatpush2.xpose.msra.mxu0 0.0
    %852 = vmatprep.subr.mxu0 0.0
    %853 = vmatpush2.xpose.msra.mxu0 0.0
    %854 = vmatprep.subr.mxu0 0.0
    %855 = vmatpush2.xpose.msra.mxu0 0.0
    %856 = vmatprep.subr.mxu0 0.0
    %857 = vmatpush2.xpose.msra.mxu0 0.0
    %858 = vmatprep.subr.mxu0 0.0
    %859 = vmatpush2.xpose.msra.mxu0 0.0
    %860 = vmatprep.subr.mxu0 0.0
    %861 = vmatpush2.xpose.msra.mxu0 0.0
    %862 = vmatprep.subr.mxu0 0.0
    %863 = vmatpush2.xpose.msra.mxu0 0.0
    %864 = vmatprep.subr.mxu0 0.0
    %865 = vmatpush2.xpose.msra.mxu0 0.0
    %866 = vmatprep.subr.mxu0 0.0
    %867 = vmatpush2.xpose.msra.mxu0 0.0
    %868 = vmatprep.subr.mxu0 0.0
    %869 = vmatpush2.xpose.msra.mxu0 0.0
    %870 = vmatprep.subr.mxu0 0.0
    %871 = vmatpush2.xpose.msra.mxu0 0.0
    %872 = vmatprep.mubr.f32.mxu0 0.0
    %873 = vmatmul.mubr.f32.gmra.mxu0 %v804
    %v874 = vpop.f32.mrf.mxu0
    %v875 = vadd.f32 0.0, %v874
    %v876 = vpop.f32.mrf.mxu0
    %877 = vdwg.mxu0
    %879 = vrot.lane.b32.xlu0 %v164, 120
    %v880 = vpop.permute.xlu0 %879
    %v881 = vsel %vm495, %v164, 0
    %v883 = vsel %vm495, %v880, 0
    %885 = vmatprep.subr.mxu0 0.0
    %886 = vmatpush1.xpose.msra.mxu0 0.0
    %887 = vmatprep.subr.mxu0 0.0
    %888 = vmatpush1.xpose.msra.mxu0 0.0
    %889 = vmatprep.subr.mxu0 0.0
    %890 = vmatpush1.xpose.msra.mxu0 0.0
    %891 = vmatprep.subr.mxu0 0.0
    %892 = vmatpush1.xpose.msra.mxu0 0.0
    %893 = vmatprep.subr.mxu0 0.0
    %894 = vmatpush1.xpose.msra.mxu0 0.0
    %895 = vmatprep.subr.mxu0 0.0
    %896 = vmatpush1.xpose.msra.mxu0 0.0
    %897 = vmatprep.subr.mxu0 0.0
    %898 = vmatpush1.xpose.msra.mxu0 0.0
    %899 = vmatprep.subr.mxu0 0.0
    %900 = vmatpush1.xpose.msra.mxu0 0.0
    %901 = vmatprep.subr.mxu0 0.0
    %902 = vmatpush1.xpose.msra.mxu0 0.0
    %903 = vmatprep.subr.mxu0 0.0
    %904 = vmatpush1.xpose.msra.mxu0 0.0
    %905 = vmatprep.subr.mxu0 0.0
    %906 = vmatpush1.xpose.msra.mxu0 0.0
    %907 = vmatprep.subr.mxu0 0.0
    %908 = vmatpush1.xpose.msra.mxu0 0.0
    %909 = vmatprep.subr.mxu0 0.0
    %910 = vmatpush1.xpose.msra.mxu0 0.0
    %911 = vmatprep.subr.mxu0 0.0
    %912 = vmatpush1.xpose.msra.mxu0 0.0
    %913 = vmatprep.subr.mxu0 0.0
    %914 = vmatpush1.xpose.msra.mxu0 0.0
    %915 = vmatprep.subr.mxu0 0.0
    %916 = vmatpush1.xpose.msra.mxu0 %v883
    %917 = vmatprep.subr.mxu0 0.0
    %918 = vmatpush2.xpose.msra.mxu0 0.0
    %919 = vmatprep.subr.mxu0 0.0
    %920 = vmatpush2.xpose.msra.mxu0 0.0
    %921 = vmatprep.subr.mxu0 0.0
    %922 = vmatpush2.xpose.msra.mxu0 0.0
    %923 = vmatprep.subr.mxu0 0.0
    %924 = vmatpush2.xpose.msra.mxu0 0.0
    %925 = vmatprep.subr.mxu0 0.0
    %926 = vmatpush2.xpose.msra.mxu0 0.0
    %927 = vmatprep.subr.mxu0 0.0
    %928 = vmatpush2.xpose.msra.mxu0 0.0
    %929 = vmatprep.subr.mxu0 0.0
    %930 = vmatpush2.xpose.msra.mxu0 0.0
    %931 = vmatprep.subr.mxu0 0.0
    %932 = vmatpush2.xpose.msra.mxu0 0.0
    %933 = vmatprep.subr.mxu0 0.0
    %934 = vmatpush2.xpose.msra.mxu0 0.0
    %935 = vmatprep.subr.mxu0 0.0
    %936 = vmatpush2.xpose.msra.mxu0 0.0
    %937 = vmatprep.subr.mxu0 0.0
    %938 = vmatpush2.xpose.msra.mxu0 0.0
    %939 = vmatprep.subr.mxu0 0.0
    %940 = vmatpush2.xpose.msra.mxu0 0.0
    %941 = vmatprep.subr.mxu0 0.0
    %942 = vmatpush2.xpose.msra.mxu0 0.0
    %943 = vmatprep.subr.mxu0 0.0
    %944 = vmatpush2.xpose.msra.mxu0 0.0
    %945 = vmatprep.subr.mxu0 0.0
    %946 = vmatpush2.xpose.msra.mxu0 0.0
    %947 = vmatprep.subr.mxu0 0.0
    %948 = vmatpush2.xpose.msra.mxu0 0.0
    %949 = vmatprep.mubr.f32.mxu0 0.0
    %950 = vmatmul.mubr.f32.gmra.mxu0 %v881
    %v951 = vpop.f32.mrf.mxu0
    %v952 = vadd.f32 0.0, %v951
    %v953 = vpop.f32.mrf.mxu0
    %954 = vdwg.mxu0
    %956 = vrot.lane.b32.xlu0 %v169, 120
    %v957 = vpop.permute.xlu0 %956
    %v958 = vsel %vm495, %v169, 0
    %v960 = vsel %vm495, %v957, 0
    %962 = vmatprep.subr.mxu0 0.0
    %963 = vmatpush1.xpose.msra.mxu0 0.0
    %964 = vmatprep.subr.mxu0 0.0
    %965 = vmatpush1.xpose.msra.mxu0 0.0
    %966 = vmatprep.subr.mxu0 0.0
    %967 = vmatpush1.xpose.msra.mxu0 0.0
    %968 = vmatprep.subr.mxu0 0.0
    %969 = vmatpush1.xpose.msra.mxu0 0.0
    %970 = vmatprep.subr.mxu0 0.0
    %971 = vmatpush1.xpose.msra.mxu0 0.0
    %972 = vmatprep.subr.mxu0 0.0
    %973 = vmatpush1.xpose.msra.mxu0 0.0
    %974 = vmatprep.subr.mxu0 0.0
    %975 = vmatpush1.xpose.msra.mxu0 0.0
    %976 = vmatprep.subr.mxu0 0.0
    %977 = vmatpush1.xpose.msra.mxu0 0.0
    %978 = vmatprep.subr.mxu0 0.0
    %979 = vmatpush1.xpose.msra.mxu0 0.0
    %980 = vmatprep.subr.mxu0 0.0
    %981 = vmatpush1.xpose.msra.mxu0 0.0
    %982 = vmatprep.subr.mxu0 0.0
    %983 = vmatpush1.xpose.msra.mxu0 0.0
    %984 = vmatprep.subr.mxu0 0.0
    %985 = vmatpush1.xpose.msra.mxu0 0.0
    %986 = vmatprep.subr.mxu0 0.0
    %987 = vmatpush1.xpose.msra.mxu0 0.0
    %988 = vmatprep.subr.mxu0 0.0
    %989 = vmatpush1.xpose.msra.mxu0 0.0
    %990 = vmatprep.subr.mxu0 0.0
    %991 = vmatpush1.xpose.msra.mxu0 0.0
    %992 = vmatprep.subr.mxu0 0.0
    %993 = vmatpush1.xpose.msra.mxu0 %v960
    %994 = vmatprep.subr.mxu0 0.0
    %995 = vmatpush2.xpose.msra.mxu0 0.0
    %996 = vmatprep.subr.mxu0 0.0
    %997 = vmatpush2.xpose.msra.mxu0 0.0
    %998 = vmatprep.subr.mxu0 0.0
    %999 = vmatpush2.xpose.msra.mxu0 0.0
    %1000 = vmatprep.subr.mxu0 0.0
    %1001 = vmatpush2.xpose.msra.mxu0 0.0
    %1002 = vmatprep.subr.mxu0 0.0
    %1003 = vmatpush2.xpose.msra.mxu0 0.0
    %1004 = vmatprep.subr.mxu0 0.0
    %1005 = vmatpush2.xpose.msra.mxu0 0.0
    %1006 = vmatprep.subr.mxu0 0.0
    %1007 = vmatpush2.xpose.msra.mxu0 0.0
    %1008 = vmatprep.subr.mxu0 0.0
    %1009 = vmatpush2.xpose.msra.mxu0 0.0
    %1010 = vmatprep.subr.mxu0 0.0
    %1011 = vmatpush2.xpose.msra.mxu0 0.0
    %1012 = vmatprep.subr.mxu0 0.0
    %1013 = vmatpush2.xpose.msra.mxu0 0.0
    %1014 = vmatprep.subr.mxu0 0.0
    %1015 = vmatpush2.xpose.msra.mxu0 0.0
    %1016 = vmatprep.subr.mxu0 0.0
    %1017 = vmatpush2.xpose.msra.mxu0 0.0
    %1018 = vmatprep.subr.mxu0 0.0
    %1019 = vmatpush2.xpose.msra.mxu0 0.0
    %1020 = vmatprep.subr.mxu0 0.0
    %1021 = vmatpush2.xpose.msra.mxu0 0.0
    %1022 = vmatprep.subr.mxu0 0.0
    %1023 = vmatpush2.xpose.msra.mxu0 0.0
    %1024 = vmatprep.subr.mxu0 0.0
    %1025 = vmatpush2.xpose.msra.mxu0 0.0
    %1026 = vmatprep.mubr.f32.mxu0 0.0
    %1027 = vmatmul.mubr.f32.gmra.mxu0 %v958
    %v1028 = vpop.f32.mrf.mxu0
    %v1029 = vadd.f32 0.0, %v1028
    %v1030 = vpop.f32.mrf.mxu0
    %1031 = vdwg.mxu0
    %1033 = vrot.lane.b32.xlu0 %v174, 120
    %v1034 = vpop.permute.xlu0 %1033
    %v1035 = vsel %vm495, %v174, 0
    %v1037 = vsel %vm495, %v1034, 0
    %1039 = vmatprep.subr.mxu0 0.0
    %1040 = vmatpush1.xpose.msra.mxu0 0.0
    %1041 = vmatprep.subr.mxu0 0.0
    %1042 = vmatpush1.xpose.msra.mxu0 0.0
    %1043 = vmatprep.subr.mxu0 0.0
    %1044 = vmatpush1.xpose.msra.mxu0 0.0
    %1045 = vmatprep.subr.mxu0 0.0
    %1046 = vmatpush1.xpose.msra.mxu0 0.0
    %1047 = vmatprep.subr.mxu0 0.0
    %1048 = vmatpush1.xpose.msra.mxu0 0.0
    %1049 = vmatprep.subr.mxu0 0.0
    %1050 = vmatpush1.xpose.msra.mxu0 0.0
    %1051 = vmatprep.subr.mxu0 0.0
    %1052 = vmatpush1.xpose.msra.mxu0 0.0
    %1053 = vmatprep.subr.mxu0 0.0
    %1054 = vmatpush1.xpose.msra.mxu0 0.0
    %1055 = vmatprep.subr.mxu0 0.0
    %1056 = vmatpush1.xpose.msra.mxu0 0.0
    %1057 = vmatprep.subr.mxu0 0.0
    %1058 = vmatpush1.xpose.msra.mxu0 0.0
    %1059 = vmatprep.subr.mxu0 0.0
    %1060 = vmatpush1.xpose.msra.mxu0 0.0
    %1061 = vmatprep.subr.mxu0 0.0
    %1062 = vmatpush1.xpose.msra.mxu0 0.0
    %1063 = vmatprep.subr.mxu0 0.0
    %1064 = vmatpush1.xpose.msra.mxu0 0.0
    %1065 = vmatprep.subr.mxu0 0.0
    %1066 = vmatpush1.xpose.msra.mxu0 0.0
    %1067 = vmatprep.subr.mxu0 0.0
    %1068 = vmatpush1.xpose.msra.mxu0 0.0
    %1069 = vmatprep.subr.mxu0 0.0
    %1070 = vmatpush1.xpose.msra.mxu0 %v1037
    %1071 = vmatprep.subr.mxu0 0.0
    %1072 = vmatpush2.xpose.msra.mxu0 0.0
    %1073 = vmatprep.subr.mxu0 0.0
    %1074 = vmatpush2.xpose.msra.mxu0 0.0
    %1075 = vmatprep.subr.mxu0 0.0
    %1076 = vmatpush2.xpose.msra.mxu0 0.0
    %1077 = vmatprep.subr.mxu0 0.0
    %1078 = vmatpush2.xpose.msra.mxu0 0.0
    %1079 = vmatprep.subr.mxu0 0.0
    %1080 = vmatpush2.xpose.msra.mxu0 0.0
    %1081 = vmatprep.subr.mxu0 0.0
    %1082 = vmatpush2.xpose.msra.mxu0 0.0
    %1083 = vmatprep.subr.mxu0 0.0
    %1084 = vmatpush2.xpose.msra.mxu0 0.0
    %1085 = vmatprep.subr.mxu0 0.0
    %1086 = vmatpush2.xpose.msra.mxu0 0.0
    %1087 = vmatprep.subr.mxu0 0.0
    %1088 = vmatpush2.xpose.msra.mxu0 0.0
    %1089 = vmatprep.subr.mxu0 0.0
    %1090 = vmatpush2.xpose.msra.mxu0 0.0
    %1091 = vmatprep.subr.mxu0 0.0
    %1092 = vmatpush2.xpose.msra.mxu0 0.0
    %1093 = vmatprep.subr.mxu0 0.0
    %1094 = vmatpush2.xpose.msra.mxu0 0.0
    %1095 = vmatprep.subr.mxu0 0.0
    %1096 = vmatpush2.xpose.msra.mxu0 0.0
    %1097 = vmatprep.subr.mxu0 0.0
    %1098 = vmatpush2.xpose.msra.mxu0 0.0
    %1099 = vmatprep.subr.mxu0 0.0
    %1100 = vmatpush2.xpose.msra.mxu0 0.0
    %1101 = vmatprep.subr.mxu0 0.0
    %1102 = vmatpush2.xpose.msra.mxu0 0.0
    %1103 = vmatprep.mubr.f32.mxu0 0.0
    %1104 = vmatmul.mubr.f32.gmra.mxu0 %v1035
    %v1105 = vpop.f32.mrf.mxu0
    %v1106 = vadd.f32 0.0, %v1105
    %v1107 = vpop.f32.mrf.mxu0
    %1108 = vdwg.mxu0
    %1110 = vrot.lane.b32.xlu0 %v244, 120
    %v1111 = vpop.permute.xlu0 %1110
    %v1112 = vsel %vm495, %v244, 0
    %v1114 = vsel %vm495, %v1111, 0
    %1116 = vmatprep.subr.mxu0 0.0
    %1117 = vmatpush1.xpose.msra.mxu0 0.0
    %1118 = vmatprep.subr.mxu0 0.0
    %1119 = vmatpush1.xpose.msra.mxu0 0.0
    %1120 = vmatprep.subr.mxu0 0.0
    %1121 = vmatpush1.xpose.msra.mxu0 0.0
    %1122 = vmatprep.subr.mxu0 0.0
    %1123 = vmatpush1.xpose.msra.mxu0 0.0
    %1124 = vmatprep.subr.mxu0 0.0
    %1125 = vmatpush1.xpose.msra.mxu0 0.0
    %1126 = vmatprep.subr.mxu0 0.0
    %1127 = vmatpush1.xpose.msra.mxu0 0.0
    %1128 = vmatprep.subr.mxu0 0.0
    %1129 = vmatpush1.xpose.msra.mxu0 0.0
    %1130 = vmatprep.subr.mxu0 0.0
    %1131 = vmatpush1.xpose.msra.mxu0 0.0
    %1132 = vmatprep.subr.mxu0 0.0
    %1133 = vmatpush1.xpose.msra.mxu0 0.0
    %1134 = vmatprep.subr.mxu0 0.0
    %1135 = vmatpush1.xpose.msra.mxu0 0.0
    %1136 = vmatprep.subr.mxu0 0.0
    %1137 = vmatpush1.xpose.msra.mxu0 0.0
    %1138 = vmatprep.subr.mxu0 0.0
    %1139 = vmatpush1.xpose.msra.mxu0 0.0
    %1140 = vmatprep.subr.mxu0 0.0
    %1141 = vmatpush1.xpose.msra.mxu0 0.0
    %1142 = vmatprep.subr.mxu0 0.0
    %1143 = vmatpush1.xpose.msra.mxu0 0.0
    %1144 = vmatprep.subr.mxu0 0.0
    %1145 = vmatpush1.xpose.msra.mxu0 0.0
    %1146 = vmatprep.subr.mxu0 0.0
    %1147 = vmatpush1.xpose.msra.mxu0 %v1114
    %1148 = vmatprep.subr.mxu0 0.0
    %1149 = vmatpush2.xpose.msra.mxu0 0.0
    %1150 = vmatprep.subr.mxu0 0.0
    %1151 = vmatpush2.xpose.msra.mxu0 0.0
    %1152 = vmatprep.subr.mxu0 0.0
    %1153 = vmatpush2.xpose.msra.mxu0 0.0
    %1154 = vmatprep.subr.mxu0 0.0
    %1155 = vmatpush2.xpose.msra.mxu0 0.0
    %1156 = vmatprep.subr.mxu0 0.0
    %1157 = vmatpush2.xpose.msra.mxu0 0.0
    %1158 = vmatprep.subr.mxu0 0.0
    %1159 = vmatpush2.xpose.msra.mxu0 0.0
    %1160 = vmatprep.subr.mxu0 0.0
    %1161 = vmatpush2.xpose.msra.mxu0 0.0
    %1162 = vmatprep.subr.mxu0 0.0
    %1163 = vmatpush2.xpose.msra.mxu0 0.0
    %1164 = vmatprep.subr.mxu0 0.0
    %1165 = vmatpush2.xpose.msra.mxu0 0.0
    %1166 = vmatprep.subr.mxu0 0.0
    %1167 = vmatpush2.xpose.msra.mxu0 0.0
    %1168 = vmatprep.subr.mxu0 0.0
    %1169 = vmatpush2.xpose.msra.mxu0 0.0
    %1170 = vmatprep.subr.mxu0 0.0
    %1171 = vmatpush2.xpose.msra.mxu0 0.0
    %1172 = vmatprep.subr.mxu0 0.0
    %1173 = vmatpush2.xpose.msra.mxu0 0.0
    %1174 = vmatprep.subr.mxu0 0.0
    %1175 = vmatpush2.xpose.msra.mxu0 0.0
    %1176 = vmatprep.subr.mxu0 0.0
    %1177 = vmatpush2.xpose.msra.mxu0 0.0
    %1178 = vmatprep.subr.mxu0 0.0
    %1179 = vmatpush2.xpose.msra.mxu0 0.0
    %1180 = vmatprep.mubr.f32.mxu0 0.0
    %1181 = vmatmul.mubr.f32.gmra.mxu0 %v1112
    %v1182 = vpop.f32.mrf.mxu0
    %v1183 = vadd.f32 0.0, %v1182
    %v1184 = vpop.f32.mrf.mxu0
    %1185 = vdwg.mxu0
    %1187 = vrot.lane.b32.xlu0 %v249, 120
    %v1188 = vpop.permute.xlu0 %1187
    %v1189 = vsel %vm495, %v249, 0
    %v1191 = vsel %vm495, %v1188, 0
    %1193 = vmatprep.subr.mxu0 0.0
    %1194 = vmatpush1.xpose.msra.mxu0 0.0
    %1195 = vmatprep.subr.mxu0 0.0
    %1196 = vmatpush1.xpose.msra.mxu0 0.0
    %1197 = vmatprep.subr.mxu0 0.0
    %1198 = vmatpush1.xpose.msra.mxu0 0.0
    %1199 = vmatprep.subr.mxu0 0.0
    %1200 = vmatpush1.xpose.msra.mxu0 0.0
    %1201 = vmatprep.subr.mxu0 0.0
    %1202 = vmatpush1.xpose.msra.mxu0 0.0
    %1203 = vmatprep.subr.mxu0 0.0
    %1204 = vmatpush1.xpose.msra.mxu0 0.0
    %1205 = vmatprep.subr.mxu0 0.0
    %1206 = vmatpush1.xpose.msra.mxu0 0.0
    %1207 = vmatprep.subr.mxu0 0.0
    %1208 = vmatpush1.xpose.msra.mxu0 0.0
    %1209 = vmatprep.subr.mxu0 0.0
    %1210 = vmatpush1.xpose.msra.mxu0 0.0
    %1211 = vmatprep.subr.mxu0 0.0
    %1212 = vmatpush1.xpose.msra.mxu0 0.0
    %1213 = vmatprep.subr.mxu0 0.0
    %1214 = vmatpush1.xpose.msra.mxu0 0.0
    %1215 = vmatprep.subr.mxu0 0.0
    %1216 = vmatpush1.xpose.msra.mxu0 0.0
    %1217 = vmatprep.subr.mxu0 0.0
    %1218 = vmatpush1.xpose.msra.mxu0 0.0
    %1219 = vmatprep.subr.mxu0 0.0
    %1220 = vmatpush1.xpose.msra.mxu0 0.0
    %1221 = vmatprep.subr.mxu0 0.0
    %1222 = vmatpush1.xpose.msra.mxu0 0.0
    %1223 = vmatprep.subr.mxu0 0.0
    %1224 = vmatpush1.xpose.msra.mxu0 %v1191
    %1225 = vmatprep.subr.mxu0 0.0
    %1226 = vmatpush2.xpose.msra.mxu0 0.0
    %1227 = vmatprep.subr.mxu0 0.0
    %1228 = vmatpush2.xpose.msra.mxu0 0.0
    %1229 = vmatprep.subr.mxu0 0.0
    %1230 = vmatpush2.xpose.msra.mxu0 0.0
    %1231 = vmatprep.subr.mxu0 0.0
    %1232 = vmatpush2.xpose.msra.mxu0 0.0
    %1233 = vmatprep.subr.mxu0 0.0
    %1234 = vmatpush2.xpose.msra.mxu0 0.0
    %1235 = vmatprep.subr.mxu0 0.0
    %1236 = vmatpush2.xpose.msra.mxu0 0.0
    %1237 = vmatprep.subr.mxu0 0.0
    %1238 = vmatpush2.xpose.msra.mxu0 0.0
    %1239 = vmatprep.subr.mxu0 0.0
    %1240 = vmatpush2.xpose.msra.mxu0 0.0
    %1241 = vmatprep.subr.mxu0 0.0
    %1242 = vmatpush2.xpose.msra.mxu0 0.0
    %1243 = vmatprep.subr.mxu0 0.0
    %1244 = vmatpush2.xpose.msra.mxu0 0.0
    %1245 = vmatprep.subr.mxu0 0.0
    %1246 = vmatpush2.xpose.msra.mxu0 0.0
    %1247 = vmatprep.subr.mxu0 0.0
    %1248 = vmatpush2.xpose.msra.mxu0 0.0
    %1249 = vmatprep.subr.mxu0 0.0
    %1250 = vmatpush2.xpose.msra.mxu0 0.0
    %1251 = vmatprep.subr.mxu0 0.0
    %1252 = vmatpush2.xpose.msra.mxu0 0.0
    %1253 = vmatprep.subr.mxu0 0.0
    %1254 = vmatpush2.xpose.msra.mxu0 0.0
    %1255 = vmatprep.subr.mxu0 0.0
    %1256 = vmatpush2.xpose.msra.mxu0 0.0
    %1257 = vmatprep.mubr.f32.mxu0 0.0
    %1258 = vmatmul.mubr.f32.gmra.mxu0 %v1189
    %v1259 = vpop.f32.mrf.mxu0
    %v1260 = vadd.f32 0.0, %v1259
    %v1261 = vpop.f32.mrf.mxu0
    %1262 = vdwg.mxu0
    %1264 = vrot.lane.b32.xlu0 %v254, 120
    %v1265 = vpop.permute.xlu0 %1264
    %v1266 = vsel %vm495, %v254, 0
    %v1268 = vsel %vm495, %v1265, 0
    %1270 = vmatprep.subr.mxu0 0.0
    %1271 = vmatpush1.xpose.msra.mxu0 0.0
    %1272 = vmatprep.subr.mxu0 0.0
    %1273 = vmatpush1.xpose.msra.mxu0 0.0
    %1274 = vmatprep.subr.mxu0 0.0
    %1275 = vmatpush1.xpose.msra.mxu0 0.0
    %1276 = vmatprep.subr.mxu0 0.0
    %1277 = vmatpush1.xpose.msra.mxu0 0.0
    %1278 = vmatprep.subr.mxu0 0.0
    %1279 = vmatpush1.xpose.msra.mxu0 0.0
    %1280 = vmatprep.subr.mxu0 0.0
    %1281 = vmatpush1.xpose.msra.mxu0 0.0
    %1282 = vmatprep.subr.mxu0 0.0
    %1283 = vmatpush1.xpose.msra.mxu0 0.0
    %1284 = vmatprep.subr.mxu0 0.0
    %1285 = vmatpush1.xpose.msra.mxu0 0.0
    %1286 = vmatprep.subr.mxu0 0.0
    %1287 = vmatpush1.xpose.msra.mxu0 0.0
    %1288 = vmatprep.subr.mxu0 0.0
    %1289 = vmatpush1.xpose.msra.mxu0 0.0
    %1290 = vmatprep.subr.mxu0 0.0
    %1291 = vmatpush1.xpose.msra.mxu0 0.0
    %1292 = vmatprep.subr.mxu0 0.0
    %1293 = vmatpush1.xpose.msra.mxu0 0.0
    %1294 = vmatprep.subr.mxu0 0.0
    %1295 = vmatpush1.xpose.msra.mxu0 0.0
    %1296 = vmatprep.subr.mxu0 0.0
    %1297 = vmatpush1.xpose.msra.mxu0 0.0
    %1298 = vmatprep.subr.mxu0 0.0
    %1299 = vmatpush1.xpose.msra.mxu0 0.0
    %1300 = vmatprep.subr.mxu0 0.0
    %1301 = vmatpush1.xpose.msra.mxu0 %v1268
    %1302 = vmatprep.subr.mxu0 0.0
    %1303 = vmatpush2.xpose.msra.mxu0 0.0
    %1304 = vmatprep.subr.mxu0 0.0
    %1305 = vmatpush2.xpose.msra.mxu0 0.0
    %1306 = vmatprep.subr.mxu0 0.0
    %1307 = vmatpush2.xpose.msra.mxu0 0.0
    %1308 = vmatprep.subr.mxu0 0.0
    %1309 = vmatpush2.xpose.msra.mxu0 0.0
    %1310 = vmatprep.subr.mxu0 0.0
    %1311 = vmatpush2.xpose.msra.mxu0 0.0
    %1312 = vmatprep.subr.mxu0 0.0
    %1313 = vmatpush2.xpose.msra.mxu0 0.0
    %1314 = vmatprep.subr.mxu0 0.0
    %1315 = vmatpush2.xpose.msra.mxu0 0.0
    %1316 = vmatprep.subr.mxu0 0.0
    %1317 = vmatpush2.xpose.msra.mxu0 0.0
    %1318 = vmatprep.subr.mxu0 0.0
    %1319 = vmatpush2.xpose.msra.mxu0 0.0
    %1320 = vmatprep.subr.mxu0 0.0
    %1321 = vmatpush2.xpose.msra.mxu0 0.0
    %1322 = vmatprep.subr.mxu0 0.0
    %1323 = vmatpush2.xpose.msra.mxu0 0.0
    %1324 = vmatprep.subr.mxu0 0.0
    %1325 = vmatpush2.xpose.msra.mxu0 0.0
    %1326 = vmatprep.subr.mxu0 0.0
    %1327 = vmatpush2.xpose.msra.mxu0 0.0
    %1328 = vmatprep.subr.mxu0 0.0
    %1329 = vmatpush2.xpose.msra.mxu0 0.0
    %1330 = vmatprep.subr.mxu0 0.0
    %1331 = vmatpush2.xpose.msra.mxu0 0.0
    %1332 = vmatprep.subr.mxu0 0.0
    %1333 = vmatpush2.xpose.msra.mxu0 0.0
    %1334 = vmatprep.mubr.f32.mxu0 0.0
    %1335 = vmatmul.mubr.f32.gmra.mxu0 %v1266
    %v1336 = vpop.f32.mrf.mxu0
    %v1337 = vadd.f32 0.0, %v1336
    %v1338 = vpop.f32.mrf.mxu0
    %1339 = vdwg.mxu0
    %1341 = vrot.lane.b32.xlu0 %v259, 120
    %v1342 = vpop.permute.xlu0 %1341
    %v1343 = vsel %vm495, %v259, 0
    %v1345 = vsel %vm495, %v1342, 0
    %1347 = vmatprep.subr.mxu0 0.0
    %1348 = vmatpush1.xpose.msra.mxu0 0.0
    %1349 = vmatprep.subr.mxu0 0.0
    %1350 = vmatpush1.xpose.msra.mxu0 0.0
    %1351 = vmatprep.subr.mxu0 0.0
    %1352 = vmatpush1.xpose.msra.mxu0 0.0
    %1353 = vmatprep.subr.mxu0 0.0
    %1354 = vmatpush1.xpose.msra.mxu0 0.0
    %1355 = vmatprep.subr.mxu0 0.0
    %1356 = vmatpush1.xpose.msra.mxu0 0.0
    %1357 = vmatprep.subr.mxu0 0.0
    %1358 = vmatpush1.xpose.msra.mxu0 0.0
    %1359 = vmatprep.subr.mxu0 0.0
    %1360 = vmatpush1.xpose.msra.mxu0 0.0
    %1361 = vmatprep.subr.mxu0 0.0
    %1362 = vmatpush1.xpose.msra.mxu0 0.0
    %1363 = vmatprep.subr.mxu0 0.0
    %1364 = vmatpush1.xpose.msra.mxu0 0.0
    %1365 = vmatprep.subr.mxu0 0.0
    %1366 = vmatpush1.xpose.msra.mxu0 0.0
    %1367 = vmatprep.subr.mxu0 0.0
    %1368 = vmatpush1.xpose.msra.mxu0 0.0
    %1369 = vmatprep.subr.mxu0 0.0
    %1370 = vmatpush1.xpose.msra.mxu0 0.0
    %1371 = vmatprep.subr.mxu0 0.0
    %1372 = vmatpush1.xpose.msra.mxu0 0.0
    %1373 = vmatprep.subr.mxu0 0.0
    %1374 = vmatpush1.xpose.msra.mxu0 0.0
    %1375 = vmatprep.subr.mxu0 0.0
    %1376 = vmatpush1.xpose.msra.mxu0 0.0
    %1377 = vmatprep.subr.mxu0 0.0
    %1378 = vmatpush1.xpose.msra.mxu0 %v1345
    %1379 = vmatprep.subr.mxu0 0.0
    %1380 = vmatpush2.xpose.msra.mxu0 0.0
    %1381 = vmatprep.subr.mxu0 0.0
    %1382 = vmatpush2.xpose.msra.mxu0 0.0
    %1383 = vmatprep.subr.mxu0 0.0
    %1384 = vmatpush2.xpose.msra.mxu0 0.0
    %1385 = vmatprep.subr.mxu0 0.0
    %1386 = vmatpush2.xpose.msra.mxu0 0.0
    %1387 = vmatprep.subr.mxu0 0.0
    %1388 = vmatpush2.xpose.msra.mxu0 0.0
    %1389 = vmatprep.subr.mxu0 0.0
    %1390 = vmatpush2.xpose.msra.mxu0 0.0
    %1391 = vmatprep.subr.mxu0 0.0
    %1392 = vmatpush2.xpose.msra.mxu0 0.0
    %1393 = vmatprep.subr.mxu0 0.0
    %1394 = vmatpush2.xpose.msra.mxu0 0.0
    %1395 = vmatprep.subr.mxu0 0.0
    %1396 = vmatpush2.xpose.msra.mxu0 0.0
    %1397 = vmatprep.subr.mxu0 0.0
    %1398 = vmatpush2.xpose.msra.mxu0 0.0
    %1399 = vmatprep.subr.mxu0 0.0
    %1400 = vmatpush2.xpose.msra.mxu0 0.0
    %1401 = vmatprep.subr.mxu0 0.0
    %1402 = vmatpush2.xpose.msra.mxu0 0.0
    %1403 = vmatprep.subr.mxu0 0.0
    %1404 = vmatpush2.xpose.msra.mxu0 0.0
    %1405 = vmatprep.subr.mxu0 0.0
    %1406 = vmatpush2.xpose.msra.mxu0 0.0
    %1407 = vmatprep.subr.mxu0 0.0
    %1408 = vmatpush2.xpose.msra.mxu0 0.0
    %1409 = vmatprep.subr.mxu0 0.0
    %1410 = vmatpush2.xpose.msra.mxu0 0.0
    %1411 = vmatprep.mubr.f32.mxu0 0.0
    %1412 = vmatmul.mubr.f32.gmra.mxu0 %v1343
    %v1413 = vpop.f32.mrf.mxu0
    %v1414 = vadd.f32 0.0, %v1413
    %v1415 = vpop.f32.mrf.mxu0
    %1416 = vdwg.mxu0
    %1418 = vrot.lane.b32.xlu0 %v264, 120
    %v1419 = vpop.permute.xlu0 %1418
    %v1420 = vsel %vm495, %v264, 0
    %v1422 = vsel %vm495, %v1419, 0
    %1424 = vmatprep.subr.mxu0 0.0
    %1425 = vmatpush1.xpose.msra.mxu0 0.0
    %1426 = vmatprep.subr.mxu0 0.0
    %1427 = vmatpush1.xpose.msra.mxu0 0.0
    %1428 = vmatprep.subr.mxu0 0.0
    %1429 = vmatpush1.xpose.msra.mxu0 0.0
    %1430 = vmatprep.subr.mxu0 0.0
    %1431 = vmatpush1.xpose.msra.mxu0 0.0
    %1432 = vmatprep.subr.mxu0 0.0
    %1433 = vmatpush1.xpose.msra.mxu0 0.0
    %1434 = vmatprep.subr.mxu0 0.0
    %1435 = vmatpush1.xpose.msra.mxu0 0.0
    %1436 = vmatprep.subr.mxu0 0.0
    %1437 = vmatpush1.xpose.msra.mxu0 0.0
    %1438 = vmatprep.subr.mxu0 0.0
    %1439 = vmatpush1.xpose.msra.mxu0 0.0
    %1440 = vmatprep.subr.mxu0 0.0
    %1441 = vmatpush1.xpose.msra.mxu0 0.0
    %1442 = vmatprep.subr.mxu0 0.0
    %1443 = vmatpush1.xpose.msra.mxu0 0.0
    %1444 = vmatprep.subr.mxu0 0.0
    %1445 = vmatpush1.xpose.msra.mxu0 0.0
    %1446 = vmatprep.subr.mxu0 0.0
    %1447 = vmatpush1.xpose.msra.mxu0 0.0
    %1448 = vmatprep.subr.mxu0 0.0
    %1449 = vmatpush1.xpose.msra.mxu0 0.0
    %1450 = vmatprep.subr.mxu0 0.0
    %1451 = vmatpush1.xpose.msra.mxu0 0.0
    %1452 = vmatprep.subr.mxu0 0.0
    %1453 = vmatpush1.xpose.msra.mxu0 0.0
    %1454 = vmatprep.subr.mxu0 0.0
    %1455 = vmatpush1.xpose.msra.mxu0 %v1422
    %1456 = vmatprep.subr.mxu0 0.0
    %1457 = vmatpush2.xpose.msra.mxu0 0.0
    %1458 = vmatprep.subr.mxu0 0.0
    %1459 = vmatpush2.xpose.msra.mxu0 0.0
    %1460 = vmatprep.subr.mxu0 0.0
    %1461 = vmatpush2.xpose.msra.mxu0 0.0
    %1462 = vmatprep.subr.mxu0 0.0
    %1463 = vmatpush2.xpose.msra.mxu0 0.0
    %1464 = vmatprep.subr.mxu0 0.0
    %1465 = vmatpush2.xpose.msra.mxu0 0.0
    %1466 = vmatprep.subr.mxu0 0.0
    %1467 = vmatpush2.xpose.msra.mxu0 0.0
    %1468 = vmatprep.subr.mxu0 0.0
    %1469 = vmatpush2.xpose.msra.mxu0 0.0
    %1470 = vmatprep.subr.mxu0 0.0
    %1471 = vmatpush2.xpose.msra.mxu0 0.0
    %1472 = vmatprep.subr.mxu0 0.0
    %1473 = vmatpush2.xpose.msra.mxu0 0.0
    %1474 = vmatprep.subr.mxu0 0.0
    %1475 = vmatpush2.xpose.msra.mxu0 0.0
    %1476 = vmatprep.subr.mxu0 0.0
    %1477 = vmatpush2.xpose.msra.mxu0 0.0
    %1478 = vmatprep.subr.mxu0 0.0
    %1479 = vmatpush2.xpose.msra.mxu0 0.0
    %1480 = vmatprep.subr.mxu0 0.0
    %1481 = vmatpush2.xpose.msra.mxu0 0.0
    %1482 = vmatprep.subr.mxu0 0.0
    %1483 = vmatpush2.xpose.msra.mxu0 0.0
    %1484 = vmatprep.subr.mxu0 0.0
    %1485 = vmatpush2.xpose.msra.mxu0 0.0
    %1486 = vmatprep.subr.mxu0 0.0
    %1487 = vmatpush2.xpose.msra.mxu0 0.0
    %1488 = vmatprep.mubr.f32.mxu0 0.0
    %1489 = vmatmul.mubr.f32.gmra.mxu0 %v1420
    %v1490 = vpop.f32.mrf.mxu0
    %v1491 = vadd.f32 0.0, %v1490
    %v1492 = vpop.f32.mrf.mxu0
    %1493 = vdwg.mxu0
    %1495 = vrot.lane.b32.xlu0 %v269, 120
    %v1496 = vpop.permute.xlu0 %1495
    %v1497 = vsel %vm495, %v269, 0
    %v1499 = vsel %vm495, %v1496, 0
    %1501 = vmatprep.subr.mxu0 0.0
    %1502 = vmatpush1.xpose.msra.mxu0 0.0
    %1503 = vmatprep.subr.mxu0 0.0
    %1504 = vmatpush1.xpose.msra.mxu0 0.0
    %1505 = vmatprep.subr.mxu0 0.0
    %1506 = vmatpush1.xpose.msra.mxu0 0.0
    %1507 = vmatprep.subr.mxu0 0.0
    %1508 = vmatpush1.xpose.msra.mxu0 0.0
    %1509 = vmatprep.subr.mxu0 0.0
    %1510 = vmatpush1.xpose.msra.mxu0 0.0
    %1511 = vmatprep.subr.mxu0 0.0
    %1512 = vmatpush1.xpose.msra.mxu0 0.0
    %1513 = vmatprep.subr.mxu0 0.0
    %1514 = vmatpush1.xpose.msra.mxu0 0.0
    %1515 = vmatprep.subr.mxu0 0.0
    %1516 = vmatpush1.xpose.msra.mxu0 0.0
    %1517 = vmatprep.subr.mxu0 0.0
    %1518 = vmatpush1.xpose.msra.mxu0 0.0
    %1519 = vmatprep.subr.mxu0 0.0
    %1520 = vmatpush1.xpose.msra.mxu0 0.0
    %1521 = vmatprep.subr.mxu0 0.0
    %1522 = vmatpush1.xpose.msra.mxu0 0.0
    %1523 = vmatprep.subr.mxu0 0.0
    %1524 = vmatpush1.xpose.msra.mxu0 0.0
    %1525 = vmatprep.subr.mxu0 0.0
    %1526 = vmatpush1.xpose.msra.mxu0 0.0
    %1527 = vmatprep.subr.mxu0 0.0
    %1528 = vmatpush1.xpose.msra.mxu0 0.0
    %1529 = vmatprep.subr.mxu0 0.0
    %1530 = vmatpush1.xpose.msra.mxu0 0.0
    %1531 = vmatprep.subr.mxu0 0.0
    %1532 = vmatpush1.xpose.msra.mxu0 %v1499
    %1533 = vmatprep.subr.mxu0 0.0
    %1534 = vmatpush2.xpose.msra.mxu0 0.0
    %1535 = vmatprep.subr.mxu0 0.0
    %1536 = vmatpush2.xpose.msra.mxu0 0.0
    %1537 = vmatprep.subr.mxu0 0.0
    %1538 = vmatpush2.xpose.msra.mxu0 0.0
    %1539 = vmatprep.subr.mxu0 0.0
    %1540 = vmatpush2.xpose.msra.mxu0 0.0
    %1541 = vmatprep.subr.mxu0 0.0
    %1542 = vmatpush2.xpose.msra.mxu0 0.0
    %1543 = vmatprep.subr.mxu0 0.0
    %1544 = vmatpush2.xpose.msra.mxu0 0.0
    %1545 = vmatprep.subr.mxu0 0.0
    %1546 = vmatpush2.xpose.msra.mxu0 0.0
    %1547 = vmatprep.subr.mxu0 0.0
    %1548 = vmatpush2.xpose.msra.mxu0 0.0
    %1549 = vmatprep.subr.mxu0 0.0
    %1550 = vmatpush2.xpose.msra.mxu0 0.0
    %1551 = vmatprep.subr.mxu0 0.0
    %1552 = vmatpush2.xpose.msra.mxu0 0.0
    %1553 = vmatprep.subr.mxu0 0.0
    %1554 = vmatpush2.xpose.msra.mxu0 0.0
    %1555 = vmatprep.subr.mxu0 0.0
    %1556 = vmatpush2.xpose.msra.mxu0 0.0
    %1557 = vmatprep.subr.mxu0 0.0
    %1558 = vmatpush2.xpose.msra.mxu0 0.0
    %1559 = vmatprep.subr.mxu0 0.0
    %1560 = vmatpush2.xpose.msra.mxu0 0.0
    %1561 = vmatprep.subr.mxu0 0.0
    %1562 = vmatpush2.xpose.msra.mxu0 0.0
    %1563 = vmatprep.subr.mxu0 0.0
    %1564 = vmatpush2.xpose.msra.mxu0 0.0
    %1565 = vmatprep.mubr.f32.mxu0 0.0
    %1566 = vmatmul.mubr.f32.gmra.mxu0 %v1497
    %v1567 = vpop.f32.mrf.mxu0
    %v1568 = vadd.f32 0.0, %v1567
    %v1569 = vpop.f32.mrf.mxu0
    %1570 = vdwg.mxu0
    %1572 = vrot.lane.b32.xlu0 %v274, 120
    %v1573 = vpop.permute.xlu0 %1572
    %v1574 = vsel %vm495, %v274, 0
    %v1576 = vsel %vm495, %v1573, 0
    %1578 = vmatprep.subr.mxu0 0.0
    %1579 = vmatpush1.xpose.msra.mxu0 0.0
    %1580 = vmatprep.subr.mxu0 0.0
    %1581 = vmatpush1.xpose.msra.mxu0 0.0
    %1582 = vmatprep.subr.mxu0 0.0
    %1583 = vmatpush1.xpose.msra.mxu0 0.0
    %1584 = vmatprep.subr.mxu0 0.0
    %1585 = vmatpush1.xpose.msra.mxu0 0.0
    %1586 = vmatprep.subr.mxu0 0.0
    %1587 = vmatpush1.xpose.msra.mxu0 0.0
    %1588 = vmatprep.subr.mxu0 0.0
    %1589 = vmatpush1.xpose.msra.mxu0 0.0
    %1590 = vmatprep.subr.mxu0 0.0
    %1591 = vmatpush1.xpose.msra.mxu0 0.0
    %1592 = vmatprep.subr.mxu0 0.0
    %1593 = vmatpush1.xpose.msra.mxu0 0.0
    %1594 = vmatprep.subr.mxu0 0.0
    %1595 = vmatpush1.xpose.msra.mxu0 0.0
    %1596 = vmatprep.subr.mxu0 0.0
    %1597 = vmatpush1.xpose.msra.mxu0 0.0
    %1598 = vmatprep.subr.mxu0 0.0
    %1599 = vmatpush1.xpose.msra.mxu0 0.0
    %1600 = vmatprep.subr.mxu0 0.0
    %1601 = vmatpush1.xpose.msra.mxu0 0.0
    %1602 = vmatprep.subr.mxu0 0.0
    %1603 = vmatpush1.xpose.msra.mxu0 0.0
    %1604 = vmatprep.subr.mxu0 0.0
    %1605 = vmatpush1.xpose.msra.mxu0 0.0
    %1606 = vmatprep.subr.mxu0 0.0
    %1607 = vmatpush1.xpose.msra.mxu0 0.0
    %1608 = vmatprep.subr.mxu0 0.0
    %1609 = vmatpush1.xpose.msra.mxu0 %v1576
    %1610 = vmatprep.subr.mxu0 0.0
    %1611 = vmatpush2.xpose.msra.mxu0 0.0
    %1612 = vmatprep.subr.mxu0 0.0
    %1613 = vmatpush2.xpose.msra.mxu0 0.0
    %1614 = vmatprep.subr.mxu0 0.0
    %1615 = vmatpush2.xpose.msra.mxu0 0.0
    %1616 = vmatprep.subr.mxu0 0.0
    %1617 = vmatpush2.xpose.msra.mxu0 0.0
    %1618 = vmatprep.subr.mxu0 0.0
    %1619 = vmatpush2.xpose.msra.mxu0 0.0
    %1620 = vmatprep.subr.mxu0 0.0
    %1621 = vmatpush2.xpose.msra.mxu0 0.0
    %1622 = vmatprep.subr.mxu0 0.0
    %1623 = vmatpush2.xpose.msra.mxu0 0.0
    %1624 = vmatprep.subr.mxu0 0.0
    %1625 = vmatpush2.xpose.msra.mxu0 0.0
    %1626 = vmatprep.subr.mxu0 0.0
    %1627 = vmatpush2.xpose.msra.mxu0 0.0
    %1628 = vmatprep.subr.mxu0 0.0
    %1629 = vmatpush2.xpose.msra.mxu0 0.0
    %1630 = vmatprep.subr.mxu0 0.0
    %1631 = vmatpush2.xpose.msra.mxu0 0.0
    %1632 = vmatprep.subr.mxu0 0.0
    %1633 = vmatpush2.xpose.msra.mxu0 0.0
    %1634 = vmatprep.subr.mxu0 0.0
    %1635 = vmatpush2.xpose.msra.mxu0 0.0
    %1636 = vmatprep.subr.mxu0 0.0
    %1637 = vmatpush2.xpose.msra.mxu0 0.0
    %1638 = vmatprep.subr.mxu0 0.0
    %1639 = vmatpush2.xpose.msra.mxu0 0.0
    %1640 = vmatprep.subr.mxu0 0.0
    %1641 = vmatpush2.xpose.msra.mxu0 0.0
    %1642 = vmatprep.mubr.f32.mxu0 0.0
    %1643 = vmatmul.mubr.f32.gmra.mxu0 %v1574
    %v1644 = vpop.f32.mrf.mxu0
    %v1645 = vadd.f32 0.0, %v1644
    %v1646 = vpop.f32.mrf.mxu0
    %1647 = vdwg.mxu0
    %1649 = vrot.lane.b32.xlu0 %v279, 120
    %v1650 = vpop.permute.xlu0 %1649
    %v1651 = vsel %vm495, %v279, 0
    %v1653 = vsel %vm495, %v1650, 0
    %1655 = vmatprep.subr.mxu0 0.0
    %1656 = vmatpush1.xpose.msra.mxu0 0.0
    %1657 = vmatprep.subr.mxu0 0.0
    %1658 = vmatpush1.xpose.msra.mxu0 0.0
    %1659 = vmatprep.subr.mxu0 0.0
    %1660 = vmatpush1.xpose.msra.mxu0 0.0
    %1661 = vmatprep.subr.mxu0 0.0
    %1662 = vmatpush1.xpose.msra.mxu0 0.0
    %1663 = vmatprep.subr.mxu0 0.0
    %1664 = vmatpush1.xpose.msra.mxu0 0.0
    %1665 = vmatprep.subr.mxu0 0.0
    %1666 = vmatpush1.xpose.msra.mxu0 0.0
    %1667 = vmatprep.subr.mxu0 0.0
    %1668 = vmatpush1.xpose.msra.mxu0 0.0
    %1669 = vmatprep.subr.mxu0 0.0
    %1670 = vmatpush1.xpose.msra.mxu0 0.0
    %1671 = vmatprep.subr.mxu0 0.0
    %1672 = vmatpush1.xpose.msra.mxu0 0.0
    %1673 = vmatprep.subr.mxu0 0.0
    %1674 = vmatpush1.xpose.msra.mxu0 0.0
    %1675 = vmatprep.subr.mxu0 0.0
    %1676 = vmatpush1.xpose.msra.mxu0 0.0
    %1677 = vmatprep.subr.mxu0 0.0
    %1678 = vmatpush1.xpose.msra.mxu0 0.0
    %1679 = vmatprep.subr.mxu0 0.0
    %1680 = vmatpush1.xpose.msra.mxu0 0.0
    %1681 = vmatprep.subr.mxu0 0.0
    %1682 = vmatpush1.xpose.msra.mxu0 0.0
    %1683 = vmatprep.subr.mxu0 0.0
    %1684 = vmatpush1.xpose.msra.mxu0 0.0
    %1685 = vmatprep.subr.mxu0 0.0
    %1686 = vmatpush1.xpose.msra.mxu0 %v1653
    %1687 = vmatprep.subr.mxu0 0.0
    %1688 = vmatpush2.xpose.msra.mxu0 0.0
    %1689 = vmatprep.subr.mxu0 0.0
    %1690 = vmatpush2.xpose.msra.mxu0 0.0
    %1691 = vmatprep.subr.mxu0 0.0
    %1692 = vmatpush2.xpose.msra.mxu0 0.0
    %1693 = vmatprep.subr.mxu0 0.0
    %1694 = vmatpush2.xpose.msra.mxu0 0.0
    %1695 = vmatprep.subr.mxu0 0.0
    %1696 = vmatpush2.xpose.msra.mxu0 0.0
    %1697 = vmatprep.subr.mxu0 0.0
    %1698 = vmatpush2.xpose.msra.mxu0 0.0
    %1699 = vmatprep.subr.mxu0 0.0
    %1700 = vmatpush2.xpose.msra.mxu0 0.0
    %1701 = vmatprep.subr.mxu0 0.0
    %1702 = vmatpush2.xpose.msra.mxu0 0.0
    %1703 = vmatprep.subr.mxu0 0.0
    %1704 = vmatpush2.xpose.msra.mxu0 0.0
    %1705 = vmatprep.subr.mxu0 0.0
    %1706 = vmatpush2.xpose.msra.mxu0 0.0
    %1707 = vmatprep.subr.mxu0 0.0
    %1708 = vmatpush2.xpose.msra.mxu0 0.0
    %1709 = vmatprep.subr.mxu0 0.0
    %1710 = vmatpush2.xpose.msra.mxu0 0.0
    %1711 = vmatprep.subr.mxu0 0.0
    %1712 = vmatpush2.xpose.msra.mxu0 0.0
    %1713 = vmatprep.subr.mxu0 0.0
    %1714 = vmatpush2.xpose.msra.mxu0 0.0
    %1715 = vmatprep.subr.mxu0 0.0
    %1716 = vmatpush2.xpose.msra.mxu0 0.0
    %1717 = vmatprep.subr.mxu0 0.0
    %1718 = vmatpush2.xpose.msra.mxu0 0.0
    %1719 = vmatprep.mubr.f32.mxu0 0.0
    %1720 = vmatmul.mubr.f32.gmra.mxu0 %v1651
    %v1721 = vpop.f32.mrf.mxu0
    %v1722 = vadd.f32 0.0, %v1721
    %v1723 = vpop.f32.mrf.mxu0
    %1724 = vdwg.mxu0
    %1726 = vrot.lane.b32.xlu0 %v349, 120
    %v1727 = vpop.permute.xlu0 %1726
    %v1728 = vsel %vm495, %v349, 0
    %v1730 = vsel %vm495, %v1727, 0
    %1732 = vmatprep.subr.mxu0 0.0
    %1733 = vmatpush1.xpose.msra.mxu0 0.0
    %1734 = vmatprep.subr.mxu0 0.0
    %1735 = vmatpush1.xpose.msra.mxu0 0.0
    %1736 = vmatprep.subr.mxu0 0.0
    %1737 = vmatpush1.xpose.msra.mxu0 0.0
    %1738 = vmatprep.subr.mxu0 0.0
    %1739 = vmatpush1.xpose.msra.mxu0 0.0
    %1740 = vmatprep.subr.mxu0 0.0
    %1741 = vmatpush1.xpose.msra.mxu0 0.0
    %1742 = vmatprep.subr.mxu0 0.0
    %1743 = vmatpush1.xpose.msra.mxu0 0.0
    %1744 = vmatprep.subr.mxu0 0.0
    %1745 = vmatpush1.xpose.msra.mxu0 0.0
    %1746 = vmatprep.subr.mxu0 0.0
    %1747 = vmatpush1.xpose.msra.mxu0 0.0
    %1748 = vmatprep.subr.mxu0 0.0
    %1749 = vmatpush1.xpose.msra.mxu0 0.0
    %1750 = vmatprep.subr.mxu0 0.0
    %1751 = vmatpush1.xpose.msra.mxu0 0.0
    %1752 = vmatprep.subr.mxu0 0.0
    %1753 = vmatpush1.xpose.msra.mxu0 0.0
    %1754 = vmatprep.subr.mxu0 0.0
    %1755 = vmatpush1.xpose.msra.mxu0 0.0
    %1756 = vmatprep.subr.mxu0 0.0
    %1757 = vmatpush1.xpose.msra.mxu0 0.0
    %1758 = vmatprep.subr.mxu0 0.0
    %1759 = vmatpush1.xpose.msra.mxu0 0.0
    %1760 = vmatprep.subr.mxu0 0.0
    %1761 = vmatpush1.xpose.msra.mxu0 0.0
    %1762 = vmatprep.subr.mxu0 0.0
    %1763 = vmatpush1.xpose.msra.mxu0 %v1730
    %1764 = vmatprep.subr.mxu0 0.0
    %1765 = vmatpush2.xpose.msra.mxu0 0.0
    %1766 = vmatprep.subr.mxu0 0.0
    %1767 = vmatpush2.xpose.msra.mxu0 0.0
    %1768 = vmatprep.subr.mxu0 0.0
    %1769 = vmatpush2.xpose.msra.mxu0 0.0
    %1770 = vmatprep.subr.mxu0 0.0
    %1771 = vmatpush2.xpose.msra.mxu0 0.0
    %1772 = vmatprep.subr.mxu0 0.0
    %1773 = vmatpush2.xpose.msra.mxu0 0.0
    %1774 = vmatprep.subr.mxu0 0.0
    %1775 = vmatpush2.xpose.msra.mxu0 0.0
    %1776 = vmatprep.subr.mxu0 0.0
    %1777 = vmatpush2.xpose.msra.mxu0 0.0
    %1778 = vmatprep.subr.mxu0 0.0
    %1779 = vmatpush2.xpose.msra.mxu0 0.0
    %1780 = vmatprep.subr.mxu0 0.0
    %1781 = vmatpush2.xpose.msra.mxu0 0.0
    %1782 = vmatprep.subr.mxu0 0.0
    %1783 = vmatpush2.xpose.msra.mxu0 0.0
    %1784 = vmatprep.subr.mxu0 0.0
    %1785 = vmatpush2.xpose.msra.mxu0 0.0
    %1786 = vmatprep.subr.mxu0 0.0
    %1787 = vmatpush2.xpose.msra.mxu0 0.0
    %1788 = vmatprep.subr.mxu0 0.0
    %1789 = vmatpush2.xpose.msra.mxu0 0.0
    %1790 = vmatprep.subr.mxu0 0.0
    %1791 = vmatpush2.xpose.msra.mxu0 0.0
    %1792 = vmatprep.subr.mxu0 0.0
    %1793 = vmatpush2.xpose.msra.mxu0 0.0
    %1794 = vmatprep.subr.mxu0 0.0
    %1795 = vmatpush2.xpose.msra.mxu0 0.0
    %1796 = vmatprep.mubr.f32.mxu0 0.0
    %1797 = vmatmul.mubr.f32.gmra.mxu0 %v1728
    %v1798 = vpop.f32.mrf.mxu0
    %v1799 = vadd.f32 0.0, %v1798
    %v1800 = vpop.f32.mrf.mxu0
    %1801 = vdwg.mxu0
    %1803 = vrot.lane.b32.xlu0 %v354, 120
    %v1804 = vpop.permute.xlu0 %1803
    %v1805 = vsel %vm495, %v354, 0
    %v1807 = vsel %vm495, %v1804, 0
    %1809 = vmatprep.subr.mxu0 0.0
    %1810 = vmatpush1.xpose.msra.mxu0 0.0
    %1811 = vmatprep.subr.mxu0 0.0
    %1812 = vmatpush1.xpose.msra.mxu0 0.0
    %1813 = vmatprep.subr.mxu0 0.0
    %1814 = vmatpush1.xpose.msra.mxu0 0.0
    %1815 = vmatprep.subr.mxu0 0.0
    %1816 = vmatpush1.xpose.msra.mxu0 0.0
    %1817 = vmatprep.subr.mxu0 0.0
    %1818 = vmatpush1.xpose.msra.mxu0 0.0
    %1819 = vmatprep.subr.mxu0 0.0
    %1820 = vmatpush1.xpose.msra.mxu0 0.0
    %1821 = vmatprep.subr.mxu0 0.0
    %1822 = vmatpush1.xpose.msra.mxu0 0.0
    %1823 = vmatprep.subr.mxu0 0.0
    %1824 = vmatpush1.xpose.msra.mxu0 0.0
    %1825 = vmatprep.subr.mxu0 0.0
    %1826 = vmatpush1.xpose.msra.mxu0 0.0
    %1827 = vmatprep.subr.mxu0 0.0
    %1828 = vmatpush1.xpose.msra.mxu0 0.0
    %1829 = vmatprep.subr.mxu0 0.0
    %1830 = vmatpush1.xpose.msra.mxu0 0.0
    %1831 = vmatprep.subr.mxu0 0.0
    %1832 = vmatpush1.xpose.msra.mxu0 0.0
    %1833 = vmatprep.subr.mxu0 0.0
    %1834 = vmatpush1.xpose.msra.mxu0 0.0
    %1835 = vmatprep.subr.mxu0 0.0
    %1836 = vmatpush1.xpose.msra.mxu0 0.0
    %1837 = vmatprep.subr.mxu0 0.0
    %1838 = vmatpush1.xpose.msra.mxu0 0.0
    %1839 = vmatprep.subr.mxu0 0.0
    %1840 = vmatpush1.xpose.msra.mxu0 %v1807
    %1841 = vmatprep.subr.mxu0 0.0
    %1842 = vmatpush2.xpose.msra.mxu0 0.0
    %1843 = vmatprep.subr.mxu0 0.0
    %1844 = vmatpush2.xpose.msra.mxu0 0.0
    %1845 = vmatprep.subr.mxu0 0.0
    %1846 = vmatpush2.xpose.msra.mxu0 0.0
    %1847 = vmatprep.subr.mxu0 0.0
    %1848 = vmatpush2.xpose.msra.mxu0 0.0
    %1849 = vmatprep.subr.mxu0 0.0
    %1850 = vmatpush2.xpose.msra.mxu0 0.0
    %1851 = vmatprep.subr.mxu0 0.0
    %1852 = vmatpush2.xpose.msra.mxu0 0.0
    %1853 = vmatprep.subr.mxu0 0.0
    %1854 = vmatpush2.xpose.msra.mxu0 0.0
    %1855 = vmatprep.subr.mxu0 0.0
    %1856 = vmatpush2.xpose.msra.mxu0 0.0
    %1857 = vmatprep.subr.mxu0 0.0
    %1858 = vmatpush2.xpose.msra.mxu0 0.0
    %1859 = vmatprep.subr.mxu0 0.0
    %1860 = vmatpush2.xpose.msra.mxu0 0.0
    %1861 = vmatprep.subr.mxu0 0.0
    %1862 = vmatpush2.xpose.msra.mxu0 0.0
    %1863 = vmatprep.subr.mxu0 0.0
    %1864 = vmatpush2.xpose.msra.mxu0 0.0
    %1865 = vmatprep.subr.mxu0 0.0
    %1866 = vmatpush2.xpose.msra.mxu0 0.0
    %1867 = vmatprep.subr.mxu0 0.0
    %1868 = vmatpush2.xpose.msra.mxu0 0.0
    %1869 = vmatprep.subr.mxu0 0.0
    %1870 = vmatpush2.xpose.msra.mxu0 0.0
    %1871 = vmatprep.subr.mxu0 0.0
    %1872 = vmatpush2.xpose.msra.mxu0 0.0
    %1873 = vmatprep.mubr.f32.mxu0 0.0
    %1874 = vmatmul.mubr.f32.gmra.mxu0 %v1805
    %v1875 = vpop.f32.mrf.mxu0
    %v1876 = vadd.f32 0.0, %v1875
    %v1877 = vpop.f32.mrf.mxu0
    %1878 = vdwg.mxu0
    %1880 = vrot.lane.b32.xlu0 %v359, 120
    %v1881 = vpop.permute.xlu0 %1880
    %v1882 = vsel %vm495, %v359, 0
    %v1884 = vsel %vm495, %v1881, 0
    %1886 = vmatprep.subr.mxu0 0.0
    %1887 = vmatpush1.xpose.msra.mxu0 0.0
    %1888 = vmatprep.subr.mxu0 0.0
    %1889 = vmatpush1.xpose.msra.mxu0 0.0
    %1890 = vmatprep.subr.mxu0 0.0
    %1891 = vmatpush1.xpose.msra.mxu0 0.0
    %1892 = vmatprep.subr.mxu0 0.0
    %1893 = vmatpush1.xpose.msra.mxu0 0.0
    %1894 = vmatprep.subr.mxu0 0.0
    %1895 = vmatpush1.xpose.msra.mxu0 0.0
    %1896 = vmatprep.subr.mxu0 0.0
    %1897 = vmatpush1.xpose.msra.mxu0 0.0
    %1898 = vmatprep.subr.mxu0 0.0
    %1899 = vmatpush1.xpose.msra.mxu0 0.0
    %1900 = vmatprep.subr.mxu0 0.0
    %1901 = vmatpush1.xpose.msra.mxu0 0.0
    %1902 = vmatprep.subr.mxu0 0.0
    %1903 = vmatpush1.xpose.msra.mxu0 0.0
    %1904 = vmatprep.subr.mxu0 0.0
    %1905 = vmatpush1.xpose.msra.mxu0 0.0
    %1906 = vmatprep.subr.mxu0 0.0
    %1907 = vmatpush1.xpose.msra.mxu0 0.0
    %1908 = vmatprep.subr.mxu0 0.0
    %1909 = vmatpush1.xpose.msra.mxu0 0.0
    %1910 = vmatprep.subr.mxu0 0.0
    %1911 = vmatpush1.xpose.msra.mxu0 0.0
    %1912 = vmatprep.subr.mxu0 0.0
    %1913 = vmatpush1.xpose.msra.mxu0 0.0
    %1914 = vmatprep.subr.mxu0 0.0
    %1915 = vmatpush1.xpose.msra.mxu0 0.0
    %1916 = vmatprep.subr.mxu0 0.0
    %1917 = vmatpush1.xpose.msra.mxu0 %v1884
    %1918 = vmatprep.subr.mxu0 0.0
    %1919 = vmatpush2.xpose.msra.mxu0 0.0
    %1920 = vmatprep.subr.mxu0 0.0
    %1921 = vmatpush2.xpose.msra.mxu0 0.0
    %1922 = vmatprep.subr.mxu0 0.0
    %1923 = vmatpush2.xpose.msra.mxu0 0.0
    %1924 = vmatprep.subr.mxu0 0.0
    %1925 = vmatpush2.xpose.msra.mxu0 0.0
    %1926 = vmatprep.subr.mxu0 0.0
    %1927 = vmatpush2.xpose.msra.mxu0 0.0
    %1928 = vmatprep.subr.mxu0 0.0
    %1929 = vmatpush2.xpose.msra.mxu0 0.0
    %1930 = vmatprep.subr.mxu0 0.0
    %1931 = vmatpush2.xpose.msra.mxu0 0.0
    %1932 = vmatprep.subr.mxu0 0.0
    %1933 = vmatpush2.xpose.msra.mxu0 0.0
    %1934 = vmatprep.subr.mxu0 0.0
    %1935 = vmatpush2.xpose.msra.mxu0 0.0
    %1936 = vmatprep.subr.mxu0 0.0
    %1937 = vmatpush2.xpose.msra.mxu0 0.0
    %1938 = vmatprep.subr.mxu0 0.0
    %1939 = vmatpush2.xpose.msra.mxu0 0.0
    %1940 = vmatprep.subr.mxu0 0.0
    %1941 = vmatpush2.xpose.msra.mxu0 0.0
    %1942 = vmatprep.subr.mxu0 0.0
    %1943 = vmatpush2.xpose.msra.mxu0 0.0
    %1944 = vmatprep.subr.mxu0 0.0
    %1945 = vmatpush2.xpose.msra.mxu0 0.0
    %1946 = vmatprep.subr.mxu0 0.0
    %1947 = vmatpush2.xpose.msra.mxu0 0.0
    %1948 = vmatprep.subr.mxu0 0.0
    %1949 = vmatpush2.xpose.msra.mxu0 0.0
    %1950 = vmatprep.mubr.f32.mxu0 0.0
    %1951 = vmatmul.mubr.f32.gmra.mxu0 %v1882
    %v1952 = vpop.f32.mrf.mxu0
    %v1953 = vadd.f32 0.0, %v1952
    %v1954 = vpop.f32.mrf.mxu0
    %1955 = vdwg.mxu0
    %1957 = vrot.lane.b32.xlu0 %v364, 120
    %v1958 = vpop.permute.xlu0 %1957
    %v1959 = vsel %vm495, %v364, 0
    %v1961 = vsel %vm495, %v1958, 0
    %1963 = vmatprep.subr.mxu0 0.0
    %1964 = vmatpush1.xpose.msra.mxu0 0.0
    %1965 = vmatprep.subr.mxu0 0.0
    %1966 = vmatpush1.xpose.msra.mxu0 0.0
    %1967 = vmatprep.subr.mxu0 0.0
    %1968 = vmatpush1.xpose.msra.mxu0 0.0
    %1969 = vmatprep.subr.mxu0 0.0
    %1970 = vmatpush1.xpose.msra.mxu0 0.0
    %1971 = vmatprep.subr.mxu0 0.0
    %1972 = vmatpush1.xpose.msra.mxu0 0.0
    %1973 = vmatprep.subr.mxu0 0.0
    %1974 = vmatpush1.xpose.msra.mxu0 0.0
    %1975 = vmatprep.subr.mxu0 0.0
    %1976 = vmatpush1.xpose.msra.mxu0 0.0
    %1977 = vmatprep.subr.mxu0 0.0
    %1978 = vmatpush1.xpose.msra.mxu0 0.0
    %1979 = vmatprep.subr.mxu0 0.0
    %1980 = vmatpush1.xpose.msra.mxu0 0.0
    %1981 = vmatprep.subr.mxu0 0.0
    %1982 = vmatpush1.xpose.msra.mxu0 0.0
    %1983 = vmatprep.subr.mxu0 0.0
    %1984 = vmatpush1.xpose.msra.mxu0 0.0
    %1985 = vmatprep.subr.mxu0 0.0
    %1986 = vmatpush1.xpose.msra.mxu0 0.0
    %1987 = vmatprep.subr.mxu0 0.0
    %1988 = vmatpush1.xpose.msra.mxu0 0.0
    %1989 = vmatprep.subr.mxu0 0.0
    %1990 = vmatpush1.xpose.msra.mxu0 0.0
    %1991 = vmatprep.subr.mxu0 0.0
    %1992 = vmatpush1.xpose.msra.mxu0 0.0
    %1993 = vmatprep.subr.mxu0 0.0
    %1994 = vmatpush1.xpose.msra.mxu0 %v1961
    %1995 = vmatprep.subr.mxu0 0.0
    %1996 = vmatpush2.xpose.msra.mxu0 0.0
    %1997 = vmatprep.subr.mxu0 0.0
    %1998 = vmatpush2.xpose.msra.mxu0 0.0
    %1999 = vmatprep.subr.mxu0 0.0
    %2000 = vmatpush2.xpose.msra.mxu0 0.0
    %2001 = vmatprep.subr.mxu0 0.0
    %2002 = vmatpush2.xpose.msra.mxu0 0.0
    %2003 = vmatprep.subr.mxu0 0.0
    %2004 = vmatpush2.xpose.msra.mxu0 0.0
    %2005 = vmatprep.subr.mxu0 0.0
    %2006 = vmatpush2.xpose.msra.mxu0 0.0
    %2007 = vmatprep.subr.mxu0 0.0
    %2008 = vmatpush2.xpose.msra.mxu0 0.0
    %2009 = vmatprep.subr.mxu0 0.0
    %2010 = vmatpush2.xpose.msra.mxu0 0.0
    %2011 = vmatprep.subr.mxu0 0.0
    %2012 = vmatpush2.xpose.msra.mxu0 0.0
    %2013 = vmatprep.subr.mxu0 0.0
    %2014 = vmatpush2.xpose.msra.mxu0 0.0
    %2015 = vmatprep.subr.mxu0 0.0
    %2016 = vmatpush2.xpose.msra.mxu0 0.0
    %2017 = vmatprep.subr.mxu0 0.0
    %2018 = vmatpush2.xpose.msra.mxu0 0.0
    %2019 = vmatprep.subr.mxu0 0.0
    %2020 = vmatpush2.xpose.msra.mxu0 0.0
    %2021 = vmatprep.subr.mxu0 0.0
    %2022 = vmatpush2.xpose.msra.mxu0 0.0
    %2023 = vmatprep.subr.mxu0 0.0
    %2024 = vmatpush2.xpose.msra.mxu0 0.0
    %2025 = vmatprep.subr.mxu0 0.0
    %2026 = vmatpush2.xpose.msra.mxu0 0.0
    %2027 = vmatprep.mubr.f32.mxu0 0.0
    %2028 = vmatmul.mubr.f32.gmra.mxu0 %v1959
    %v2029 = vpop.f32.mrf.mxu0
    %v2030 = vadd.f32 0.0, %v2029
    %v2031 = vpop.f32.mrf.mxu0
    %2032 = vdwg.mxu0
    %2034 = vrot.lane.b32.xlu0 %v369, 120
    %v2035 = vpop.permute.xlu0 %2034
    %v2036 = vsel %vm495, %v369, 0
    %v2038 = vsel %vm495, %v2035, 0
    %2040 = vmatprep.subr.mxu0 0.0
    %2041 = vmatpush1.xpose.msra.mxu0 0.0
    %2042 = vmatprep.subr.mxu0 0.0
    %2043 = vmatpush1.xpose.msra.mxu0 0.0
    %2044 = vmatprep.subr.mxu0 0.0
    %2045 = vmatpush1.xpose.msra.mxu0 0.0
    %2046 = vmatprep.subr.mxu0 0.0
    %2047 = vmatpush1.xpose.msra.mxu0 0.0
    %2048 = vmatprep.subr.mxu0 0.0
    %2049 = vmatpush1.xpose.msra.mxu0 0.0
    %2050 = vmatprep.subr.mxu0 0.0
    %2051 = vmatpush1.xpose.msra.mxu0 0.0
    %2052 = vmatprep.subr.mxu0 0.0
    %2053 = vmatpush1.xpose.msra.mxu0 0.0
    %2054 = vmatprep.subr.mxu0 0.0
    %2055 = vmatpush1.xpose.msra.mxu0 0.0
    %2056 = vmatprep.subr.mxu0 0.0
    %2057 = vmatpush1.xpose.msra.mxu0 0.0
    %2058 = vmatprep.subr.mxu0 0.0
    %2059 = vmatpush1.xpose.msra.mxu0 0.0
    %2060 = vmatprep.subr.mxu0 0.0
    %2061 = vmatpush1.xpose.msra.mxu0 0.0
    %2062 = vmatprep.subr.mxu0 0.0
    %2063 = vmatpush1.xpose.msra.mxu0 0.0
    %2064 = vmatprep.subr.mxu0 0.0
    %2065 = vmatpush1.xpose.msra.mxu0 0.0
    %2066 = vmatprep.subr.mxu0 0.0
    %2067 = vmatpush1.xpose.msra.mxu0 0.0
    %2068 = vmatprep.subr.mxu0 0.0
    %2069 = vmatpush1.xpose.msra.mxu0 0.0
    %2070 = vmatprep.subr.mxu0 0.0
    %2071 = vmatpush1.xpose.msra.mxu0 %v2038
    %2072 = vmatprep.subr.mxu0 0.0
    %2073 = vmatpush2.xpose.msra.mxu0 0.0
    %2074 = vmatprep.subr.mxu0 0.0
    %2075 = vmatpush2.xpose.msra.mxu0 0.0
    %2076 = vmatprep.subr.mxu0 0.0
    %2077 = vmatpush2.xpose.msra.mxu0 0.0
    %2078 = vmatprep.subr.mxu0 0.0
    %2079 = vmatpush2.xpose.msra.mxu0 0.0
    %2080 = vmatprep.subr.mxu0 0.0
    %2081 = vmatpush2.xpose.msra.mxu0 0.0
    %2082 = vmatprep.subr.mxu0 0.0
    %2083 = vmatpush2.xpose.msra.mxu0 0.0
    %2084 = vmatprep.subr.mxu0 0.0
    %2085 = vmatpush2.xpose.msra.mxu0 0.0
    %2086 = vmatprep.subr.mxu0 0.0
    %2087 = vmatpush2.xpose.msra.mxu0 0.0
    %2088 = vmatprep.subr.mxu0 0.0
    %2089 = vmatpush2.xpose.msra.mxu0 0.0
    %2090 = vmatprep.subr.mxu0 0.0
    %2091 = vmatpush2.xpose.msra.mxu0 0.0
    %2092 = vmatprep.subr.mxu0 0.0
    %2093 = vmatpush2.xpose.msra.mxu0 0.0
    %2094 = vmatprep.subr.mxu0 0.0
    %2095 = vmatpush2.xpose.msra.mxu0 0.0
    %2096 = vmatprep.subr.mxu0 0.0
    %2097 = vmatpush2.xpose.msra.mxu0 0.0
    %2098 = vmatprep.subr.mxu0 0.0
    %2099 = vmatpush2.xpose.msra.mxu0 0.0
    %2100 = vmatprep.subr.mxu0 0.0
    %2101 = vmatpush2.xpose.msra.mxu0 0.0
    %2102 = vmatprep.subr.mxu0 0.0
    %2103 = vmatpush2.xpose.msra.mxu0 0.0
    %2104 = vmatprep.mubr.f32.mxu0 0.0
    %2105 = vmatmul.mubr.f32.gmra.mxu0 %v2036
    %v2106 = vpop.f32.mrf.mxu0
    %v2107 = vadd.f32 0.0, %v2106
    %v2108 = vpop.f32.mrf.mxu0
    %2109 = vdwg.mxu0
    %2111 = vrot.lane.b32.xlu0 %v374, 120
    %v2112 = vpop.permute.xlu0 %2111
    %v2113 = vsel %vm495, %v374, 0
    %v2115 = vsel %vm495, %v2112, 0
    %2117 = vmatprep.subr.mxu0 0.0
    %2118 = vmatpush1.xpose.msra.mxu0 0.0
    %2119 = vmatprep.subr.mxu0 0.0
    %2120 = vmatpush1.xpose.msra.mxu0 0.0
    %2121 = vmatprep.subr.mxu0 0.0
    %2122 = vmatpush1.xpose.msra.mxu0 0.0
    %2123 = vmatprep.subr.mxu0 0.0
    %2124 = vmatpush1.xpose.msra.mxu0 0.0
    %2125 = vmatprep.subr.mxu0 0.0
    %2126 = vmatpush1.xpose.msra.mxu0 0.0
    %2127 = vmatprep.subr.mxu0 0.0
    %2128 = vmatpush1.xpose.msra.mxu0 0.0
    %2129 = vmatprep.subr.mxu0 0.0
    %2130 = vmatpush1.xpose.msra.mxu0 0.0
    %2131 = vmatprep.subr.mxu0 0.0
    %2132 = vmatpush1.xpose.msra.mxu0 0.0
    %2133 = vmatprep.subr.mxu0 0.0
    %2134 = vmatpush1.xpose.msra.mxu0 0.0
    %2135 = vmatprep.subr.mxu0 0.0
    %2136 = vmatpush1.xpose.msra.mxu0 0.0
    %2137 = vmatprep.subr.mxu0 0.0
    %2138 = vmatpush1.xpose.msra.mxu0 0.0
    %2139 = vmatprep.subr.mxu0 0.0
    %2140 = vmatpush1.xpose.msra.mxu0 0.0
    %2141 = vmatprep.subr.mxu0 0.0
    %2142 = vmatpush1.xpose.msra.mxu0 0.0
    %2143 = vmatprep.subr.mxu0 0.0
    %2144 = vmatpush1.xpose.msra.mxu0 0.0
    %2145 = vmatprep.subr.mxu0 0.0
    %2146 = vmatpush1.xpose.msra.mxu0 0.0
    %2147 = vmatprep.subr.mxu0 0.0
    %2148 = vmatpush1.xpose.msra.mxu0 %v2115
    %2149 = vmatprep.subr.mxu0 0.0
    %2150 = vmatpush2.xpose.msra.mxu0 0.0
    %2151 = vmatprep.subr.mxu0 0.0
    %2152 = vmatpush2.xpose.msra.mxu0 0.0
    %2153 = vmatprep.subr.mxu0 0.0
    %2154 = vmatpush2.xpose.msra.mxu0 0.0
    %2155 = vmatprep.subr.mxu0 0.0
    %2156 = vmatpush2.xpose.msra.mxu0 0.0
    %2157 = vmatprep.subr.mxu0 0.0
    %2158 = vmatpush2.xpose.msra.mxu0 0.0
    %2159 = vmatprep.subr.mxu0 0.0
    %2160 = vmatpush2.xpose.msra.mxu0 0.0
    %2161 = vmatprep.subr.mxu0 0.0
    %2162 = vmatpush2.xpose.msra.mxu0 0.0
    %2163 = vmatprep.subr.mxu0 0.0
    %2164 = vmatpush2.xpose.msra.mxu0 0.0
    %2165 = vmatprep.subr.mxu0 0.0
    %2166 = vmatpush2.xpose.msra.mxu0 0.0
    %2167 = vmatprep.subr.mxu0 0.0
    %2168 = vmatpush2.xpose.msra.mxu0 0.0
    %2169 = vmatprep.subr.mxu0 0.0
    %2170 = vmatpush2.xpose.msra.mxu0 0.0
    %2171 = vmatprep.subr.mxu0 0.0
    %2172 = vmatpush2.xpose.msra.mxu0 0.0
    %2173 = vmatprep.subr.mxu0 0.0
    %2174 = vmatpush2.xpose.msra.mxu0 0.0
    %2175 = vmatprep.subr.mxu0 0.0
    %2176 = vmatpush2.xpose.msra.mxu0 0.0
    %2177 = vmatprep.subr.mxu0 0.0
    %2178 = vmatpush2.xpose.msra.mxu0 0.0
    %2179 = vmatprep.subr.mxu0 0.0
    %2180 = vmatpush2.xpose.msra.mxu0 0.0
    %2181 = vmatprep.mubr.f32.mxu0 0.0
    %2182 = vmatmul.mubr.f32.gmra.mxu0 %v2113
    %v2183 = vpop.f32.mrf.mxu0
    %v2184 = vadd.f32 0.0, %v2183
    %v2185 = vpop.f32.mrf.mxu0
    %2186 = vdwg.mxu0
    %2188 = vrot.lane.b32.xlu0 %v379, 120
    %v2189 = vpop.permute.xlu0 %2188
    %v2190 = vsel %vm495, %v379, 0
    %v2192 = vsel %vm495, %v2189, 0
    %2194 = vmatprep.subr.mxu0 0.0
    %2195 = vmatpush1.xpose.msra.mxu0 0.0
    %2196 = vmatprep.subr.mxu0 0.0
    %2197 = vmatpush1.xpose.msra.mxu0 0.0
    %2198 = vmatprep.subr.mxu0 0.0
    %2199 = vmatpush1.xpose.msra.mxu0 0.0
    %2200 = vmatprep.subr.mxu0 0.0
    %2201 = vmatpush1.xpose.msra.mxu0 0.0
    %2202 = vmatprep.subr.mxu0 0.0
    %2203 = vmatpush1.xpose.msra.mxu0 0.0
    %2204 = vmatprep.subr.mxu0 0.0
    %2205 = vmatpush1.xpose.msra.mxu0 0.0
    %2206 = vmatprep.subr.mxu0 0.0
    %2207 = vmatpush1.xpose.msra.mxu0 0.0
    %2208 = vmatprep.subr.mxu0 0.0
    %2209 = vmatpush1.xpose.msra.mxu0 0.0
    %2210 = vmatprep.subr.mxu0 0.0
    %2211 = vmatpush1.xpose.msra.mxu0 0.0
    %2212 = vmatprep.subr.mxu0 0.0
    %2213 = vmatpush1.xpose.msra.mxu0 0.0
    %2214 = vmatprep.subr.mxu0 0.0
    %2215 = vmatpush1.xpose.msra.mxu0 0.0
    %2216 = vmatprep.subr.mxu0 0.0
    %2217 = vmatpush1.xpose.msra.mxu0 0.0
    %2218 = vmatprep.subr.mxu0 0.0
    %2219 = vmatpush1.xpose.msra.mxu0 0.0
    %2220 = vmatprep.subr.mxu0 0.0
    %2221 = vmatpush1.xpose.msra.mxu0 0.0
    %2222 = vmatprep.subr.mxu0 0.0
    %2223 = vmatpush1.xpose.msra.mxu0 0.0
    %2224 = vmatprep.subr.mxu0 0.0
    %2225 = vmatpush1.xpose.msra.mxu0 %v2192
    %2226 = vmatprep.subr.mxu0 0.0
    %2227 = vmatpush2.xpose.msra.mxu0 0.0
    %2228 = vmatprep.subr.mxu0 0.0
    %2229 = vmatpush2.xpose.msra.mxu0 0.0
    %2230 = vmatprep.subr.mxu0 0.0
    %2231 = vmatpush2.xpose.msra.mxu0 0.0
    %2232 = vmatprep.subr.mxu0 0.0
    %2233 = vmatpush2.xpose.msra.mxu0 0.0
    %2234 = vmatprep.subr.mxu0 0.0
    %2235 = vmatpush2.xpose.msra.mxu0 0.0
    %2236 = vmatprep.subr.mxu0 0.0
    %2237 = vmatpush2.xpose.msra.mxu0 0.0
    %2238 = vmatprep.subr.mxu0 0.0
    %2239 = vmatpush2.xpose.msra.mxu0 0.0
    %2240 = vmatprep.subr.mxu0 0.0
    %2241 = vmatpush2.xpose.msra.mxu0 0.0
    %2242 = vmatprep.subr.mxu0 0.0
    %2243 = vmatpush2.xpose.msra.mxu0 0.0
    %2244 = vmatprep.subr.mxu0 0.0
    %2245 = vmatpush2.xpose.msra.mxu0 0.0
    %2246 = vmatprep.subr.mxu0 0.0
    %2247 = vmatpush2.xpose.msra.mxu0 0.0
    %2248 = vmatprep.subr.mxu0 0.0
    %2249 = vmatpush2.xpose.msra.mxu0 0.0
    %2250 = vmatprep.subr.mxu0 0.0
    %2251 = vmatpush2.xpose.msra.mxu0 0.0
    %2252 = vmatprep.subr.mxu0 0.0
    %2253 = vmatpush2.xpose.msra.mxu0 0.0
    %2254 = vmatprep.subr.mxu0 0.0
    %2255 = vmatpush2.xpose.msra.mxu0 0.0
    %2256 = vmatprep.subr.mxu0 0.0
    %2257 = vmatpush2.xpose.msra.mxu0 0.0
    %2258 = vmatprep.mubr.f32.mxu0 0.0
    %2259 = vmatmul.mubr.f32.gmra.mxu0 %v2190
    %v2260 = vpop.f32.mrf.mxu0
    %v2261 = vadd.f32 0.0, %v2260
    %v2262 = vpop.f32.mrf.mxu0
    %2263 = vdwg.mxu0
    %2265 = vrot.lane.b32.xlu0 %v384, 120
    %v2266 = vpop.permute.xlu0 %2265
    %v2267 = vsel %vm495, %v384, 0
    %v2269 = vsel %vm495, %v2266, 0
    %2271 = vmatprep.subr.mxu0 0.0
    %2272 = vmatpush1.xpose.msra.mxu0 0.0
    %2273 = vmatprep.subr.mxu0 0.0
    %2274 = vmatpush1.xpose.msra.mxu0 0.0
    %2275 = vmatprep.subr.mxu0 0.0
    %2276 = vmatpush1.xpose.msra.mxu0 0.0
    %2277 = vmatprep.subr.mxu0 0.0
    %2278 = vmatpush1.xpose.msra.mxu0 0.0
    %2279 = vmatprep.subr.mxu0 0.0
    %2280 = vmatpush1.xpose.msra.mxu0 0.0
    %2281 = vmatprep.subr.mxu0 0.0
    %2282 = vmatpush1.xpose.msra.mxu0 0.0
    %2283 = vmatprep.subr.mxu0 0.0
    %2284 = vmatpush1.xpose.msra.mxu0 0.0
    %2285 = vmatprep.subr.mxu0 0.0
    %2286 = vmatpush1.xpose.msra.mxu0 0.0
    %2287 = vmatprep.subr.mxu0 0.0
    %2288 = vmatpush1.xpose.msra.mxu0 0.0
    %2289 = vmatprep.subr.mxu0 0.0
    %2290 = vmatpush1.xpose.msra.mxu0 0.0
    %2291 = vmatprep.subr.mxu0 0.0
    %2292 = vmatpush1.xpose.msra.mxu0 0.0
    %2293 = vmatprep.subr.mxu0 0.0
    %2294 = vmatpush1.xpose.msra.mxu0 0.0
    %2295 = vmatprep.subr.mxu0 0.0
    %2296 = vmatpush1.xpose.msra.mxu0 0.0
    %2297 = vmatprep.subr.mxu0 0.0
    %2298 = vmatpush1.xpose.msra.mxu0 0.0
    %2299 = vmatprep.subr.mxu0 0.0
    %2300 = vmatpush1.xpose.msra.mxu0 0.0
    %2301 = vmatprep.subr.mxu0 0.0
    %2302 = vmatpush1.xpose.msra.mxu0 %v2269
    %2303 = vmatprep.subr.mxu0 0.0
    %2304 = vmatpush2.xpose.msra.mxu0 0.0
    %2305 = vmatprep.subr.mxu0 0.0
    %2306 = vmatpush2.xpose.msra.mxu0 0.0
    %2307 = vmatprep.subr.mxu0 0.0
    %2308 = vmatpush2.xpose.msra.mxu0 0.0
    %2309 = vmatprep.subr.mxu0 0.0
    %2310 = vmatpush2.xpose.msra.mxu0 0.0
    %2311 = vmatprep.subr.mxu0 0.0
    %2312 = vmatpush2.xpose.msra.mxu0 0.0
    %2313 = vmatprep.subr.mxu0 0.0
    %2314 = vmatpush2.xpose.msra.mxu0 0.0
    %2315 = vmatprep.subr.mxu0 0.0
    %2316 = vmatpush2.xpose.msra.mxu0 0.0
    %2317 = vmatprep.subr.mxu0 0.0
    %2318 = vmatpush2.xpose.msra.mxu0 0.0
    %2319 = vmatprep.subr.mxu0 0.0
    %2320 = vmatpush2.xpose.msra.mxu0 0.0
    %2321 = vmatprep.subr.mxu0 0.0
    %2322 = vmatpush2.xpose.msra.mxu0 0.0
    %2323 = vmatprep.subr.mxu0 0.0
    %2324 = vmatpush2.xpose.msra.mxu0 0.0
    %2325 = vmatprep.subr.mxu0 0.0
    %2326 = vmatpush2.xpose.msra.mxu0 0.0
    %2327 = vmatprep.subr.mxu0 0.0
    %2328 = vmatpush2.xpose.msra.mxu0 0.0
    %2329 = vmatprep.subr.mxu0 0.0
    %2330 = vmatpush2.xpose.msra.mxu0 0.0
    %2331 = vmatprep.subr.mxu0 0.0
    %2332 = vmatpush2.xpose.msra.mxu0 0.0
    %2333 = vmatprep.subr.mxu0 0.0
    %2334 = vmatpush2.xpose.msra.mxu0 0.0
    %2335 = vmatprep.mubr.f32.mxu0 0.0
    %2336 = vmatmul.mubr.f32.gmra.mxu0 %v2267
    %v2337 = vpop.f32.mrf.mxu0
    %v2338 = vadd.f32 0.0, %v2337
    %v2339 = vpop.f32.mrf.mxu0
    %2340 = vdwg.mxu0
    %2342 = vrot.lane.b32.xlu0 %v454, 120
    %v2343 = vpop.permute.xlu0 %2342
    %v2344 = vsel %vm495, %v454, 0
    %v2346 = vsel %vm495, %v2343, 0
    %2348 = vmatprep.subr.mxu0 0.0
    %2349 = vmatpush1.xpose.msra.mxu0 0.0
    %2350 = vmatprep.subr.mxu0 0.0
    %2351 = vmatpush1.xpose.msra.mxu0 0.0
    %2352 = vmatprep.subr.mxu0 0.0
    %2353 = vmatpush1.xpose.msra.mxu0 0.0
    %2354 = vmatprep.subr.mxu0 0.0
    %2355 = vmatpush1.xpose.msra.mxu0 0.0
    %2356 = vmatprep.subr.mxu0 0.0
    %2357 = vmatpush1.xpose.msra.mxu0 0.0
    %2358 = vmatprep.subr.mxu0 0.0
    %2359 = vmatpush1.xpose.msra.mxu0 0.0
    %2360 = vmatprep.subr.mxu0 0.0
    %2361 = vmatpush1.xpose.msra.mxu0 0.0
    %2362 = vmatprep.subr.mxu0 0.0
    %2363 = vmatpush1.xpose.msra.mxu0 0.0
    %2364 = vmatprep.subr.mxu0 0.0
    %2365 = vmatpush1.xpose.msra.mxu0 0.0
    %2366 = vmatprep.subr.mxu0 0.0
    %2367 = vmatpush1.xpose.msra.mxu0 0.0
    %2368 = vmatprep.subr.mxu0 0.0
    %2369 = vmatpush1.xpose.msra.mxu0 0.0
    %2370 = vmatprep.subr.mxu0 0.0
    %2371 = vmatpush1.xpose.msra.mxu0 0.0
    %2372 = vmatprep.subr.mxu0 0.0
    %2373 = vmatpush1.xpose.msra.mxu0 0.0
    %2374 = vmatprep.subr.mxu0 0.0
    %2375 = vmatpush1.xpose.msra.mxu0 0.0
    %2376 = vmatprep.subr.mxu0 0.0
    %2377 = vmatpush1.xpose.msra.mxu0 0.0
    %2378 = vmatprep.subr.mxu0 0.0
    %2379 = vmatpush1.xpose.msra.mxu0 %v2346
    %2380 = vmatprep.subr.mxu0 0.0
    %2381 = vmatpush2.xpose.msra.mxu0 0.0
    %2382 = vmatprep.subr.mxu0 0.0
    %2383 = vmatpush2.xpose.msra.mxu0 0.0
    %2384 = vmatprep.subr.mxu0 0.0
    %2385 = vmatpush2.xpose.msra.mxu0 0.0
    %2386 = vmatprep.subr.mxu0 0.0
    %2387 = vmatpush2.xpose.msra.mxu0 0.0
    %2388 = vmatprep.subr.mxu0 0.0
    %2389 = vmatpush2.xpose.msra.mxu0 0.0
    %2390 = vmatprep.subr.mxu0 0.0
    %2391 = vmatpush2.xpose.msra.mxu0 0.0
    %2392 = vmatprep.subr.mxu0 0.0
    %2393 = vmatpush2.xpose.msra.mxu0 0.0
    %2394 = vmatprep.subr.mxu0 0.0
    %2395 = vmatpush2.xpose.msra.mxu0 0.0
    %2396 = vmatprep.subr.mxu0 0.0
    %2397 = vmatpush2.xpose.msra.mxu0 0.0
    %2398 = vmatprep.subr.mxu0 0.0
    %2399 = vmatpush2.xpose.msra.mxu0 0.0
    %2400 = vmatprep.subr.mxu0 0.0
    %2401 = vmatpush2.xpose.msra.mxu0 0.0
    %2402 = vmatprep.subr.mxu0 0.0
    %2403 = vmatpush2.xpose.msra.mxu0 0.0
    %2404 = vmatprep.subr.mxu0 0.0
    %2405 = vmatpush2.xpose.msra.mxu0 0.0
    %2406 = vmatprep.subr.mxu0 0.0
    %2407 = vmatpush2.xpose.msra.mxu0 0.0
    %2408 = vmatprep.subr.mxu0 0.0
    %2409 = vmatpush2.xpose.msra.mxu0 0.0
    %2410 = vmatprep.subr.mxu0 0.0
    %2411 = vmatpush2.xpose.msra.mxu0 0.0
    %2412 = vmatprep.mubr.f32.mxu0 0.0
    %2413 = vmatmul.mubr.f32.gmra.mxu0 %v2344
    %v2414 = vpop.f32.mrf.mxu0
    %v2415 = vadd.f32 0.0, %v2414
    %v2416 = vpop.f32.mrf.mxu0
    %2417 = vdwg.mxu0
    %2419 = vrot.lane.b32.xlu0 %v459, 120
    %v2420 = vpop.permute.xlu0 %2419
    %v2421 = vsel %vm495, %v459, 0
    %v2423 = vsel %vm495, %v2420, 0
    %2425 = vmatprep.subr.mxu0 0.0
    %2426 = vmatpush1.xpose.msra.mxu0 0.0
    %2427 = vmatprep.subr.mxu0 0.0
    %2428 = vmatpush1.xpose.msra.mxu0 0.0
    %2429 = vmatprep.subr.mxu0 0.0
    %2430 = vmatpush1.xpose.msra.mxu0 0.0
    %2431 = vmatprep.subr.mxu0 0.0
    %2432 = vmatpush1.xpose.msra.mxu0 0.0
    %2433 = vmatprep.subr.mxu0 0.0
    %2434 = vmatpush1.xpose.msra.mxu0 0.0
    %2435 = vmatprep.subr.mxu0 0.0
    %2436 = vmatpush1.xpose.msra.mxu0 0.0
    %2437 = vmatprep.subr.mxu0 0.0
    %2438 = vmatpush1.xpose.msra.mxu0 0.0
    %2439 = vmatprep.subr.mxu0 0.0
    %2440 = vmatpush1.xpose.msra.mxu0 0.0
    %2441 = vmatprep.subr.mxu0 0.0
    %2442 = vmatpush1.xpose.msra.mxu0 0.0
    %2443 = vmatprep.subr.mxu0 0.0
    %2444 = vmatpush1.xpose.msra.mxu0 0.0
    %2445 = vmatprep.subr.mxu0 0.0
    %2446 = vmatpush1.xpose.msra.mxu0 0.0
    %2447 = vmatprep.subr.mxu0 0.0
    %2448 = vmatpush1.xpose.msra.mxu0 0.0
    %2449 = vmatprep.subr.mxu0 0.0
    %2450 = vmatpush1.xpose.msra.mxu0 0.0
    %2451 = vmatprep.subr.mxu0 0.0
    %2452 = vmatpush1.xpose.msra.mxu0 0.0
    %2453 = vmatprep.subr.mxu0 0.0
    %2454 = vmatpush1.xpose.msra.mxu0 0.0
    %2455 = vmatprep.subr.mxu0 0.0
    %2456 = vmatpush1.xpose.msra.mxu0 %v2423
    %2457 = vmatprep.subr.mxu0 0.0
    %2458 = vmatpush2.xpose.msra.mxu0 0.0
    %2459 = vmatprep.subr.mxu0 0.0
    %2460 = vmatpush2.xpose.msra.mxu0 0.0
    %2461 = vmatprep.subr.mxu0 0.0
    %2462 = vmatpush2.xpose.msra.mxu0 0.0
    %2463 = vmatprep.subr.mxu0 0.0
    %2464 = vmatpush2.xpose.msra.mxu0 0.0
    %2465 = vmatprep.subr.mxu0 0.0
    %2466 = vmatpush2.xpose.msra.mxu0 0.0
    %2467 = vmatprep.subr.mxu0 0.0
    %2468 = vmatpush2.xpose.msra.mxu0 0.0
    %2469 = vmatprep.subr.mxu0 0.0
    %2470 = vmatpush2.xpose.msra.mxu0 0.0
    %2471 = vmatprep.subr.mxu0 0.0
    %2472 = vmatpush2.xpose.msra.mxu0 0.0
    %2473 = vmatprep.subr.mxu0 0.0
    %2474 = vmatpush2.xpose.msra.mxu0 0.0
    %2475 = vmatprep.subr.mxu0 0.0
    %2476 = vmatpush2.xpose.msra.mxu0 0.0
    %2477 = vmatprep.subr.mxu0 0.0
    %2478 = vmatpush2.xpose.msra.mxu0 0.0
    %2479 = vmatprep.subr.mxu0 0.0
    %2480 = vmatpush2.xpose.msra.mxu0 0.0
    %2481 = vmatprep.subr.mxu0 0.0
    %2482 = vmatpush2.xpose.msra.mxu0 0.0
    %2483 = vmatprep.subr.mxu0 0.0
    %2484 = vmatpush2.xpose.msra.mxu0 0.0
    %2485 = vmatprep.subr.mxu0 0.0
    %2486 = vmatpush2.xpose.msra.mxu0 0.0
    %2487 = vmatprep.subr.mxu0 0.0
    %2488 = vmatpush2.xpose.msra.mxu0 0.0
    %2489 = vmatprep.mubr.f32.mxu0 0.0
    %2490 = vmatmul.mubr.f32.gmra.mxu0 %v2421
    %v2491 = vpop.f32.mrf.mxu0
    %v2492 = vadd.f32 0.0, %v2491
    %v2493 = vpop.f32.mrf.mxu0
    %2494 = vdwg.mxu0
    %2496 = vrot.lane.b32.xlu0 %v464, 120
    %v2497 = vpop.permute.xlu0 %2496
    %v2498 = vsel %vm495, %v464, 0
    %v2500 = vsel %vm495, %v2497, 0
    %2502 = vmatprep.subr.mxu0 0.0
    %2503 = vmatpush1.xpose.msra.mxu0 0.0
    %2504 = vmatprep.subr.mxu0 0.0
    %2505 = vmatpush1.xpose.msra.mxu0 0.0
    %2506 = vmatprep.subr.mxu0 0.0
    %2507 = vmatpush1.xpose.msra.mxu0 0.0
    %2508 = vmatprep.subr.mxu0 0.0
    %2509 = vmatpush1.xpose.msra.mxu0 0.0
    %2510 = vmatprep.subr.mxu0 0.0
    %2511 = vmatpush1.xpose.msra.mxu0 0.0
    %2512 = vmatprep.subr.mxu0 0.0
    %2513 = vmatpush1.xpose.msra.mxu0 0.0
    %2514 = vmatprep.subr.mxu0 0.0
    %2515 = vmatpush1.xpose.msra.mxu0 0.0
    %2516 = vmatprep.subr.mxu0 0.0
    %2517 = vmatpush1.xpose.msra.mxu0 0.0
    %2518 = vmatprep.subr.mxu0 0.0
    %2519 = vmatpush1.xpose.msra.mxu0 0.0
    %2520 = vmatprep.subr.mxu0 0.0
    %2521 = vmatpush1.xpose.msra.mxu0 0.0
    %2522 = vmatprep.subr.mxu0 0.0
    %2523 = vmatpush1.xpose.msra.mxu0 0.0
    %2524 = vmatprep.subr.mxu0 0.0
    %2525 = vmatpush1.xpose.msra.mxu0 0.0
    %2526 = vmatprep.subr.mxu0 0.0
    %2527 = vmatpush1.xpose.msra.mxu0 0.0
    %2528 = vmatprep.subr.mxu0 0.0
    %2529 = vmatpush1.xpose.msra.mxu0 0.0
    %2530 = vmatprep.subr.mxu0 0.0
    %2531 = vmatpush1.xpose.msra.mxu0 0.0
    %2532 = vmatprep.subr.mxu0 0.0
    %2533 = vmatpush1.xpose.msra.mxu0 %v2500
    %2534 = vmatprep.subr.mxu0 0.0
    %2535 = vmatpush2.xpose.msra.mxu0 0.0
    %2536 = vmatprep.subr.mxu0 0.0
    %2537 = vmatpush2.xpose.msra.mxu0 0.0
    %2538 = vmatprep.subr.mxu0 0.0
    %2539 = vmatpush2.xpose.msra.mxu0 0.0
    %2540 = vmatprep.subr.mxu0 0.0
    %2541 = vmatpush2.xpose.msra.mxu0 0.0
    %2542 = vmatprep.subr.mxu0 0.0
    %2543 = vmatpush2.xpose.msra.mxu0 0.0
    %2544 = vmatprep.subr.mxu0 0.0
    %2545 = vmatpush2.xpose.msra.mxu0 0.0
    %2546 = vmatprep.subr.mxu0 0.0
    %2547 = vmatpush2.xpose.msra.mxu0 0.0
    %2548 = vmatprep.subr.mxu0 0.0
    %2549 = vmatpush2.xpose.msra.mxu0 0.0
    %2550 = vmatprep.subr.mxu0 0.0
    %2551 = vmatpush2.xpose.msra.mxu0 0.0
    %2552 = vmatprep.subr.mxu0 0.0
    %2553 = vmatpush2.xpose.msra.mxu0 0.0
    %2554 = vmatprep.subr.mxu0 0.0
    %2555 = vmatpush2.xpose.msra.mxu0 0.0
    %2556 = vmatprep.subr.mxu0 0.0
    %2557 = vmatpush2.xpose.msra.mxu0 0.0
    %2558 = vmatprep.subr.mxu0 0.0
    %2559 = vmatpush2.xpose.msra.mxu0 0.0
    %2560 = vmatprep.subr.mxu0 0.0
    %2561 = vmatpush2.xpose.msra.mxu0 0.0
    %2562 = vmatprep.subr.mxu0 0.0
    %2563 = vmatpush2.xpose.msra.mxu0 0.0
    %2564 = vmatprep.subr.mxu0 0.0
    %2565 = vmatpush2.xpose.msra.mxu0 0.0
    %2566 = vmatprep.mubr.f32.mxu0 0.0
    %2567 = vmatmul.mubr.f32.gmra.mxu0 %v2498
    %v2568 = vpop.f32.mrf.mxu0
    %v2569 = vadd.f32 0.0, %v2568
    %v2570 = vpop.f32.mrf.mxu0
    %2571 = vdwg.mxu0
    %2573 = vrot.lane.b32.xlu0 %v469, 120
    %v2574 = vpop.permute.xlu0 %2573
    %v2575 = vsel %vm495, %v469, 0
    %v2577 = vsel %vm495, %v2574, 0
    %2579 = vmatprep.subr.mxu0 0.0
    %2580 = vmatpush1.xpose.msra.mxu0 0.0
    %2581 = vmatprep.subr.mxu0 0.0
    %2582 = vmatpush1.xpose.msra.mxu0 0.0
    %2583 = vmatprep.subr.mxu0 0.0
    %2584 = vmatpush1.xpose.msra.mxu0 0.0
    %2585 = vmatprep.subr.mxu0 0.0
    %2586 = vmatpush1.xpose.msra.mxu0 0.0
    %2587 = vmatprep.subr.mxu0 0.0
    %2588 = vmatpush1.xpose.msra.mxu0 0.0
    %2589 = vmatprep.subr.mxu0 0.0
    %2590 = vmatpush1.xpose.msra.mxu0 0.0
    %2591 = vmatprep.subr.mxu0 0.0
    %2592 = vmatpush1.xpose.msra.mxu0 0.0
    %2593 = vmatprep.subr.mxu0 0.0
    %2594 = vmatpush1.xpose.msra.mxu0 0.0
    %2595 = vmatprep.subr.mxu0 0.0
    %2596 = vmatpush1.xpose.msra.mxu0 0.0
    %2597 = vmatprep.subr.mxu0 0.0
    %2598 = vmatpush1.xpose.msra.mxu0 0.0
    %2599 = vmatprep.subr.mxu0 0.0
    %2600 = vmatpush1.xpose.msra.mxu0 0.0
    %2601 = vmatprep.subr.mxu0 0.0
    %2602 = vmatpush1.xpose.msra.mxu0 0.0
    %2603 = vmatprep.subr.mxu0 0.0
    %2604 = vmatpush1.xpose.msra.mxu0 0.0
    %2605 = vmatprep.subr.mxu0 0.0
    %2606 = vmatpush1.xpose.msra.mxu0 0.0
    %2607 = vmatprep.subr.mxu0 0.0
    %2608 = vmatpush1.xpose.msra.mxu0 0.0
    %2609 = vmatprep.subr.mxu0 0.0
    %2610 = vmatpush1.xpose.msra.mxu0 %v2577
    %2611 = vmatprep.subr.mxu0 0.0
    %2612 = vmatpush2.xpose.msra.mxu0 0.0
    %2613 = vmatprep.subr.mxu0 0.0
    %2614 = vmatpush2.xpose.msra.mxu0 0.0
    %2615 = vmatprep.subr.mxu0 0.0
    %2616 = vmatpush2.xpose.msra.mxu0 0.0
    %2617 = vmatprep.subr.mxu0 0.0
    %2618 = vmatpush2.xpose.msra.mxu0 0.0
    %2619 = vmatprep.subr.mxu0 0.0
    %2620 = vmatpush2.xpose.msra.mxu0 0.0
    %2621 = vmatprep.subr.mxu0 0.0
    %2622 = vmatpush2.xpose.msra.mxu0 0.0
    %2623 = vmatprep.subr.mxu0 0.0
    %2624 = vmatpush2.xpose.msra.mxu0 0.0
    %2625 = vmatprep.subr.mxu0 0.0
    %2626 = vmatpush2.xpose.msra.mxu0 0.0
    %2627 = vmatprep.subr.mxu0 0.0
    %2628 = vmatpush2.xpose.msra.mxu0 0.0
    %2629 = vmatprep.subr.mxu0 0.0
    %2630 = vmatpush2.xpose.msra.mxu0 0.0
    %2631 = vmatprep.subr.mxu0 0.0
    %2632 = vmatpush2.xpose.msra.mxu0 0.0
    %2633 = vmatprep.subr.mxu0 0.0
    %2634 = vmatpush2.xpose.msra.mxu0 0.0
    %2635 = vmatprep.subr.mxu0 0.0
    %2636 = vmatpush2.xpose.msra.mxu0 0.0
    %2637 = vmatprep.subr.mxu0 0.0
    %2638 = vmatpush2.xpose.msra.mxu0 0.0
    %2639 = vmatprep.subr.mxu0 0.0
    %2640 = vmatpush2.xpose.msra.mxu0 0.0
    %2641 = vmatprep.subr.mxu0 0.0
    %2642 = vmatpush2.xpose.msra.mxu0 0.0
    %2643 = vmatprep.mubr.f32.mxu0 0.0
    %2644 = vmatmul.mubr.f32.gmra.mxu0 %v2575
    %v2645 = vpop.f32.mrf.mxu0
    %v2646 = vadd.f32 0.0, %v2645
    %v2647 = vpop.f32.mrf.mxu0
    %2648 = vdwg.mxu0
    %2650 = vrot.lane.b32.xlu0 %v474, 120
    %v2651 = vpop.permute.xlu0 %2650
    %v2652 = vsel %vm495, %v474, 0
    %v2654 = vsel %vm495, %v2651, 0
    %2656 = vmatprep.subr.mxu0 0.0
    %2657 = vmatpush1.xpose.msra.mxu0 0.0
    %2658 = vmatprep.subr.mxu0 0.0
    %2659 = vmatpush1.xpose.msra.mxu0 0.0
    %2660 = vmatprep.subr.mxu0 0.0
    %2661 = vmatpush1.xpose.msra.mxu0 0.0
    %2662 = vmatprep.subr.mxu0 0.0
    %2663 = vmatpush1.xpose.msra.mxu0 0.0
    %2664 = vmatprep.subr.mxu0 0.0
    %2665 = vmatpush1.xpose.msra.mxu0 0.0
    %2666 = vmatprep.subr.mxu0 0.0
    %2667 = vmatpush1.xpose.msra.mxu0 0.0
    %2668 = vmatprep.subr.mxu0 0.0
    %2669 = vmatpush1.xpose.msra.mxu0 0.0
    %2670 = vmatprep.subr.mxu0 0.0
    %2671 = vmatpush1.xpose.msra.mxu0 0.0
    %2672 = vmatprep.subr.mxu0 0.0
    %2673 = vmatpush1.xpose.msra.mxu0 0.0
    %2674 = vmatprep.subr.mxu0 0.0
    %2675 = vmatpush1.xpose.msra.mxu0 0.0
    %2676 = vmatprep.subr.mxu0 0.0
    %2677 = vmatpush1.xpose.msra.mxu0 0.0
    %2678 = vmatprep.subr.mxu0 0.0
    %2679 = vmatpush1.xpose.msra.mxu0 0.0
    %2680 = vmatprep.subr.mxu0 0.0
    %2681 = vmatpush1.xpose.msra.mxu0 0.0
    %2682 = vmatprep.subr.mxu0 0.0
    %2683 = vmatpush1.xpose.msra.mxu0 0.0
    %2684 = vmatprep.subr.mxu0 0.0
    %2685 = vmatpush1.xpose.msra.mxu0 0.0
    %2686 = vmatprep.subr.mxu0 0.0
    %2687 = vmatpush1.xpose.msra.mxu0 %v2654
    %2688 = vmatprep.subr.mxu0 0.0
    %2689 = vmatpush2.xpose.msra.mxu0 0.0
    %2690 = vmatprep.subr.mxu0 0.0
    %2691 = vmatpush2.xpose.msra.mxu0 0.0
    %2692 = vmatprep.subr.mxu0 0.0
    %2693 = vmatpush2.xpose.msra.mxu0 0.0
    %2694 = vmatprep.subr.mxu0 0.0
    %2695 = vmatpush2.xpose.msra.mxu0 0.0
    %2696 = vmatprep.subr.mxu0 0.0
    %2697 = vmatpush2.xpose.msra.mxu0 0.0
    %2698 = vmatprep.subr.mxu0 0.0
    %2699 = vmatpush2.xpose.msra.mxu0 0.0
    %2700 = vmatprep.subr.mxu0 0.0
    %2701 = vmatpush2.xpose.msra.mxu0 0.0
    %2702 = vmatprep.subr.mxu0 0.0
    %2703 = vmatpush2.xpose.msra.mxu0 0.0
    %2704 = vmatprep.subr.mxu0 0.0
    %2705 = vmatpush2.xpose.msra.mxu0 0.0
    %2706 = vmatprep.subr.mxu0 0.0
    %2707 = vmatpush2.xpose.msra.mxu0 0.0
    %2708 = vmatprep.subr.mxu0 0.0
    %2709 = vmatpush2.xpose.msra.mxu0 0.0
    %2710 = vmatprep.subr.mxu0 0.0
    %2711 = vmatpush2.xpose.msra.mxu0 0.0
    %2712 = vmatprep.subr.mxu0 0.0
    %2713 = vmatpush2.xpose.msra.mxu0 0.0
    %2714 = vmatprep.subr.mxu0 0.0
    %2715 = vmatpush2.xpose.msra.mxu0 0.0
    %2716 = vmatprep.subr.mxu0 0.0
    %2717 = vmatpush2.xpose.msra.mxu0 0.0
    %2718 = vmatprep.subr.mxu0 0.0
    %2719 = vmatpush2.xpose.msra.mxu0 0.0
    %2720 = vmatprep.mubr.f32.mxu0 0.0
    %2721 = vmatmul.mubr.f32.gmra.mxu0 %v2652
    %v2722 = vpop.f32.mrf.mxu0
    %v2723 = vadd.f32 0.0, %v2722
    %v2724 = vpop.f32.mrf.mxu0
    %2725 = vdwg.mxu0
    %2727 = vrot.lane.b32.xlu0 %v479, 120
    %v2728 = vpop.permute.xlu0 %2727
    %v2729 = vsel %vm495, %v479, 0
    %v2731 = vsel %vm495, %v2728, 0
    %2733 = vmatprep.subr.mxu0 0.0
    %2734 = vmatpush1.xpose.msra.mxu0 0.0
    %2735 = vmatprep.subr.mxu0 0.0
    %2736 = vmatpush1.xpose.msra.mxu0 0.0
    %2737 = vmatprep.subr.mxu0 0.0
    %2738 = vmatpush1.xpose.msra.mxu0 0.0
    %2739 = vmatprep.subr.mxu0 0.0
    %2740 = vmatpush1.xpose.msra.mxu0 0.0
    %2741 = vmatprep.subr.mxu0 0.0
    %2742 = vmatpush1.xpose.msra.mxu0 0.0
    %2743 = vmatprep.subr.mxu0 0.0
    %2744 = vmatpush1.xpose.msra.mxu0 0.0
    %2745 = vmatprep.subr.mxu0 0.0
    %2746 = vmatpush1.xpose.msra.mxu0 0.0
    %2747 = vmatprep.subr.mxu0 0.0
    %2748 = vmatpush1.xpose.msra.mxu0 0.0
    %2749 = vmatprep.subr.mxu0 0.0
    %2750 = vmatpush1.xpose.msra.mxu0 0.0
    %2751 = vmatprep.subr.mxu0 0.0
    %2752 = vmatpush1.xpose.msra.mxu0 0.0
    %2753 = vmatprep.subr.mxu0 0.0
    %2754 = vmatpush1.xpose.msra.mxu0 0.0
    %2755 = vmatprep.subr.mxu0 0.0
    %2756 = vmatpush1.xpose.msra.mxu0 0.0
    %2757 = vmatprep.subr.mxu0 0.0
    %2758 = vmatpush1.xpose.msra.mxu0 0.0
    %2759 = vmatprep.subr.mxu0 0.0
    %2760 = vmatpush1.xpose.msra.mxu0 0.0
    %2761 = vmatprep.subr.mxu0 0.0
    %2762 = vmatpush1.xpose.msra.mxu0 0.0
    %2763 = vmatprep.subr.mxu0 0.0
    %2764 = vmatpush1.xpose.msra.mxu0 %v2731
    %2765 = vmatprep.subr.mxu0 0.0
    %2766 = vmatpush2.xpose.msra.mxu0 0.0
    %2767 = vmatprep.subr.mxu0 0.0
    %2768 = vmatpush2.xpose.msra.mxu0 0.0
    %2769 = vmatprep.subr.mxu0 0.0
    %2770 = vmatpush2.xpose.msra.mxu0 0.0
    %2771 = vmatprep.subr.mxu0 0.0
    %2772 = vmatpush2.xpose.msra.mxu0 0.0
    %2773 = vmatprep.subr.mxu0 0.0
    %2774 = vmatpush2.xpose.msra.mxu0 0.0
    %2775 = vmatprep.subr.mxu0 0.0
    %2776 = vmatpush2.xpose.msra.mxu0 0.0
    %2777 = vmatprep.subr.mxu0 0.0
    %2778 = vmatpush2.xpose.msra.mxu0 0.0
    %2779 = vmatprep.subr.mxu0 0.0
    %2780 = vmatpush2.xpose.msra.mxu0 0.0
    %2781 = vmatprep.subr.mxu0 0.0
    %2782 = vmatpush2.xpose.msra.mxu0 0.0
    %2783 = vmatprep.subr.mxu0 0.0
    %2784 = vmatpush2.xpose.msra.mxu0 0.0
    %2785 = vmatprep.subr.mxu0 0.0
    %2786 = vmatpush2.xpose.msra.mxu0 0.0
    %2787 = vmatprep.subr.mxu0 0.0
    %2788 = vmatpush2.xpose.msra.mxu0 0.0
    %2789 = vmatprep.subr.mxu0 0.0
    %2790 = vmatpush2.xpose.msra.mxu0 0.0
    %2791 = vmatprep.subr.mxu0 0.0
    %2792 = vmatpush2.xpose.msra.mxu0 0.0
    %2793 = vmatprep.subr.mxu0 0.0
    %2794 = vmatpush2.xpose.msra.mxu0 0.0
    %2795 = vmatprep.subr.mxu0 0.0
    %2796 = vmatpush2.xpose.msra.mxu0 0.0
    %2797 = vmatprep.mubr.f32.mxu0 0.0
    %2798 = vmatmul.mubr.f32.gmra.mxu0 %v2729
    %v2799 = vpop.f32.mrf.mxu0
    %v2800 = vadd.f32 0.0, %v2799
    %v2801 = vpop.f32.mrf.mxu0
    %2802 = vdwg.mxu0
    %2804 = vrot.lane.b32.xlu0 %v484, 120
    %v2805 = vpop.permute.xlu0 %2804
    %v2806 = vsel %vm495, %v484, 0
    %v2808 = vsel %vm495, %v2805, 0
    %2810 = vmatprep.subr.mxu0 0.0
    %2811 = vmatpush1.xpose.msra.mxu0 0.0
    %2812 = vmatprep.subr.mxu0 0.0
    %2813 = vmatpush1.xpose.msra.mxu0 0.0
    %2814 = vmatprep.subr.mxu0 0.0
    %2815 = vmatpush1.xpose.msra.mxu0 0.0
    %2816 = vmatprep.subr.mxu0 0.0
    %2817 = vmatpush1.xpose.msra.mxu0 0.0
    %2818 = vmatprep.subr.mxu0 0.0
    %2819 = vmatpush1.xpose.msra.mxu0 0.0
    %2820 = vmatprep.subr.mxu0 0.0
    %2821 = vmatpush1.xpose.msra.mxu0 0.0
    %2822 = vmatprep.subr.mxu0 0.0
    %2823 = vmatpush1.xpose.msra.mxu0 0.0
    %2824 = vmatprep.subr.mxu0 0.0
    %2825 = vmatpush1.xpose.msra.mxu0 0.0
    %2826 = vmatprep.subr.mxu0 0.0
    %2827 = vmatpush1.xpose.msra.mxu0 0.0
    %2828 = vmatprep.subr.mxu0 0.0
    %2829 = vmatpush1.xpose.msra.mxu0 0.0
    %2830 = vmatprep.subr.mxu0 0.0
    %2831 = vmatpush1.xpose.msra.mxu0 0.0
    %2832 = vmatprep.subr.mxu0 0.0
    %2833 = vmatpush1.xpose.msra.mxu0 0.0
    %2834 = vmatprep.subr.mxu0 0.0
    %2835 = vmatpush1.xpose.msra.mxu0 0.0
    %2836 = vmatprep.subr.mxu0 0.0
    %2837 = vmatpush1.xpose.msra.mxu0 0.0
    %2838 = vmatprep.subr.mxu0 0.0
    %2839 = vmatpush1.xpose.msra.mxu0 0.0
    %2840 = vmatprep.subr.mxu0 0.0
    %2841 = vmatpush1.xpose.msra.mxu0 %v2808
    %2842 = vmatprep.subr.mxu0 0.0
    %2843 = vmatpush2.xpose.msra.mxu0 0.0
    %2844 = vmatprep.subr.mxu0 0.0
    %2845 = vmatpush2.xpose.msra.mxu0 0.0
    %2846 = vmatprep.subr.mxu0 0.0
    %2847 = vmatpush2.xpose.msra.mxu0 0.0
    %2848 = vmatprep.subr.mxu0 0.0
    %2849 = vmatpush2.xpose.msra.mxu0 0.0
    %2850 = vmatprep.subr.mxu0 0.0
    %2851 = vmatpush2.xpose.msra.mxu0 0.0
    %2852 = vmatprep.subr.mxu0 0.0
    %2853 = vmatpush2.xpose.msra.mxu0 0.0
    %2854 = vmatprep.subr.mxu0 0.0
    %2855 = vmatpush2.xpose.msra.mxu0 0.0
    %2856 = vmatprep.subr.mxu0 0.0
    %2857 = vmatpush2.xpose.msra.mxu0 0.0
    %2858 = vmatprep.subr.mxu0 0.0
    %2859 = vmatpush2.xpose.msra.mxu0 0.0
    %2860 = vmatprep.subr.mxu0 0.0
    %2861 = vmatpush2.xpose.msra.mxu0 0.0
    %2862 = vmatprep.subr.mxu0 0.0
    %2863 = vmatpush2.xpose.msra.mxu0 0.0
    %2864 = vmatprep.subr.mxu0 0.0
    %2865 = vmatpush2.xpose.msra.mxu0 0.0
    %2866 = vmatprep.subr.mxu0 0.0
    %2867 = vmatpush2.xpose.msra.mxu0 0.0
    %2868 = vmatprep.subr.mxu0 0.0
    %2869 = vmatpush2.xpose.msra.mxu0 0.0
    %2870 = vmatprep.subr.mxu0 0.0
    %2871 = vmatpush2.xpose.msra.mxu0 0.0
    %2872 = vmatprep.subr.mxu0 0.0
    %2873 = vmatpush2.xpose.msra.mxu0 0.0
    %2874 = vmatprep.mubr.f32.mxu0 0.0
    %2875 = vmatmul.mubr.f32.gmra.mxu0 %v2806
    %v2876 = vpop.f32.mrf.mxu0
    %v2877 = vadd.f32 0.0, %v2876
    %v2878 = vpop.f32.mrf.mxu0
    %2879 = vdwg.mxu0
    %2881 = vrot.lane.b32.xlu0 %v489, 120
    %v2882 = vpop.permute.xlu0 %2881
    %v2883 = vsel %vm495, %v489, 0
    %v2885 = vsel %vm495, %v2882, 0
    %2887 = vmatprep.subr.mxu0 0.0
    %2888 = vmatpush1.xpose.msra.mxu0 0.0
    %2889 = vmatprep.subr.mxu0 0.0
    %2890 = vmatpush1.xpose.msra.mxu0 0.0
    %2891 = vmatprep.subr.mxu0 0.0
    %2892 = vmatpush1.xpose.msra.mxu0 0.0
    %2893 = vmatprep.subr.mxu0 0.0
    %2894 = vmatpush1.xpose.msra.mxu0 0.0
    %2895 = vmatprep.subr.mxu0 0.0
    %2896 = vmatpush1.xpose.msra.mxu0 0.0
    %2897 = vmatprep.subr.mxu0 0.0
    %2898 = vmatpush1.xpose.msra.mxu0 0.0
    %2899 = vmatprep.subr.mxu0 0.0
    %2900 = vmatpush1.xpose.msra.mxu0 0.0
    %2901 = vmatprep.subr.mxu0 0.0
    %2902 = vmatpush1.xpose.msra.mxu0 0.0
    %2903 = vmatprep.subr.mxu0 0.0
    %2904 = vmatpush1.xpose.msra.mxu0 0.0
    %2905 = vmatprep.subr.mxu0 0.0
    %2906 = vmatpush1.xpose.msra.mxu0 0.0
    %2907 = vmatprep.subr.mxu0 0.0
    %2908 = vmatpush1.xpose.msra.mxu0 0.0
    %2909 = vmatprep.subr.mxu0 0.0
    %2910 = vmatpush1.xpose.msra.mxu0 0.0
    %2911 = vmatprep.subr.mxu0 0.0
    %2912 = vmatpush1.xpose.msra.mxu0 0.0
    %2913 = vmatprep.subr.mxu0 0.0
    %2914 = vmatpush1.xpose.msra.mxu0 0.0
    %2915 = vmatprep.subr.mxu0 0.0
    %2916 = vmatpush1.xpose.msra.mxu0 0.0
    %2917 = vmatprep.subr.mxu0 0.0
    %2918 = vmatpush1.xpose.msra.mxu0 %v2885
    %2919 = vmatprep.subr.mxu0 0.0
    %2920 = vmatpush2.xpose.msra.mxu0 0.0
    %2921 = vmatprep.subr.mxu0 0.0
    %2922 = vmatpush2.xpose.msra.mxu0 0.0
    %2923 = vmatprep.subr.mxu0 0.0
    %2924 = vmatpush2.xpose.msra.mxu0 0.0
    %2925 = vmatprep.subr.mxu0 0.0
    %2926 = vmatpush2.xpose.msra.mxu0 0.0
    %2927 = vmatprep.subr.mxu0 0.0
    %2928 = vmatpush2.xpose.msra.mxu0 0.0
    %2929 = vmatprep.subr.mxu0 0.0
    %2930 = vmatpush2.xpose.msra.mxu0 0.0
    %2931 = vmatprep.subr.mxu0 0.0
    %2932 = vmatpush2.xpose.msra.mxu0 0.0
    %2933 = vmatprep.subr.mxu0 0.0
    %2934 = vmatpush2.xpose.msra.mxu0 0.0
    %2935 = vmatprep.subr.mxu0 0.0
    %2936 = vmatpush2.xpose.msra.mxu0 0.0
    %2937 = vmatprep.subr.mxu0 0.0
    %2938 = vmatpush2.xpose.msra.mxu0 0.0
    %2939 = vmatprep.subr.mxu0 0.0
    %2940 = vmatpush2.xpose.msra.mxu0 0.0
    %2941 = vmatprep.subr.mxu0 0.0
    %2942 = vmatpush2.xpose.msra.mxu0 0.0
    %2943 = vmatprep.subr.mxu0 0.0
    %2944 = vmatpush2.xpose.msra.mxu0 0.0
    %2945 = vmatprep.subr.mxu0 0.0
    %2946 = vmatpush2.xpose.msra.mxu0 0.0
    %2947 = vmatprep.subr.mxu0 0.0
    %2948 = vmatpush2.xpose.msra.mxu0 0.0
    %2949 = vmatprep.subr.mxu0 0.0
    %2950 = vmatpush2.xpose.msra.mxu0 0.0
    %2951 = vmatprep.mubr.f32.mxu0 0.0
    %2952 = vmatmul.mubr.f32.gmra.mxu0 %v2883
    %v2953 = vpop.f32.mrf.mxu0
    %v2954 = vadd.f32 0.0, %v2953
    %v2955 = vpop.f32.mrf.mxu0
    %2956 = vdwg.mxu0
    %v2957 = vmul.f32 %v567, 0.35355338
    %v2958 = vmul.f32 %v644, 0.35355338
    %v2959 = vmul.f32 %v721, 0.35355338
    %v2960 = vmul.f32 %v798, 0.35355338
    %v2961 = vmul.f32 %v875, 0.35355338
    %v2962 = vmul.f32 %v952, 0.35355338
    %v2963 = vmul.f32 %v1029, 0.35355338
    %v2964 = vmul.f32 %v1106, 0.35355338
    %v2965 = vmul.f32 %v1183, 0.35355338
    %v2966 = vmul.f32 %v1260, 0.35355338
    %v2967 = vmul.f32 %v1337, 0.35355338
    %v2968 = vmul.f32 %v1414, 0.35355338
    %v2969 = vmul.f32 %v1491, 0.35355338
    %v2970 = vmul.f32 %v1568, 0.35355338
    %v2971 = vmul.f32 %v1645, 0.35355338
    %v2972 = vmul.f32 %v1722, 0.35355338
    %v2973 = vmul.f32 %v1799, 0.35355338
    %v2974 = vmul.f32 %v1876, 0.35355338
    %v2975 = vmul.f32 %v1953, 0.35355338
    %v2976 = vmul.f32 %v2030, 0.35355338
    %v2977 = vmul.f32 %v2107, 0.35355338
    %v2978 = vmul.f32 %v2184, 0.35355338
    %v2979 = vmul.f32 %v2261, 0.35355338
    %v2980 = vmul.f32 %v2338, 0.35355338
    %v2981 = vmul.f32 %v2415, 0.35355338
    %v2982 = vmul.f32 %v2492, 0.35355338
    %v2983 = vmul.f32 %v2569, 0.35355338
    %v2984 = vmul.f32 %v2646, 0.35355338
    %v2985 = vmul.f32 %v2723, 0.35355338
    %v2986 = vmul.f32 %v2800, 0.35355338
    %v2987 = vmul.f32 %v2877, 0.35355338
    %v2988 = vmul.f32 %v2954, 0.35355338
    %v2989 = vlaneseq
    %v2990 = vshrl.u32 %v2989, 7
    %v2991 = vlaneseq
    %v2992 = vand.u32 %v2991, 127
    %vm2993 = vcmp.le.s32.totalorder %v2992, %v2990
    %v2994 = vsel %vm2993, 1, 0
    %vm2995 = vcmp.eq.s32.totalorder %v2994, 1
    %v2996 = vsel %vm2995, %v2957, -1e+30
    %v2997 = vsel %vm2995, %v2958, -1e+30
    %v2998 = vsel %vm2995, %v2959, -1e+30
    %v2999 = vsel %vm2995, %v2960, -1e+30
    %v3000 = vsel %vm2995, %v2961, -1e+30
    %v3001 = vsel %vm2995, %v2962, -1e+30
    %v3002 = vsel %vm2995, %v2963, -1e+30
    %v3003 = vsel %vm2995, %v2964, -1e+30
    %v3004 = vsel %vm2995, %v2965, -1e+30
    %v3005 = vsel %vm2995, %v2966, -1e+30
    %v3006 = vsel %vm2995, %v2967, -1e+30
    %v3007 = vsel %vm2995, %v2968, -1e+30
    %v3008 = vsel %vm2995, %v2969, -1e+30
    %v3009 = vsel %vm2995, %v2970, -1e+30
    %v3010 = vsel %vm2995, %v2971, -1e+30
    %v3011 = vsel %vm2995, %v2972, -1e+30
    %v3012 = vsel %vm2995, %v2973, -1e+30
    %v3013 = vsel %vm2995, %v2974, -1e+30
    %v3014 = vsel %vm2995, %v2975, -1e+30
    %v3015 = vsel %vm2995, %v2976, -1e+30
    %v3016 = vsel %vm2995, %v2977, -1e+30
    %v3017 = vsel %vm2995, %v2978, -1e+30
    %v3018 = vsel %vm2995, %v2979, -1e+30
    %v3019 = vsel %vm2995, %v2980, -1e+30
    %v3020 = vsel %vm2995, %v2981, -1e+30
    %v3021 = vsel %vm2995, %v2982, -1e+30
    %v3022 = vsel %vm2995, %v2983, -1e+30
    %v3023 = vsel %vm2995, %v2984, -1e+30
    %v3024 = vsel %vm2995, %v2985, -1e+30
    %v3025 = vsel %vm2995, %v2986, -1e+30
    %v3026 = vsel %vm2995, %v2987, -1e+30
    %v3027 = vsel %vm2995, %v2988, -1e+30
    %v3028 = vsel %vm495, %v2996, -inf
    %3029 = vmax.xlane.f32.xlu0 %v3028
    %v3030 = vpop.xlane.xlu0 %3029
    %v3031 = vsel %vm495, %v2997, -inf
    %3032 = vmax.xlane.f32.xlu0 %v3031
    %v3033 = vpop.xlane.xlu0 %3032
    %v3034 = vsel %vm495, %v2998, -inf
    %3035 = vmax.xlane.f32.xlu0 %v3034
    %v3036 = vpop.xlane.xlu0 %3035
    %v3037 = vsel %vm495, %v2999, -inf
    %3038 = vmax.xlane.f32.xlu0 %v3037
    %v3039 = vpop.xlane.xlu0 %3038
    %v3040 = vsel %vm495, %v3000, -inf
    %3041 = vmax.xlane.f32.xlu0 %v3040
    %v3042 = vpop.xlane.xlu0 %3041
    %v3043 = vsel %vm495, %v3001, -inf
    %3044 = vmax.xlane.f32.xlu0 %v3043
    %v3045 = vpop.xlane.xlu0 %3044
    %v3046 = vsel %vm495, %v3002, -inf
    %3047 = vmax.xlane.f32.xlu0 %v3046
    %v3048 = vpop.xlane.xlu0 %3047
    %v3049 = vsel %vm495, %v3003, -inf
    %3050 = vmax.xlane.f32.xlu0 %v3049
    %v3051 = vpop.xlane.xlu0 %3050
    %v3052 = vsel %vm495, %v3004, -inf
    %3053 = vmax.xlane.f32.xlu0 %v3052
    %v3054 = vpop.xlane.xlu0 %3053
    %v3055 = vsel %vm495, %v3005, -inf
    %3056 = vmax.xlane.f32.xlu0 %v3055
    %v3057 = vpop.xlane.xlu0 %3056
    %v3058 = vsel %vm495, %v3006, -inf
    %3059 = vmax.xlane.f32.xlu0 %v3058
    %v3060 = vpop.xlane.xlu0 %3059
    %v3061 = vsel %vm495, %v3007, -inf
    %3062 = vmax.xlane.f32.xlu0 %v3061
    %v3063 = vpop.xlane.xlu0 %3062
    %v3064 = vsel %vm495, %v3008, -inf
    %3065 = vmax.xlane.f32.xlu0 %v3064
    %v3066 = vpop.xlane.xlu0 %3065
    %v3067 = vsel %vm495, %v3009, -inf
    %3068 = vmax.xlane.f32.xlu0 %v3067
    %v3069 = vpop.xlane.xlu0 %3068
    %v3070 = vsel %vm495, %v3010, -inf
    %3071 = vmax.xlane.f32.xlu0 %v3070
    %v3072 = vpop.xlane.xlu0 %3071
    %v3073 = vsel %vm495, %v3011, -inf
    %3074 = vmax.xlane.f32.xlu0 %v3073
    %v3075 = vpop.xlane.xlu0 %3074
    %v3076 = vsel %vm495, %v3012, -inf
    %3077 = vmax.xlane.f32.xlu0 %v3076
    %v3078 = vpop.xlane.xlu0 %3077
    %v3079 = vsel %vm495, %v3013, -inf
    %3080 = vmax.xlane.f32.xlu0 %v3079
    %v3081 = vpop.xlane.xlu0 %3080
    %v3082 = vsel %vm495, %v3014, -inf
    %3083 = vmax.xlane.f32.xlu0 %v3082
    %v3084 = vpop.xlane.xlu0 %3083
    %v3085 = vsel %vm495, %v3015, -inf
    %3086 = vmax.xlane.f32.xlu0 %v3085
    %v3087 = vpop.xlane.xlu0 %3086
    %v3088 = vsel %vm495, %v3016, -inf
    %3089 = vmax.xlane.f32.xlu0 %v3088
    %v3090 = vpop.xlane.xlu0 %3089
    %v3091 = vsel %vm495, %v3017, -inf
    %3092 = vmax.xlane.f32.xlu0 %v3091
    %v3093 = vpop.xlane.xlu0 %3092
    %v3094 = vsel %vm495, %v3018, -inf
    %3095 = vmax.xlane.f32.xlu0 %v3094
    %v3096 = vpop.xlane.xlu0 %3095
    %v3097 = vsel %vm495, %v3019, -inf
    %3098 = vmax.xlane.f32.xlu0 %v3097
    %v3099 = vpop.xlane.xlu0 %3098
    %v3100 = vsel %vm495, %v3020, -inf
    %3101 = vmax.xlane.f32.xlu0 %v3100
    %v3102 = vpop.xlane.xlu0 %3101
    %v3103 = vsel %vm495, %v3021, -inf
    %3104 = vmax.xlane.f32.xlu0 %v3103
    %v3105 = vpop.xlane.xlu0 %3104
    %v3106 = vsel %vm495, %v3022, -inf
    %3107 = vmax.xlane.f32.xlu0 %v3106
    %v3108 = vpop.xlane.xlu0 %3107
    %v3109 = vsel %vm495, %v3023, -inf
    %3110 = vmax.xlane.f32.xlu0 %v3109
    %v3111 = vpop.xlane.xlu0 %3110
    %v3112 = vsel %vm495, %v3024, -inf
    %3113 = vmax.xlane.f32.xlu0 %v3112
    %v3114 = vpop.xlane.xlu0 %3113
    %v3115 = vsel %vm495, %v3025, -inf
    %3116 = vmax.xlane.f32.xlu0 %v3115
    %v3117 = vpop.xlane.xlu0 %3116
    %v3118 = vsel %vm495, %v3026, -inf
    %3119 = vmax.xlane.f32.xlu0 %v3118
    %v3120 = vpop.xlane.xlu0 %3119
    %v3121 = vsel %vm495, %v3027, -inf
    %3122 = vmax.xlane.f32.xlu0 %v3121
    %v3123 = vpop.xlane.xlu0 %3122
    %v3124 = vsub.f32 %v2996, %v3030
    %v3125 = vsub.f32 %v2997, %v3033
    %v3126 = vsub.f32 %v2998, %v3036
    %v3127 = vsub.f32 %v2999, %v3039
    %v3128 = vsub.f32 %v3000, %v3042
    %v3129 = vsub.f32 %v3001, %v3045
    %v3130 = vsub.f32 %v3002, %v3048
    %v3131 = vsub.f32 %v3003, %v3051
    %v3132 = vsub.f32 %v3004, %v3054
    %v3133 = vsub.f32 %v3005, %v3057
    %v3134 = vsub.f32 %v3006, %v3060
    %v3135 = vsub.f32 %v3007, %v3063
    %v3136 = vsub.f32 %v3008, %v3066
    %v3137 = vsub.f32 %v3009, %v3069
    %v3138 = vsub.f32 %v3010, %v3072
    %v3139 = vsub.f32 %v3011, %v3075
    %v3140 = vsub.f32 %v3012, %v3078
    %v3141 = vsub.f32 %v3013, %v3081
    %v3142 = vsub.f32 %v3014, %v3084
    %v3143 = vsub.f32 %v3015, %v3087
    %v3144 = vsub.f32 %v3016, %v3090
    %v3145 = vsub.f32 %v3017, %v3093
    %v3146 = vsub.f32 %v3018, %v3096
    %v3147 = vsub.f32 %v3019, %v3099
    %v3148 = vsub.f32 %v3020, %v3102
    %v3149 = vsub.f32 %v3021, %v3105
    %v3150 = vsub.f32 %v3022, %v3108
    %v3151 = vsub.f32 %v3023, %v3111
    %v3152 = vsub.f32 %v3024, %v3114
    %v3153 = vsub.f32 %v3025, %v3117
    %v3154 = vsub.f32 %v3026, %v3120
    %v3155 = vsub.f32 %v3027, %v3123
    %v3156 = vmul.f32 %v3124, 1.442695
    %v3157 = vpow.pop %v3156
    %v3158 = vmul.f32 %v3125, 1.442695
    %v3159 = vpow.pop %v3158
    %v3160 = vmul.f32 %v3126, 1.442695
    %v3161 = vpow.pop %v3160
    %v3162 = vmul.f32 %v3127, 1.442695
    %v3163 = vpow.pop %v3162
    %v3164 = vmul.f32 %v3128, 1.442695
    %v3165 = vpow.pop %v3164
    %v3166 = vmul.f32 %v3129, 1.442695
    %v3167 = vpow.pop %v3166
    %v3168 = vmul.f32 %v3130, 1.442695
    %v3169 = vpow.pop %v3168
    %v3170 = vmul.f32 %v3131, 1.442695
    %v3171 = vpow.pop %v3170
    %v3172 = vmul.f32 %v3132, 1.442695
    %v3173 = vpow.pop %v3172
    %v3174 = vmul.f32 %v3133, 1.442695
    %v3175 = vpow.pop %v3174
    %v3176 = vmul.f32 %v3134, 1.442695
    %v3177 = vpow.pop %v3176
    %v3178 = vmul.f32 %v3135, 1.442695
    %v3179 = vpow.pop %v3178
    %v3180 = vmul.f32 %v3136, 1.442695
    %v3181 = vpow.pop %v3180
    %v3182 = vmul.f32 %v3137, 1.442695
    %v3183 = vpow.pop %v3182
    %v3184 = vmul.f32 %v3138, 1.442695
    %v3185 = vpow.pop %v3184
    %v3186 = vmul.f32 %v3139, 1.442695
    %v3187 = vpow.pop %v3186
    %v3188 = vmul.f32 %v3140, 1.442695
    %v3189 = vpow.pop %v3188
    %v3190 = vmul.f32 %v3141, 1.442695
    %v3191 = vpow.pop %v3190
    %v3192 = vmul.f32 %v3142, 1.442695
    %v3193 = vpow.pop %v3192
    %v3194 = vmul.f32 %v3143, 1.442695
    %v3195 = vpow.pop %v3194
    %v3196 = vmul.f32 %v3144, 1.442695
    %v3197 = vpow.pop %v3196
    %v3198 = vmul.f32 %v3145, 1.442695
    %v3199 = vpow.pop %v3198
    %v3200 = vmul.f32 %v3146, 1.442695
    %v3201 = vpow.pop %v3200
    %v3202 = vmul.f32 %v3147, 1.442695
    %v3203 = vpow.pop %v3202
    %v3204 = vmul.f32 %v3148, 1.442695
    %v3205 = vpow.pop %v3204
    %v3206 = vmul.f32 %v3149, 1.442695
    %v3207 = vpow.pop %v3206
    %v3208 = vmul.f32 %v3150, 1.442695
    %v3209 = vpow.pop %v3208
    %v3210 = vmul.f32 %v3151, 1.442695
    %v3211 = vpow.pop %v3210
    %v3212 = vmul.f32 %v3152, 1.442695
    %v3213 = vpow.pop %v3212
    %v3214 = vmul.f32 %v3153, 1.442695
    %v3215 = vpow.pop %v3214
    %v3216 = vmul.f32 %v3154, 1.442695
    %v3217 = vpow.pop %v3216
    %v3218 = vmul.f32 %v3155, 1.442695
    %v3219 = vpow.pop %v3218
    %v3220 = vsel %vm495, %v3157, 0.0
    %3221 = vadd.xlane.f32.xlu0 %v3220
    %v3222 = vpop.xlane.xlu0 %3221
    %v3223 = vsel %vm495, %v3159, 0.0
    %3224 = vadd.xlane.f32.xlu0 %v3223
    %v3225 = vpop.xlane.xlu0 %3224
    %v3226 = vsel %vm495, %v3161, 0.0
    %3227 = vadd.xlane.f32.xlu0 %v3226
    %v3228 = vpop.xlane.xlu0 %3227
    %v3229 = vsel %vm495, %v3163, 0.0
    %3230 = vadd.xlane.f32.xlu0 %v3229
    %v3231 = vpop.xlane.xlu0 %3230
    %v3232 = vsel %vm495, %v3165, 0.0
    %3233 = vadd.xlane.f32.xlu0 %v3232
    %v3234 = vpop.xlane.xlu0 %3233
    %v3235 = vsel %vm495, %v3167, 0.0
    %3236 = vadd.xlane.f32.xlu0 %v3235
    %v3237 = vpop.xlane.xlu0 %3236
    %v3238 = vsel %vm495, %v3169, 0.0
    %3239 = vadd.xlane.f32.xlu0 %v3238
    %v3240 = vpop.xlane.xlu0 %3239
    %v3241 = vsel %vm495, %v3171, 0.0
    %3242 = vadd.xlane.f32.xlu0 %v3241
    %v3243 = vpop.xlane.xlu0 %3242
    %v3244 = vsel %vm495, %v3173, 0.0
    %3245 = vadd.xlane.f32.xlu0 %v3244
    %v3246 = vpop.xlane.xlu0 %3245
    %v3247 = vsel %vm495, %v3175, 0.0
    %3248 = vadd.xlane.f32.xlu0 %v3247
    %v3249 = vpop.xlane.xlu0 %3248
    %v3250 = vsel %vm495, %v3177, 0.0
    %3251 = vadd.xlane.f32.xlu0 %v3250
    %v3252 = vpop.xlane.xlu0 %3251
    %v3253 = vsel %vm495, %v3179, 0.0
    %3254 = vadd.xlane.f32.xlu0 %v3253
    %v3255 = vpop.xlane.xlu0 %3254
    %v3256 = vsel %vm495, %v3181, 0.0
    %3257 = vadd.xlane.f32.xlu0 %v3256
    %v3258 = vpop.xlane.xlu0 %3257
    %v3259 = vsel %vm495, %v3183, 0.0
    %3260 = vadd.xlane.f32.xlu0 %v3259
    %v3261 = vpop.xlane.xlu0 %3260
    %v3262 = vsel %vm495, %v3185, 0.0
    %3263 = vadd.xlane.f32.xlu0 %v3262
    %v3264 = vpop.xlane.xlu0 %3263
    %v3265 = vsel %vm495, %v3187, 0.0
    %3266 = vadd.xlane.f32.xlu0 %v3265
    %v3267 = vpop.xlane.xlu0 %3266
    %v3268 = vsel %vm495, %v3189, 0.0
    %3269 = vadd.xlane.f32.xlu0 %v3268
    %v3270 = vpop.xlane.xlu0 %3269
    %v3271 = vsel %vm495, %v3191, 0.0
    %3272 = vadd.xlane.f32.xlu0 %v3271
    %v3273 = vpop.xlane.xlu0 %3272
    %v3274 = vsel %vm495, %v3193, 0.0
    %3275 = vadd.xlane.f32.xlu0 %v3274
    %v3276 = vpop.xlane.xlu0 %3275
    %v3277 = vsel %vm495, %v3195, 0.0
    %3278 = vadd.xlane.f32.xlu0 %v3277
    %v3279 = vpop.xlane.xlu0 %3278
    %v3280 = vsel %vm495, %v3197, 0.0
    %3281 = vadd.xlane.f32.xlu0 %v3280
    %v3282 = vpop.xlane.xlu0 %3281
    %v3283 = vsel %vm495, %v3199, 0.0
    %3284 = vadd.xlane.f32.xlu0 %v3283
    %v3285 = vpop.xlane.xlu0 %3284
    %v3286 = vsel %vm495, %v3201, 0.0
    %3287 = vadd.xlane.f32.xlu0 %v3286
    %v3288 = vpop.xlane.xlu0 %3287
    %v3289 = vsel %vm495, %v3203, 0.0
    %3290 = vadd.xlane.f32.xlu0 %v3289
    %v3291 = vpop.xlane.xlu0 %3290
    %v3292 = vsel %vm495, %v3205, 0.0
    %3293 = vadd.xlane.f32.xlu0 %v3292
    %v3294 = vpop.xlane.xlu0 %3293
    %v3295 = vsel %vm495, %v3207, 0.0
    %3296 = vadd.xlane.f32.xlu0 %v3295
    %v3297 = vpop.xlane.xlu0 %3296
    %v3298 = vsel %vm495, %v3209, 0.0
    %3299 = vadd.xlane.f32.xlu0 %v3298
    %v3300 = vpop.xlane.xlu0 %3299
    %v3301 = vsel %vm495, %v3211, 0.0
    %3302 = vadd.xlane.f32.xlu0 %v3301
    %v3303 = vpop.xlane.xlu0 %3302
    %v3304 = vsel %vm495, %v3213, 0.0
    %3305 = vadd.xlane.f32.xlu0 %v3304
    %v3306 = vpop.xlane.xlu0 %3305
    %v3307 = vsel %vm495, %v3215, 0.0
    %3308 = vadd.xlane.f32.xlu0 %v3307
    %v3309 = vpop.xlane.xlu0 %3308
    %v3310 = vsel %vm495, %v3217, 0.0
    %3311 = vadd.xlane.f32.xlu0 %v3310
    %v3312 = vpop.xlane.xlu0 %3311
    %v3313 = vsel %vm495, %v3219, 0.0
    %3314 = vadd.xlane.f32.xlu0 %v3313
    %v3315 = vpop.xlane.xlu0 %3314
    %v3316 = vrcp.pop %v3222
    %v3317 = vmul.f32 %v3157, %v3316
    %v3318 = vrcp.pop %v3225
    %v3319 = vmul.f32 %v3159, %v3318
    %v3320 = vrcp.pop %v3228
    %v3321 = vmul.f32 %v3161, %v3320
    %v3322 = vrcp.pop %v3231
    %v3323 = vmul.f32 %v3163, %v3322
    %v3324 = vrcp.pop %v3234
    %v3325 = vmul.f32 %v3165, %v3324
    %v3326 = vrcp.pop %v3237
    %v3327 = vmul.f32 %v3167, %v3326
    %v3328 = vrcp.pop %v3240
    %v3329 = vmul.f32 %v3169, %v3328
    %v3330 = vrcp.pop %v3243
    %v3331 = vmul.f32 %v3171, %v3330
    %v3332 = vrcp.pop %v3246
    %v3333 = vmul.f32 %v3173, %v3332
    %v3334 = vrcp.pop %v3249
    %v3335 = vmul.f32 %v3175, %v3334
    %v3336 = vrcp.pop %v3252
    %v3337 = vmul.f32 %v3177, %v3336
    %v3338 = vrcp.pop %v3255
    %v3339 = vmul.f32 %v3179, %v3338
    %v3340 = vrcp.pop %v3258
    %v3341 = vmul.f32 %v3181, %v3340
    %v3342 = vrcp.pop %v3261
    %v3343 = vmul.f32 %v3183, %v3342
    %v3344 = vrcp.pop %v3264
    %v3345 = vmul.f32 %v3185, %v3344
    %v3346 = vrcp.pop %v3267
    %v3347 = vmul.f32 %v3187, %v3346
    %v3348 = vrcp.pop %v3270
    %v3349 = vmul.f32 %v3189, %v3348
    %v3350 = vrcp.pop %v3273
    %v3351 = vmul.f32 %v3191, %v3350
    %v3352 = vrcp.pop %v3276
    %v3353 = vmul.f32 %v3193, %v3352
    %v3354 = vrcp.pop %v3279
    %v3355 = vmul.f32 %v3195, %v3354
    %v3356 = vrcp.pop %v3282
    %v3357 = vmul.f32 %v3197, %v3356
    %v3358 = vrcp.pop %v3285
    %v3359 = vmul.f32 %v3199, %v3358
    %v3360 = vrcp.pop %v3288
    %v3361 = vmul.f32 %v3201, %v3360
    %v3362 = vrcp.pop %v3291
    %v3363 = vmul.f32 %v3203, %v3362
    %v3364 = vrcp.pop %v3294
    %v3365 = vmul.f32 %v3205, %v3364
    %v3366 = vrcp.pop %v3297
    %v3367 = vmul.f32 %v3207, %v3366
    %v3368 = vrcp.pop %v3300
    %v3369 = vmul.f32 %v3209, %v3368
    %v3370 = vrcp.pop %v3303
    %v3371 = vmul.f32 %v3211, %v3370
    %v3372 = vrcp.pop %v3306
    %v3373 = vmul.f32 %v3213, %v3372
    %v3374 = vrcp.pop %v3309
    %v3375 = vmul.f32 %v3215, %v3374
    %v3376 = vrcp.pop %v3312
    %v3377 = vmul.f32 %v3217, %v3376
    %v3378 = vrcp.pop %v3315
    %v3379 = vmul.f32 %v3219, %v3378
    %3380 = vrot.lane.b32.xlu0 %v139, 112
    %v3381 = vpop.permute.xlu0 %3380
    %v3384 = vsel %vm495, %v3317, 0
    %3386 = vmatprep.subr.mxu0 0.0
    %3387 = vmatpush1.msra.mxu0 0.0
    %3388 = vmatprep.subr.mxu0 0.0
    %3389 = vmatpush1.msra.mxu0 0.0
    %3390 = vmatprep.subr.mxu0 0.0
    %3391 = vmatpush1.msra.mxu0 0.0
    %3392 = vmatprep.subr.mxu0 0.0
    %3393 = vmatpush1.msra.mxu0 0.0
    %3394 = vmatprep.subr.mxu0 0.0
    %3395 = vmatpush1.msra.mxu0 0.0
    %3396 = vmatprep.subr.mxu0 0.0
    %3397 = vmatpush1.msra.mxu0 0.0
    %3398 = vmatprep.subr.mxu0 0.0
    %3399 = vmatpush1.msra.mxu0 0.0
    %3400 = vmatprep.subr.mxu0 0.0
    %3401 = vmatpush1.msra.mxu0 0.0
    %3402 = vmatprep.subr.mxu0 0.0
    %3403 = vmatpush1.msra.mxu0 0.0
    %3404 = vmatprep.subr.mxu0 0.0
    %3405 = vmatpush1.msra.mxu0 0.0
    %3406 = vmatprep.subr.mxu0 0.0
    %3407 = vmatpush1.msra.mxu0 0.0
    %3408 = vmatprep.subr.mxu0 0.0
    %3409 = vmatpush1.msra.mxu0 0.0
    %3410 = vmatprep.subr.mxu0 0.0
    %3411 = vmatpush1.msra.mxu0 0.0
    %3412 = vmatprep.subr.mxu0 0.0
    %3413 = vmatpush1.msra.mxu0 0.0
    %3414 = vmatprep.subr.mxu0 0.0
    %3415 = vmatpush1.msra.mxu0 0.0
    %3416 = vmatprep.subr.mxu0 0.0
    %3417 = vmatpush1.msra.mxu0 %v3381
    %3418 = vmatprep.subr.mxu0 0.0
    %3419 = vmatpush2.msra.mxu0 0.0
    %3420 = vmatprep.subr.mxu0 0.0
    %3421 = vmatpush2.msra.mxu0 0.0
    %3422 = vmatprep.subr.mxu0 0.0
    %3423 = vmatpush2.msra.mxu0 0.0
    %3424 = vmatprep.subr.mxu0 0.0
    %3425 = vmatpush2.msra.mxu0 0.0
    %3426 = vmatprep.subr.mxu0 0.0
    %3427 = vmatpush2.msra.mxu0 0.0
    %3428 = vmatprep.subr.mxu0 0.0
    %3429 = vmatpush2.msra.mxu0 0.0
    %3430 = vmatprep.subr.mxu0 0.0
    %3431 = vmatpush2.msra.mxu0 0.0
    %3432 = vmatprep.subr.mxu0 0.0
    %3433 = vmatpush2.msra.mxu0 0.0
    %3434 = vmatprep.subr.mxu0 0.0
    %3435 = vmatpush2.msra.mxu0 0.0
    %3436 = vmatprep.subr.mxu0 0.0
    %3437 = vmatpush2.msra.mxu0 0.0
    %3438 = vmatprep.subr.mxu0 0.0
    %3439 = vmatpush2.msra.mxu0 0.0
    %3440 = vmatprep.subr.mxu0 0.0
    %3441 = vmatpush2.msra.mxu0 0.0
    %3442 = vmatprep.subr.mxu0 0.0
    %3443 = vmatpush2.msra.mxu0 0.0
    %3444 = vmatprep.subr.mxu0 0.0
    %3445 = vmatpush2.msra.mxu0 0.0
    %3446 = vmatprep.subr.mxu0 0.0
    %3447 = vmatpush2.msra.mxu0 0.0
    %3448 = vmatprep.subr.mxu0 0.0
    %3449 = vmatpush2.msra.mxu0 0.0
    %3450 = vmatprep.mubr.f32.mxu0 0.0
    %3451 = vmatmul.mubr.f32.gmra.mxu0 %v3384
    %v3452 = vpop.f32.mrf.mxu0
    %v3453 = vadd.f32 0.0, %v3452
    %v3454 = vpop.f32.mrf.mxu0
    %3455 = vdwg.mxu0
    %3456 = vrot.lane.b32.xlu0 %v144, 112
    %v3457 = vpop.permute.xlu0 %3456
    %v3460 = vsel %vm495, %v3319, 0
    %3462 = vmatprep.subr.mxu0 0.0
    %3463 = vmatpush1.msra.mxu0 0.0
    %3464 = vmatprep.subr.mxu0 0.0
    %3465 = vmatpush1.msra.mxu0 0.0
    %3466 = vmatprep.subr.mxu0 0.0
    %3467 = vmatpush1.msra.mxu0 0.0
    %3468 = vmatprep.subr.mxu0 0.0
    %3469 = vmatpush1.msra.mxu0 0.0
    %3470 = vmatprep.subr.mxu0 0.0
    %3471 = vmatpush1.msra.mxu0 0.0
    %3472 = vmatprep.subr.mxu0 0.0
    %3473 = vmatpush1.msra.mxu0 0.0
    %3474 = vmatprep.subr.mxu0 0.0
    %3475 = vmatpush1.msra.mxu0 0.0
    %3476 = vmatprep.subr.mxu0 0.0
    %3477 = vmatpush1.msra.mxu0 0.0
    %3478 = vmatprep.subr.mxu0 0.0
    %3479 = vmatpush1.msra.mxu0 0.0
    %3480 = vmatprep.subr.mxu0 0.0
    %3481 = vmatpush1.msra.mxu0 0.0
    %3482 = vmatprep.subr.mxu0 0.0
    %3483 = vmatpush1.msra.mxu0 0.0
    %3484 = vmatprep.subr.mxu0 0.0
    %3485 = vmatpush1.msra.mxu0 0.0
    %3486 = vmatprep.subr.mxu0 0.0
    %3487 = vmatpush1.msra.mxu0 0.0
    %3488 = vmatprep.subr.mxu0 0.0
    %3489 = vmatpush1.msra.mxu0 0.0
    %3490 = vmatprep.subr.mxu0 0.0
    %3491 = vmatpush1.msra.mxu0 0.0
    %3492 = vmatprep.subr.mxu0 0.0
    %3493 = vmatpush1.msra.mxu0 %v3457
    %3494 = vmatprep.subr.mxu0 0.0
    %3495 = vmatpush2.msra.mxu0 0.0
    %3496 = vmatprep.subr.mxu0 0.0
    %3497 = vmatpush2.msra.mxu0 0.0
    %3498 = vmatprep.subr.mxu0 0.0
    %3499 = vmatpush2.msra.mxu0 0.0
    %3500 = vmatprep.subr.mxu0 0.0
    %3501 = vmatpush2.msra.mxu0 0.0
    %3502 = vmatprep.subr.mxu0 0.0
    %3503 = vmatpush2.msra.mxu0 0.0
    %3504 = vmatprep.subr.mxu0 0.0
    %3505 = vmatpush2.msra.mxu0 0.0
    %3506 = vmatprep.subr.mxu0 0.0
    %3507 = vmatpush2.msra.mxu0 0.0
    %3508 = vmatprep.subr.mxu0 0.0
    %3509 = vmatpush2.msra.mxu0 0.0
    %3510 = vmatprep.subr.mxu0 0.0
    %3511 = vmatpush2.msra.mxu0 0.0
    %3512 = vmatprep.subr.mxu0 0.0
    %3513 = vmatpush2.msra.mxu0 0.0
    %3514 = vmatprep.subr.mxu0 0.0
    %3515 = vmatpush2.msra.mxu0 0.0
    %3516 = vmatprep.subr.mxu0 0.0
    %3517 = vmatpush2.msra.mxu0 0.0
    %3518 = vmatprep.subr.mxu0 0.0
    %3519 = vmatpush2.msra.mxu0 0.0
    %3520 = vmatprep.subr.mxu0 0.0
    %3521 = vmatpush2.msra.mxu0 0.0
    %3522 = vmatprep.subr.mxu0 0.0
    %3523 = vmatpush2.msra.mxu0 0.0
    %3524 = vmatprep.subr.mxu0 0.0
    %3525 = vmatpush2.msra.mxu0 0.0
    %3526 = vmatprep.mubr.f32.mxu0 0.0
    %3527 = vmatmul.mubr.f32.gmra.mxu0 %v3460
    %v3528 = vpop.f32.mrf.mxu0
    %v3529 = vadd.f32 0.0, %v3528
    %v3530 = vpop.f32.mrf.mxu0
    %3531 = vdwg.mxu0
    %3532 = vrot.lane.b32.xlu0 %v149, 112
    %v3533 = vpop.permute.xlu0 %3532
    %v3536 = vsel %vm495, %v3321, 0
    %3538 = vmatprep.subr.mxu0 0.0
    %3539 = vmatpush1.msra.mxu0 0.0
    %3540 = vmatprep.subr.mxu0 0.0
    %3541 = vmatpush1.msra.mxu0 0.0
    %3542 = vmatprep.subr.mxu0 0.0
    %3543 = vmatpush1.msra.mxu0 0.0
    %3544 = vmatprep.subr.mxu0 0.0
    %3545 = vmatpush1.msra.mxu0 0.0
    %3546 = vmatprep.subr.mxu0 0.0
    %3547 = vmatpush1.msra.mxu0 0.0
    %3548 = vmatprep.subr.mxu0 0.0
    %3549 = vmatpush1.msra.mxu0 0.0
    %3550 = vmatprep.subr.mxu0 0.0
    %3551 = vmatpush1.msra.mxu0 0.0
    %3552 = vmatprep.subr.mxu0 0.0
    %3553 = vmatpush1.msra.mxu0 0.0
    %3554 = vmatprep.subr.mxu0 0.0
    %3555 = vmatpush1.msra.mxu0 0.0
    %3556 = vmatprep.subr.mxu0 0.0
    %3557 = vmatpush1.msra.mxu0 0.0
    %3558 = vmatprep.subr.mxu0 0.0
    %3559 = vmatpush1.msra.mxu0 0.0
    %3560 = vmatprep.subr.mxu0 0.0
    %3561 = vmatpush1.msra.mxu0 0.0
    %3562 = vmatprep.subr.mxu0 0.0
    %3563 = vmatpush1.msra.mxu0 0.0
    %3564 = vmatprep.subr.mxu0 0.0
    %3565 = vmatpush1.msra.mxu0 0.0
    %3566 = vmatprep.subr.mxu0 0.0
    %3567 = vmatpush1.msra.mxu0 0.0
    %3568 = vmatprep.subr.mxu0 0.0
    %3569 = vmatpush1.msra.mxu0 %v3533
    %3570 = vmatprep.subr.mxu0 0.0
    %3571 = vmatpush2.msra.mxu0 0.0
    %3572 = vmatprep.subr.mxu0 0.0
    %3573 = vmatpush2.msra.mxu0 0.0
    %3574 = vmatprep.subr.mxu0 0.0
    %3575 = vmatpush2.msra.mxu0 0.0
    %3576 = vmatprep.subr.mxu0 0.0
    %3577 = vmatpush2.msra.mxu0 0.0
    %3578 = vmatprep.subr.mxu0 0.0
    %3579 = vmatpush2.msra.mxu0 0.0
    %3580 = vmatprep.subr.mxu0 0.0
    %3581 = vmatpush2.msra.mxu0 0.0
    %3582 = vmatprep.subr.mxu0 0.0
    %3583 = vmatpush2.msra.mxu0 0.0
    %3584 = vmatprep.subr.mxu0 0.0
    %3585 = vmatpush2.msra.mxu0 0.0
    %3586 = vmatprep.subr.mxu0 0.0
    %3587 = vmatpush2.msra.mxu0 0.0
    %3588 = vmatprep.subr.mxu0 0.0
    %3589 = vmatpush2.msra.mxu0 0.0
    %3590 = vmatprep.subr.mxu0 0.0
    %3591 = vmatpush2.msra.mxu0 0.0
    %3592 = vmatprep.subr.mxu0 0.0
    %3593 = vmatpush2.msra.mxu0 0.0
    %3594 = vmatprep.subr.mxu0 0.0
    %3595 = vmatpush2.msra.mxu0 0.0
    %3596 = vmatprep.subr.mxu0 0.0
    %3597 = vmatpush2.msra.mxu0 0.0
    %3598 = vmatprep.subr.mxu0 0.0
    %3599 = vmatpush2.msra.mxu0 0.0
    %3600 = vmatprep.subr.mxu0 0.0
    %3601 = vmatpush2.msra.mxu0 0.0
    %3602 = vmatprep.mubr.f32.mxu0 0.0
    %3603 = vmatmul.mubr.f32.gmra.mxu0 %v3536
    %v3604 = vpop.f32.mrf.mxu0
    %v3605 = vadd.f32 0.0, %v3604
    %v3606 = vpop.f32.mrf.mxu0
    %3607 = vdwg.mxu0
    %3608 = vrot.lane.b32.xlu0 %v154, 112
    %v3609 = vpop.permute.xlu0 %3608
    %v3612 = vsel %vm495, %v3323, 0
    %3614 = vmatprep.subr.mxu0 0.0
    %3615 = vmatpush1.msra.mxu0 0.0
    %3616 = vmatprep.subr.mxu0 0.0
    %3617 = vmatpush1.msra.mxu0 0.0
    %3618 = vmatprep.subr.mxu0 0.0
    %3619 = vmatpush1.msra.mxu0 0.0
    %3620 = vmatprep.subr.mxu0 0.0
    %3621 = vmatpush1.msra.mxu0 0.0
    %3622 = vmatprep.subr.mxu0 0.0
    %3623 = vmatpush1.msra.mxu0 0.0
    %3624 = vmatprep.subr.mxu0 0.0
    %3625 = vmatpush1.msra.mxu0 0.0
    %3626 = vmatprep.subr.mxu0 0.0
    %3627 = vmatpush1.msra.mxu0 0.0
    %3628 = vmatprep.subr.mxu0 0.0
    %3629 = vmatpush1.msra.mxu0 0.0
    %3630 = vmatprep.subr.mxu0 0.0
    %3631 = vmatpush1.msra.mxu0 0.0
    %3632 = vmatprep.subr.mxu0 0.0
    %3633 = vmatpush1.msra.mxu0 0.0
    %3634 = vmatprep.subr.mxu0 0.0
    %3635 = vmatpush1.msra.mxu0 0.0
    %3636 = vmatprep.subr.mxu0 0.0
    %3637 = vmatpush1.msra.mxu0 0.0
    %3638 = vmatprep.subr.mxu0 0.0
    %3639 = vmatpush1.msra.mxu0 0.0
    %3640 = vmatprep.subr.mxu0 0.0
    %3641 = vmatpush1.msra.mxu0 0.0
    %3642 = vmatprep.subr.mxu0 0.0
    %3643 = vmatpush1.msra.mxu0 0.0
    %3644 = vmatprep.subr.mxu0 0.0
    %3645 = vmatpush1.msra.mxu0 %v3609
    %3646 = vmatprep.subr.mxu0 0.0
    %3647 = vmatpush2.msra.mxu0 0.0
    %3648 = vmatprep.subr.mxu0 0.0
    %3649 = vmatpush2.msra.mxu0 0.0
    %3650 = vmatprep.subr.mxu0 0.0
    %3651 = vmatpush2.msra.mxu0 0.0
    %3652 = vmatprep.subr.mxu0 0.0
    %3653 = vmatpush2.msra.mxu0 0.0
    %3654 = vmatprep.subr.mxu0 0.0
    %3655 = vmatpush2.msra.mxu0 0.0
    %3656 = vmatprep.subr.mxu0 0.0
    %3657 = vmatpush2.msra.mxu0 0.0
    %3658 = vmatprep.subr.mxu0 0.0
    %3659 = vmatpush2.msra.mxu0 0.0
    %3660 = vmatprep.subr.mxu0 0.0
    %3661 = vmatpush2.msra.mxu0 0.0
    %3662 = vmatprep.subr.mxu0 0.0
    %3663 = vmatpush2.msra.mxu0 0.0
    %3664 = vmatprep.subr.mxu0 0.0
    %3665 = vmatpush2.msra.mxu0 0.0
    %3666 = vmatprep.subr.mxu0 0.0
    %3667 = vmatpush2.msra.mxu0 0.0
    %3668 = vmatprep.subr.mxu0 0.0
    %3669 = vmatpush2.msra.mxu0 0.0
    %3670 = vmatprep.subr.mxu0 0.0
    %3671 = vmatpush2.msra.mxu0 0.0
    %3672 = vmatprep.subr.mxu0 0.0
    %3673 = vmatpush2.msra.mxu0 0.0
    %3674 = vmatprep.subr.mxu0 0.0
    %3675 = vmatpush2.msra.mxu0 0.0
    %3676 = vmatprep.subr.mxu0 0.0
    %3677 = vmatpush2.msra.mxu0 0.0
    %3678 = vmatprep.mubr.f32.mxu0 0.0
    %3679 = vmatmul.mubr.f32.gmra.mxu0 %v3612
    %v3680 = vpop.f32.mrf.mxu0
    %v3681 = vadd.f32 0.0, %v3680
    %v3682 = vpop.f32.mrf.mxu0
    %3683 = vdwg.mxu0
    %3684 = vrot.lane.b32.xlu0 %v159, 112
    %v3685 = vpop.permute.xlu0 %3684
    %v3688 = vsel %vm495, %v3325, 0
    %3690 = vmatprep.subr.mxu0 0.0
    %3691 = vmatpush1.msra.mxu0 0.0
    %3692 = vmatprep.subr.mxu0 0.0
    %3693 = vmatpush1.msra.mxu0 0.0
    %3694 = vmatprep.subr.mxu0 0.0
    %3695 = vmatpush1.msra.mxu0 0.0
    %3696 = vmatprep.subr.mxu0 0.0
    %3697 = vmatpush1.msra.mxu0 0.0
    %3698 = vmatprep.subr.mxu0 0.0
    %3699 = vmatpush1.msra.mxu0 0.0
    %3700 = vmatprep.subr.mxu0 0.0
    %3701 = vmatpush1.msra.mxu0 0.0
    %3702 = vmatprep.subr.mxu0 0.0
    %3703 = vmatpush1.msra.mxu0 0.0
    %3704 = vmatprep.subr.mxu0 0.0
    %3705 = vmatpush1.msra.mxu0 0.0
    %3706 = vmatprep.subr.mxu0 0.0
    %3707 = vmatpush1.msra.mxu0 0.0
    %3708 = vmatprep.subr.mxu0 0.0
    %3709 = vmatpush1.msra.mxu0 0.0
    %3710 = vmatprep.subr.mxu0 0.0
    %3711 = vmatpush1.msra.mxu0 0.0
    %3712 = vmatprep.subr.mxu0 0.0
    %3713 = vmatpush1.msra.mxu0 0.0
    %3714 = vmatprep.subr.mxu0 0.0
    %3715 = vmatpush1.msra.mxu0 0.0
    %3716 = vmatprep.subr.mxu0 0.0
    %3717 = vmatpush1.msra.mxu0 0.0
    %3718 = vmatprep.subr.mxu0 0.0
    %3719 = vmatpush1.msra.mxu0 0.0
    %3720 = vmatprep.subr.mxu0 0.0
    %3721 = vmatpush1.msra.mxu0 %v3685
    %3722 = vmatprep.subr.mxu0 0.0
    %3723 = vmatpush2.msra.mxu0 0.0
    %3724 = vmatprep.subr.mxu0 0.0
    %3725 = vmatpush2.msra.mxu0 0.0
    %3726 = vmatprep.subr.mxu0 0.0
    %3727 = vmatpush2.msra.mxu0 0.0
    %3728 = vmatprep.subr.mxu0 0.0
    %3729 = vmatpush2.msra.mxu0 0.0
    %3730 = vmatprep.subr.mxu0 0.0
    %3731 = vmatpush2.msra.mxu0 0.0
    %3732 = vmatprep.subr.mxu0 0.0
    %3733 = vmatpush2.msra.mxu0 0.0
    %3734 = vmatprep.subr.mxu0 0.0
    %3735 = vmatpush2.msra.mxu0 0.0
    %3736 = vmatprep.subr.mxu0 0.0
    %3737 = vmatpush2.msra.mxu0 0.0
    %3738 = vmatprep.subr.mxu0 0.0
    %3739 = vmatpush2.msra.mxu0 0.0
    %3740 = vmatprep.subr.mxu0 0.0
    %3741 = vmatpush2.msra.mxu0 0.0
    %3742 = vmatprep.subr.mxu0 0.0
    %3743 = vmatpush2.msra.mxu0 0.0
    %3744 = vmatprep.subr.mxu0 0.0
    %3745 = vmatpush2.msra.mxu0 0.0
    %3746 = vmatprep.subr.mxu0 0.0
    %3747 = vmatpush2.msra.mxu0 0.0
    %3748 = vmatprep.subr.mxu0 0.0
    %3749 = vmatpush2.msra.mxu0 0.0
    %3750 = vmatprep.subr.mxu0 0.0
    %3751 = vmatpush2.msra.mxu0 0.0
    %3752 = vmatprep.subr.mxu0 0.0
    %3753 = vmatpush2.msra.mxu0 0.0
    %3754 = vmatprep.mubr.f32.mxu0 0.0
    %3755 = vmatmul.mubr.f32.gmra.mxu0 %v3688
    %v3756 = vpop.f32.mrf.mxu0
    %v3757 = vadd.f32 0.0, %v3756
    %v3758 = vpop.f32.mrf.mxu0
    %3759 = vdwg.mxu0
    %3760 = vrot.lane.b32.xlu0 %v164, 112
    %v3761 = vpop.permute.xlu0 %3760
    %v3764 = vsel %vm495, %v3327, 0
    %3766 = vmatprep.subr.mxu0 0.0
    %3767 = vmatpush1.msra.mxu0 0.0
    %3768 = vmatprep.subr.mxu0 0.0
    %3769 = vmatpush1.msra.mxu0 0.0
    %3770 = vmatprep.subr.mxu0 0.0
    %3771 = vmatpush1.msra.mxu0 0.0
    %3772 = vmatprep.subr.mxu0 0.0
    %3773 = vmatpush1.msra.mxu0 0.0
    %3774 = vmatprep.subr.mxu0 0.0
    %3775 = vmatpush1.msra.mxu0 0.0
    %3776 = vmatprep.subr.mxu0 0.0
    %3777 = vmatpush1.msra.mxu0 0.0
    %3778 = vmatprep.subr.mxu0 0.0
    %3779 = vmatpush1.msra.mxu0 0.0
    %3780 = vmatprep.subr.mxu0 0.0
    %3781 = vmatpush1.msra.mxu0 0.0
    %3782 = vmatprep.subr.mxu0 0.0
    %3783 = vmatpush1.msra.mxu0 0.0
    %3784 = vmatprep.subr.mxu0 0.0
    %3785 = vmatpush1.msra.mxu0 0.0
    %3786 = vmatprep.subr.mxu0 0.0
    %3787 = vmatpush1.msra.mxu0 0.0
    %3788 = vmatprep.subr.mxu0 0.0
    %3789 = vmatpush1.msra.mxu0 0.0
    %3790 = vmatprep.subr.mxu0 0.0
    %3791 = vmatpush1.msra.mxu0 0.0
    %3792 = vmatprep.subr.mxu0 0.0
    %3793 = vmatpush1.msra.mxu0 0.0
    %3794 = vmatprep.subr.mxu0 0.0
    %3795 = vmatpush1.msra.mxu0 0.0
    %3796 = vmatprep.subr.mxu0 0.0
    %3797 = vmatpush1.msra.mxu0 %v3761
    %3798 = vmatprep.subr.mxu0 0.0
    %3799 = vmatpush2.msra.mxu0 0.0
    %3800 = vmatprep.subr.mxu0 0.0
    %3801 = vmatpush2.msra.mxu0 0.0
    %3802 = vmatprep.subr.mxu0 0.0
    %3803 = vmatpush2.msra.mxu0 0.0
    %3804 = vmatprep.subr.mxu0 0.0
    %3805 = vmatpush2.msra.mxu0 0.0
    %3806 = vmatprep.subr.mxu0 0.0
    %3807 = vmatpush2.msra.mxu0 0.0
    %3808 = vmatprep.subr.mxu0 0.0
    %3809 = vmatpush2.msra.mxu0 0.0
    %3810 = vmatprep.subr.mxu0 0.0
    %3811 = vmatpush2.msra.mxu0 0.0
    %3812 = vmatprep.subr.mxu0 0.0
    %3813 = vmatpush2.msra.mxu0 0.0
    %3814 = vmatprep.subr.mxu0 0.0
    %3815 = vmatpush2.msra.mxu0 0.0
    %3816 = vmatprep.subr.mxu0 0.0
    %3817 = vmatpush2.msra.mxu0 0.0
    %3818 = vmatprep.subr.mxu0 0.0
    %3819 = vmatpush2.msra.mxu0 0.0
    %3820 = vmatprep.subr.mxu0 0.0
    %3821 = vmatpush2.msra.mxu0 0.0
    %3822 = vmatprep.subr.mxu0 0.0
    %3823 = vmatpush2.msra.mxu0 0.0
    %3824 = vmatprep.subr.mxu0 0.0
    %3825 = vmatpush2.msra.mxu0 0.0
    %3826 = vmatprep.subr.mxu0 0.0
    %3827 = vmatpush2.msra.mxu0 0.0
    %3828 = vmatprep.subr.mxu0 0.0
    %3829 = vmatpush2.msra.mxu0 0.0
    %3830 = vmatprep.mubr.f32.mxu0 0.0
    %3831 = vmatmul.mubr.f32.gmra.mxu0 %v3764
    %v3832 = vpop.f32.mrf.mxu0
    %v3833 = vadd.f32 0.0, %v3832
    %v3834 = vpop.f32.mrf.mxu0
    %3835 = vdwg.mxu0
    %3836 = vrot.lane.b32.xlu0 %v169, 112
    %v3837 = vpop.permute.xlu0 %3836
    %v3840 = vsel %vm495, %v3329, 0
    %3842 = vmatprep.subr.mxu0 0.0
    %3843 = vmatpush1.msra.mxu0 0.0
    %3844 = vmatprep.subr.mxu0 0.0
    %3845 = vmatpush1.msra.mxu0 0.0
    %3846 = vmatprep.subr.mxu0 0.0
    %3847 = vmatpush1.msra.mxu0 0.0
    %3848 = vmatprep.subr.mxu0 0.0
    %3849 = vmatpush1.msra.mxu0 0.0
    %3850 = vmatprep.subr.mxu0 0.0
    %3851 = vmatpush1.msra.mxu0 0.0
    %3852 = vmatprep.subr.mxu0 0.0
    %3853 = vmatpush1.msra.mxu0 0.0
    %3854 = vmatprep.subr.mxu0 0.0
    %3855 = vmatpush1.msra.mxu0 0.0
    %3856 = vmatprep.subr.mxu0 0.0
    %3857 = vmatpush1.msra.mxu0 0.0
    %3858 = vmatprep.subr.mxu0 0.0
    %3859 = vmatpush1.msra.mxu0 0.0
    %3860 = vmatprep.subr.mxu0 0.0
    %3861 = vmatpush1.msra.mxu0 0.0
    %3862 = vmatprep.subr.mxu0 0.0
    %3863 = vmatpush1.msra.mxu0 0.0
    %3864 = vmatprep.subr.mxu0 0.0
    %3865 = vmatpush1.msra.mxu0 0.0
    %3866 = vmatprep.subr.mxu0 0.0
    %3867 = vmatpush1.msra.mxu0 0.0
    %3868 = vmatprep.subr.mxu0 0.0
    %3869 = vmatpush1.msra.mxu0 0.0
    %3870 = vmatprep.subr.mxu0 0.0
    %3871 = vmatpush1.msra.mxu0 0.0
    %3872 = vmatprep.subr.mxu0 0.0
    %3873 = vmatpush1.msra.mxu0 %v3837
    %3874 = vmatprep.subr.mxu0 0.0
    %3875 = vmatpush2.msra.mxu0 0.0
    %3876 = vmatprep.subr.mxu0 0.0
    %3877 = vmatpush2.msra.mxu0 0.0
    %3878 = vmatprep.subr.mxu0 0.0
    %3879 = vmatpush2.msra.mxu0 0.0
    %3880 = vmatprep.subr.mxu0 0.0
    %3881 = vmatpush2.msra.mxu0 0.0
    %3882 = vmatprep.subr.mxu0 0.0
    %3883 = vmatpush2.msra.mxu0 0.0
    %3884 = vmatprep.subr.mxu0 0.0
    %3885 = vmatpush2.msra.mxu0 0.0
    %3886 = vmatprep.subr.mxu0 0.0
    %3887 = vmatpush2.msra.mxu0 0.0
    %3888 = vmatprep.subr.mxu0 0.0
    %3889 = vmatpush2.msra.mxu0 0.0
    %3890 = vmatprep.subr.mxu0 0.0
    %3891 = vmatpush2.msra.mxu0 0.0
    %3892 = vmatprep.subr.mxu0 0.0
    %3893 = vmatpush2.msra.mxu0 0.0
    %3894 = vmatprep.subr.mxu0 0.0
    %3895 = vmatpush2.msra.mxu0 0.0
    %3896 = vmatprep.subr.mxu0 0.0
    %3897 = vmatpush2.msra.mxu0 0.0
    %3898 = vmatprep.subr.mxu0 0.0
    %3899 = vmatpush2.msra.mxu0 0.0
    %3900 = vmatprep.subr.mxu0 0.0
    %3901 = vmatpush2.msra.mxu0 0.0
    %3902 = vmatprep.subr.mxu0 0.0
    %3903 = vmatpush2.msra.mxu0 0.0
    %3904 = vmatprep.subr.mxu0 0.0
    %3905 = vmatpush2.msra.mxu0 0.0
    %3906 = vmatprep.mubr.f32.mxu0 0.0
    %3907 = vmatmul.mubr.f32.gmra.mxu0 %v3840
    %v3908 = vpop.f32.mrf.mxu0
    %v3909 = vadd.f32 0.0, %v3908
    %v3910 = vpop.f32.mrf.mxu0
    %3911 = vdwg.mxu0
    %3912 = vrot.lane.b32.xlu0 %v174, 112
    %v3913 = vpop.permute.xlu0 %3912
    %v3916 = vsel %vm495, %v3331, 0
    %3918 = vmatprep.subr.mxu0 0.0
    %3919 = vmatpush1.msra.mxu0 0.0
    %3920 = vmatprep.subr.mxu0 0.0
    %3921 = vmatpush1.msra.mxu0 0.0
    %3922 = vmatprep.subr.mxu0 0.0
    %3923 = vmatpush1.msra.mxu0 0.0
    %3924 = vmatprep.subr.mxu0 0.0
    %3925 = vmatpush1.msra.mxu0 0.0
    %3926 = vmatprep.subr.mxu0 0.0
    %3927 = vmatpush1.msra.mxu0 0.0
    %3928 = vmatprep.subr.mxu0 0.0
    %3929 = vmatpush1.msra.mxu0 0.0
    %3930 = vmatprep.subr.mxu0 0.0
    %3931 = vmatpush1.msra.mxu0 0.0
    %3932 = vmatprep.subr.mxu0 0.0
    %3933 = vmatpush1.msra.mxu0 0.0
    %3934 = vmatprep.subr.mxu0 0.0
    %3935 = vmatpush1.msra.mxu0 0.0
    %3936 = vmatprep.subr.mxu0 0.0
    %3937 = vmatpush1.msra.mxu0 0.0
    %3938 = vmatprep.subr.mxu0 0.0
    %3939 = vmatpush1.msra.mxu0 0.0
    %3940 = vmatprep.subr.mxu0 0.0
    %3941 = vmatpush1.msra.mxu0 0.0
    %3942 = vmatprep.subr.mxu0 0.0
    %3943 = vmatpush1.msra.mxu0 0.0
    %3944 = vmatprep.subr.mxu0 0.0
    %3945 = vmatpush1.msra.mxu0 0.0
    %3946 = vmatprep.subr.mxu0 0.0
    %3947 = vmatpush1.msra.mxu0 0.0
    %3948 = vmatprep.subr.mxu0 0.0
    %3949 = vmatpush1.msra.mxu0 %v3913
    %3950 = vmatprep.subr.mxu0 0.0
    %3951 = vmatpush2.msra.mxu0 0.0
    %3952 = vmatprep.subr.mxu0 0.0
    %3953 = vmatpush2.msra.mxu0 0.0
    %3954 = vmatprep.subr.mxu0 0.0
    %3955 = vmatpush2.msra.mxu0 0.0
    %3956 = vmatprep.subr.mxu0 0.0
    %3957 = vmatpush2.msra.mxu0 0.0
    %3958 = vmatprep.subr.mxu0 0.0
    %3959 = vmatpush2.msra.mxu0 0.0
    %3960 = vmatprep.subr.mxu0 0.0
    %3961 = vmatpush2.msra.mxu0 0.0
    %3962 = vmatprep.subr.mxu0 0.0
    %3963 = vmatpush2.msra.mxu0 0.0
    %3964 = vmatprep.subr.mxu0 0.0
    %3965 = vmatpush2.msra.mxu0 0.0
    %3966 = vmatprep.subr.mxu0 0.0
    %3967 = vmatpush2.msra.mxu0 0.0
    %3968 = vmatprep.subr.mxu0 0.0
    %3969 = vmatpush2.msra.mxu0 0.0
    %3970 = vmatprep.subr.mxu0 0.0
    %3971 = vmatpush2.msra.mxu0 0.0
    %3972 = vmatprep.subr.mxu0 0.0
    %3973 = vmatpush2.msra.mxu0 0.0
    %3974 = vmatprep.subr.mxu0 0.0
    %3975 = vmatpush2.msra.mxu0 0.0
    %3976 = vmatprep.subr.mxu0 0.0
    %3977 = vmatpush2.msra.mxu0 0.0
    %3978 = vmatprep.subr.mxu0 0.0
    %3979 = vmatpush2.msra.mxu0 0.0
    %3980 = vmatprep.subr.mxu0 0.0
    %3981 = vmatpush2.msra.mxu0 0.0
    %3982 = vmatprep.mubr.f32.mxu0 0.0
    %3983 = vmatmul.mubr.f32.gmra.mxu0 %v3916
    %v3984 = vpop.f32.mrf.mxu0
    %v3985 = vadd.f32 0.0, %v3984
    %v3986 = vpop.f32.mrf.mxu0
    %3987 = vdwg.mxu0
    %3988 = vrot.lane.b32.xlu0 %v244, 112
    %v3989 = vpop.permute.xlu0 %3988
    %v3992 = vsel %vm495, %v3333, 0
    %3994 = vmatprep.subr.mxu0 0.0
    %3995 = vmatpush1.msra.mxu0 0.0
    %3996 = vmatprep.subr.mxu0 0.0
    %3997 = vmatpush1.msra.mxu0 0.0
    %3998 = vmatprep.subr.mxu0 0.0
    %3999 = vmatpush1.msra.mxu0 0.0
    %4000 = vmatprep.subr.mxu0 0.0
    %4001 = vmatpush1.msra.mxu0 0.0
    %4002 = vmatprep.subr.mxu0 0.0
    %4003 = vmatpush1.msra.mxu0 0.0
    %4004 = vmatprep.subr.mxu0 0.0
    %4005 = vmatpush1.msra.mxu0 0.0
    %4006 = vmatprep.subr.mxu0 0.0
    %4007 = vmatpush1.msra.mxu0 0.0
    %4008 = vmatprep.subr.mxu0 0.0
    %4009 = vmatpush1.msra.mxu0 0.0
    %4010 = vmatprep.subr.mxu0 0.0
    %4011 = vmatpush1.msra.mxu0 0.0
    %4012 = vmatprep.subr.mxu0 0.0
    %4013 = vmatpush1.msra.mxu0 0.0
    %4014 = vmatprep.subr.mxu0 0.0
    %4015 = vmatpush1.msra.mxu0 0.0
    %4016 = vmatprep.subr.mxu0 0.0
    %4017 = vmatpush1.msra.mxu0 0.0
    %4018 = vmatprep.subr.mxu0 0.0
    %4019 = vmatpush1.msra.mxu0 0.0
    %4020 = vmatprep.subr.mxu0 0.0
    %4021 = vmatpush1.msra.mxu0 0.0
    %4022 = vmatprep.subr.mxu0 0.0
    %4023 = vmatpush1.msra.mxu0 0.0
    %4024 = vmatprep.subr.mxu0 0.0
    %4025 = vmatpush1.msra.mxu0 %v3989
    %4026 = vmatprep.subr.mxu0 0.0
    %4027 = vmatpush2.msra.mxu0 0.0
    %4028 = vmatprep.subr.mxu0 0.0
    %4029 = vmatpush2.msra.mxu0 0.0
    %4030 = vmatprep.subr.mxu0 0.0
    %4031 = vmatpush2.msra.mxu0 0.0
    %4032 = vmatprep.subr.mxu0 0.0
    %4033 = vmatpush2.msra.mxu0 0.0
    %4034 = vmatprep.subr.mxu0 0.0
    %4035 = vmatpush2.msra.mxu0 0.0
    %4036 = vmatprep.subr.mxu0 0.0
    %4037 = vmatpush2.msra.mxu0 0.0
    %4038 = vmatprep.subr.mxu0 0.0
    %4039 = vmatpush2.msra.mxu0 0.0
    %4040 = vmatprep.subr.mxu0 0.0
    %4041 = vmatpush2.msra.mxu0 0.0
    %4042 = vmatprep.subr.mxu0 0.0
    %4043 = vmatpush2.msra.mxu0 0.0
    %4044 = vmatprep.subr.mxu0 0.0
    %4045 = vmatpush2.msra.mxu0 0.0
    %4046 = vmatprep.subr.mxu0 0.0
    %4047 = vmatpush2.msra.mxu0 0.0
    %4048 = vmatprep.subr.mxu0 0.0
    %4049 = vmatpush2.msra.mxu0 0.0
    %4050 = vmatprep.subr.mxu0 0.0
    %4051 = vmatpush2.msra.mxu0 0.0
    %4052 = vmatprep.subr.mxu0 0.0
    %4053 = vmatpush2.msra.mxu0 0.0
    %4054 = vmatprep.subr.mxu0 0.0
    %4055 = vmatpush2.msra.mxu0 0.0
    %4056 = vmatprep.subr.mxu0 0.0
    %4057 = vmatpush2.msra.mxu0 0.0
    %4058 = vmatprep.mubr.f32.mxu0 0.0
    %4059 = vmatmul.mubr.f32.gmra.mxu0 %v3992
    %v4060 = vpop.f32.mrf.mxu0
    %v4061 = vadd.f32 0.0, %v4060
    %v4062 = vpop.f32.mrf.mxu0
    %4063 = vdwg.mxu0
    %4064 = vrot.lane.b32.xlu0 %v249, 112
    %v4065 = vpop.permute.xlu0 %4064
    %v4068 = vsel %vm495, %v3335, 0
    %4070 = vmatprep.subr.mxu0 0.0
    %4071 = vmatpush1.msra.mxu0 0.0
    %4072 = vmatprep.subr.mxu0 0.0
    %4073 = vmatpush1.msra.mxu0 0.0
    %4074 = vmatprep.subr.mxu0 0.0
    %4075 = vmatpush1.msra.mxu0 0.0
    %4076 = vmatprep.subr.mxu0 0.0
    %4077 = vmatpush1.msra.mxu0 0.0
    %4078 = vmatprep.subr.mxu0 0.0
    %4079 = vmatpush1.msra.mxu0 0.0
    %4080 = vmatprep.subr.mxu0 0.0
    %4081 = vmatpush1.msra.mxu0 0.0
    %4082 = vmatprep.subr.mxu0 0.0
    %4083 = vmatpush1.msra.mxu0 0.0
    %4084 = vmatprep.subr.mxu0 0.0
    %4085 = vmatpush1.msra.mxu0 0.0
    %4086 = vmatprep.subr.mxu0 0.0
    %4087 = vmatpush1.msra.mxu0 0.0
    %4088 = vmatprep.subr.mxu0 0.0
    %4089 = vmatpush1.msra.mxu0 0.0
    %4090 = vmatprep.subr.mxu0 0.0
    %4091 = vmatpush1.msra.mxu0 0.0
    %4092 = vmatprep.subr.mxu0 0.0
    %4093 = vmatpush1.msra.mxu0 0.0
    %4094 = vmatprep.subr.mxu0 0.0
    %4095 = vmatpush1.msra.mxu0 0.0
    %4096 = vmatprep.subr.mxu0 0.0
    %4097 = vmatpush1.msra.mxu0 0.0
    %4098 = vmatprep.subr.mxu0 0.0
    %4099 = vmatpush1.msra.mxu0 0.0
    %4100 = vmatprep.subr.mxu0 0.0
    %4101 = vmatpush1.msra.mxu0 %v4065
    %4102 = vmatprep.subr.mxu0 0.0
    %4103 = vmatpush2.msra.mxu0 0.0
    %4104 = vmatprep.subr.mxu0 0.0
    %4105 = vmatpush2.msra.mxu0 0.0
    %4106 = vmatprep.subr.mxu0 0.0
    %4107 = vmatpush2.msra.mxu0 0.0
    %4108 = vmatprep.subr.mxu0 0.0
    %4109 = vmatpush2.msra.mxu0 0.0
    %4110 = vmatprep.subr.mxu0 0.0
    %4111 = vmatpush2.msra.mxu0 0.0
    %4112 = vmatprep.subr.mxu0 0.0
    %4113 = vmatpush2.msra.mxu0 0.0
    %4114 = vmatprep.subr.mxu0 0.0
    %4115 = vmatpush2.msra.mxu0 0.0
    %4116 = vmatprep.subr.mxu0 0.0
    %4117 = vmatpush2.msra.mxu0 0.0
    %4118 = vmatprep.subr.mxu0 0.0
    %4119 = vmatpush2.msra.mxu0 0.0
    %4120 = vmatprep.subr.mxu0 0.0
    %4121 = vmatpush2.msra.mxu0 0.0
    %4122 = vmatprep.subr.mxu0 0.0
    %4123 = vmatpush2.msra.mxu0 0.0
    %4124 = vmatprep.subr.mxu0 0.0
    %4125 = vmatpush2.msra.mxu0 0.0
    %4126 = vmatprep.subr.mxu0 0.0
    %4127 = vmatpush2.msra.mxu0 0.0
    %4128 = vmatprep.subr.mxu0 0.0
    %4129 = vmatpush2.msra.mxu0 0.0
    %4130 = vmatprep.subr.mxu0 0.0
    %4131 = vmatpush2.msra.mxu0 0.0
    %4132 = vmatprep.subr.mxu0 0.0
    %4133 = vmatpush2.msra.mxu0 0.0
    %4134 = vmatprep.mubr.f32.mxu0 0.0
    %4135 = vmatmul.mubr.f32.gmra.mxu0 %v4068
    %v4136 = vpop.f32.mrf.mxu0
    %v4137 = vadd.f32 0.0, %v4136
    %v4138 = vpop.f32.mrf.mxu0
    %4139 = vdwg.mxu0
    %4140 = vrot.lane.b32.xlu0 %v254, 112
    %v4141 = vpop.permute.xlu0 %4140
    %v4144 = vsel %vm495, %v3337, 0
    %4146 = vmatprep.subr.mxu0 0.0
    %4147 = vmatpush1.msra.mxu0 0.0
    %4148 = vmatprep.subr.mxu0 0.0
    %4149 = vmatpush1.msra.mxu0 0.0
    %4150 = vmatprep.subr.mxu0 0.0
    %4151 = vmatpush1.msra.mxu0 0.0
    %4152 = vmatprep.subr.mxu0 0.0
    %4153 = vmatpush1.msra.mxu0 0.0
    %4154 = vmatprep.subr.mxu0 0.0
    %4155 = vmatpush1.msra.mxu0 0.0
    %4156 = vmatprep.subr.mxu0 0.0
    %4157 = vmatpush1.msra.mxu0 0.0
    %4158 = vmatprep.subr.mxu0 0.0
    %4159 = vmatpush1.msra.mxu0 0.0
    %4160 = vmatprep.subr.mxu0 0.0
    %4161 = vmatpush1.msra.mxu0 0.0
    %4162 = vmatprep.subr.mxu0 0.0
    %4163 = vmatpush1.msra.mxu0 0.0
    %4164 = vmatprep.subr.mxu0 0.0
    %4165 = vmatpush1.msra.mxu0 0.0
    %4166 = vmatprep.subr.mxu0 0.0
    %4167 = vmatpush1.msra.mxu0 0.0
    %4168 = vmatprep.subr.mxu0 0.0
    %4169 = vmatpush1.msra.mxu0 0.0
    %4170 = vmatprep.subr.mxu0 0.0
    %4171 = vmatpush1.msra.mxu0 0.0
    %4172 = vmatprep.subr.mxu0 0.0
    %4173 = vmatpush1.msra.mxu0 0.0
    %4174 = vmatprep.subr.mxu0 0.0
    %4175 = vmatpush1.msra.mxu0 0.0
    %4176 = vmatprep.subr.mxu0 0.0
    %4177 = vmatpush1.msra.mxu0 %v4141
    %4178 = vmatprep.subr.mxu0 0.0
    %4179 = vmatpush2.msra.mxu0 0.0
    %4180 = vmatprep.subr.mxu0 0.0
    %4181 = vmatpush2.msra.mxu0 0.0
    %4182 = vmatprep.subr.mxu0 0.0
    %4183 = vmatpush2.msra.mxu0 0.0
    %4184 = vmatprep.subr.mxu0 0.0
    %4185 = vmatpush2.msra.mxu0 0.0
    %4186 = vmatprep.subr.mxu0 0.0
    %4187 = vmatpush2.msra.mxu0 0.0
    %4188 = vmatprep.subr.mxu0 0.0
    %4189 = vmatpush2.msra.mxu0 0.0
    %4190 = vmatprep.subr.mxu0 0.0
    %4191 = vmatpush2.msra.mxu0 0.0
    %4192 = vmatprep.subr.mxu0 0.0
    %4193 = vmatpush2.msra.mxu0 0.0
    %4194 = vmatprep.subr.mxu0 0.0
    %4195 = vmatpush2.msra.mxu0 0.0
    %4196 = vmatprep.subr.mxu0 0.0
    %4197 = vmatpush2.msra.mxu0 0.0
    %4198 = vmatprep.subr.mxu0 0.0
    %4199 = vmatpush2.msra.mxu0 0.0
    %4200 = vmatprep.subr.mxu0 0.0
    %4201 = vmatpush2.msra.mxu0 0.0
    %4202 = vmatprep.subr.mxu0 0.0
    %4203 = vmatpush2.msra.mxu0 0.0
    %4204 = vmatprep.subr.mxu0 0.0
    %4205 = vmatpush2.msra.mxu0 0.0
    %4206 = vmatprep.subr.mxu0 0.0
    %4207 = vmatpush2.msra.mxu0 0.0
    %4208 = vmatprep.subr.mxu0 0.0
    %4209 = vmatpush2.msra.mxu0 0.0
    %4210 = vmatprep.mubr.f32.mxu0 0.0
    %4211 = vmatmul.mubr.f32.gmra.mxu0 %v4144
    %v4212 = vpop.f32.mrf.mxu0
    %v4213 = vadd.f32 0.0, %v4212
    %v4214 = vpop.f32.mrf.mxu0
    %4215 = vdwg.mxu0
    %4216 = vrot.lane.b32.xlu0 %v259, 112
    %v4217 = vpop.permute.xlu0 %4216
    %v4220 = vsel %vm495, %v3339, 0
    %4222 = vmatprep.subr.mxu0 0.0
    %4223 = vmatpush1.msra.mxu0 0.0
    %4224 = vmatprep.subr.mxu0 0.0
    %4225 = vmatpush1.msra.mxu0 0.0
    %4226 = vmatprep.subr.mxu0 0.0
    %4227 = vmatpush1.msra.mxu0 0.0
    %4228 = vmatprep.subr.mxu0 0.0
    %4229 = vmatpush1.msra.mxu0 0.0
    %4230 = vmatprep.subr.mxu0 0.0
    %4231 = vmatpush1.msra.mxu0 0.0
    %4232 = vmatprep.subr.mxu0 0.0
    %4233 = vmatpush1.msra.mxu0 0.0
    %4234 = vmatprep.subr.mxu0 0.0
    %4235 = vmatpush1.msra.mxu0 0.0
    %4236 = vmatprep.subr.mxu0 0.0
    %4237 = vmatpush1.msra.mxu0 0.0
    %4238 = vmatprep.subr.mxu0 0.0
    %4239 = vmatpush1.msra.mxu0 0.0
    %4240 = vmatprep.subr.mxu0 0.0
    %4241 = vmatpush1.msra.mxu0 0.0
    %4242 = vmatprep.subr.mxu0 0.0
    %4243 = vmatpush1.msra.mxu0 0.0
    %4244 = vmatprep.subr.mxu0 0.0
    %4245 = vmatpush1.msra.mxu0 0.0
    %4246 = vmatprep.subr.mxu0 0.0
    %4247 = vmatpush1.msra.mxu0 0.0
    %4248 = vmatprep.subr.mxu0 0.0
    %4249 = vmatpush1.msra.mxu0 0.0
    %4250 = vmatprep.subr.mxu0 0.0
    %4251 = vmatpush1.msra.mxu0 0.0
    %4252 = vmatprep.subr.mxu0 0.0
    %4253 = vmatpush1.msra.mxu0 %v4217
    %4254 = vmatprep.subr.mxu0 0.0
    %4255 = vmatpush2.msra.mxu0 0.0
    %4256 = vmatprep.subr.mxu0 0.0
    %4257 = vmatpush2.msra.mxu0 0.0
    %4258 = vmatprep.subr.mxu0 0.0
    %4259 = vmatpush2.msra.mxu0 0.0
    %4260 = vmatprep.subr.mxu0 0.0
    %4261 = vmatpush2.msra.mxu0 0.0
    %4262 = vmatprep.subr.mxu0 0.0
    %4263 = vmatpush2.msra.mxu0 0.0
    %4264 = vmatprep.subr.mxu0 0.0
    %4265 = vmatpush2.msra.mxu0 0.0
    %4266 = vmatprep.subr.mxu0 0.0
    %4267 = vmatpush2.msra.mxu0 0.0
    %4268 = vmatprep.subr.mxu0 0.0
    %4269 = vmatpush2.msra.mxu0 0.0
    %4270 = vmatprep.subr.mxu0 0.0
    %4271 = vmatpush2.msra.mxu0 0.0
    %4272 = vmatprep.subr.mxu0 0.0
    %4273 = vmatpush2.msra.mxu0 0.0
    %4274 = vmatprep.subr.mxu0 0.0
    %4275 = vmatpush2.msra.mxu0 0.0
    %4276 = vmatprep.subr.mxu0 0.0
    %4277 = vmatpush2.msra.mxu0 0.0
    %4278 = vmatprep.subr.mxu0 0.0
    %4279 = vmatpush2.msra.mxu0 0.0
    %4280 = vmatprep.subr.mxu0 0.0
    %4281 = vmatpush2.msra.mxu0 0.0
    %4282 = vmatprep.subr.mxu0 0.0
    %4283 = vmatpush2.msra.mxu0 0.0
    %4284 = vmatprep.subr.mxu0 0.0
    %4285 = vmatpush2.msra.mxu0 0.0
    %4286 = vmatprep.mubr.f32.mxu0 0.0
    %4287 = vmatmul.mubr.f32.gmra.mxu0 %v4220
    %v4288 = vpop.f32.mrf.mxu0
    %v4289 = vadd.f32 0.0, %v4288
    %v4290 = vpop.f32.mrf.mxu0
    %4291 = vdwg.mxu0
    %4292 = vrot.lane.b32.xlu0 %v264, 112
    %v4293 = vpop.permute.xlu0 %4292
    %v4296 = vsel %vm495, %v3341, 0
    %4298 = vmatprep.subr.mxu0 0.0
    %4299 = vmatpush1.msra.mxu0 0.0
    %4300 = vmatprep.subr.mxu0 0.0
    %4301 = vmatpush1.msra.mxu0 0.0
    %4302 = vmatprep.subr.mxu0 0.0
    %4303 = vmatpush1.msra.mxu0 0.0
    %4304 = vmatprep.subr.mxu0 0.0
    %4305 = vmatpush1.msra.mxu0 0.0
    %4306 = vmatprep.subr.mxu0 0.0
    %4307 = vmatpush1.msra.mxu0 0.0
    %4308 = vmatprep.subr.mxu0 0.0
    %4309 = vmatpush1.msra.mxu0 0.0
    %4310 = vmatprep.subr.mxu0 0.0
    %4311 = vmatpush1.msra.mxu0 0.0
    %4312 = vmatprep.subr.mxu0 0.0
    %4313 = vmatpush1.msra.mxu0 0.0
    %4314 = vmatprep.subr.mxu0 0.0
    %4315 = vmatpush1.msra.mxu0 0.0
    %4316 = vmatprep.subr.mxu0 0.0
    %4317 = vmatpush1.msra.mxu0 0.0
    %4318 = vmatprep.subr.mxu0 0.0
    %4319 = vmatpush1.msra.mxu0 0.0
    %4320 = vmatprep.subr.mxu0 0.0
    %4321 = vmatpush1.msra.mxu0 0.0
    %4322 = vmatprep.subr.mxu0 0.0
    %4323 = vmatpush1.msra.mxu0 0.0
    %4324 = vmatprep.subr.mxu0 0.0
    %4325 = vmatpush1.msra.mxu0 0.0
    %4326 = vmatprep.subr.mxu0 0.0
    %4327 = vmatpush1.msra.mxu0 0.0
    %4328 = vmatprep.subr.mxu0 0.0
    %4329 = vmatpush1.msra.mxu0 %v4293
    %4330 = vmatprep.subr.mxu0 0.0
    %4331 = vmatpush2.msra.mxu0 0.0
    %4332 = vmatprep.subr.mxu0 0.0
    %4333 = vmatpush2.msra.mxu0 0.0
    %4334 = vmatprep.subr.mxu0 0.0
    %4335 = vmatpush2.msra.mxu0 0.0
    %4336 = vmatprep.subr.mxu0 0.0
    %4337 = vmatpush2.msra.mxu0 0.0
    %4338 = vmatprep.subr.mxu0 0.0
    %4339 = vmatpush2.msra.mxu0 0.0
    %4340 = vmatprep.subr.mxu0 0.0
    %4341 = vmatpush2.msra.mxu0 0.0
    %4342 = vmatprep.subr.mxu0 0.0
    %4343 = vmatpush2.msra.mxu0 0.0
    %4344 = vmatprep.subr.mxu0 0.0
    %4345 = vmatpush2.msra.mxu0 0.0
    %4346 = vmatprep.subr.mxu0 0.0
    %4347 = vmatpush2.msra.mxu0 0.0
    %4348 = vmatprep.subr.mxu0 0.0
    %4349 = vmatpush2.msra.mxu0 0.0
    %4350 = vmatprep.subr.mxu0 0.0
    %4351 = vmatpush2.msra.mxu0 0.0
    %4352 = vmatprep.subr.mxu0 0.0
    %4353 = vmatpush2.msra.mxu0 0.0
    %4354 = vmatprep.subr.mxu0 0.0
    %4355 = vmatpush2.msra.mxu0 0.0
    %4356 = vmatprep.subr.mxu0 0.0
    %4357 = vmatpush2.msra.mxu0 0.0
    %4358 = vmatprep.subr.mxu0 0.0
    %4359 = vmatpush2.msra.mxu0 0.0
    %4360 = vmatprep.subr.mxu0 0.0
    %4361 = vmatpush2.msra.mxu0 0.0
    %4362 = vmatprep.mubr.f32.mxu0 0.0
    %4363 = vmatmul.mubr.f32.gmra.mxu0 %v4296
    %v4364 = vpop.f32.mrf.mxu0
    %v4365 = vadd.f32 0.0, %v4364
    %v4366 = vpop.f32.mrf.mxu0
    %4367 = vdwg.mxu0
    %4368 = vrot.lane.b32.xlu0 %v269, 112
    %v4369 = vpop.permute.xlu0 %4368
    %v4372 = vsel %vm495, %v3343, 0
    %4374 = vmatprep.subr.mxu0 0.0
    %4375 = vmatpush1.msra.mxu0 0.0
    %4376 = vmatprep.subr.mxu0 0.0
    %4377 = vmatpush1.msra.mxu0 0.0
    %4378 = vmatprep.subr.mxu0 0.0
    %4379 = vmatpush1.msra.mxu0 0.0
    %4380 = vmatprep.subr.mxu0 0.0
    %4381 = vmatpush1.msra.mxu0 0.0
    %4382 = vmatprep.subr.mxu0 0.0
    %4383 = vmatpush1.msra.mxu0 0.0
    %4384 = vmatprep.subr.mxu0 0.0
    %4385 = vmatpush1.msra.mxu0 0.0
    %4386 = vmatprep.subr.mxu0 0.0
    %4387 = vmatpush1.msra.mxu0 0.0
    %4388 = vmatprep.subr.mxu0 0.0
    %4389 = vmatpush1.msra.mxu0 0.0
    %4390 = vmatprep.subr.mxu0 0.0
    %4391 = vmatpush1.msra.mxu0 0.0
    %4392 = vmatprep.subr.mxu0 0.0
    %4393 = vmatpush1.msra.mxu0 0.0
    %4394 = vmatprep.subr.mxu0 0.0
    %4395 = vmatpush1.msra.mxu0 0.0
    %4396 = vmatprep.subr.mxu0 0.0
    %4397 = vmatpush1.msra.mxu0 0.0
    %4398 = vmatprep.subr.mxu0 0.0
    %4399 = vmatpush1.msra.mxu0 0.0
    %4400 = vmatprep.subr.mxu0 0.0
    %4401 = vmatpush1.msra.mxu0 0.0
    %4402 = vmatprep.subr.mxu0 0.0
    %4403 = vmatpush1.msra.mxu0 0.0
    %4404 = vmatprep.subr.mxu0 0.0
    %4405 = vmatpush1.msra.mxu0 %v4369
    %4406 = vmatprep.subr.mxu0 0.0
    %4407 = vmatpush2.msra.mxu0 0.0
    %4408 = vmatprep.subr.mxu0 0.0
    %4409 = vmatpush2.msra.mxu0 0.0
    %4410 = vmatprep.subr.mxu0 0.0
    %4411 = vmatpush2.msra.mxu0 0.0
    %4412 = vmatprep.subr.mxu0 0.0
    %4413 = vmatpush2.msra.mxu0 0.0
    %4414 = vmatprep.subr.mxu0 0.0
    %4415 = vmatpush2.msra.mxu0 0.0
    %4416 = vmatprep.subr.mxu0 0.0
    %4417 = vmatpush2.msra.mxu0 0.0
    %4418 = vmatprep.subr.mxu0 0.0
    %4419 = vmatpush2.msra.mxu0 0.0
    %4420 = vmatprep.subr.mxu0 0.0
    %4421 = vmatpush2.msra.mxu0 0.0
    %4422 = vmatprep.subr.mxu0 0.0
    %4423 = vmatpush2.msra.mxu0 0.0
    %4424 = vmatprep.subr.mxu0 0.0
    %4425 = vmatpush2.msra.mxu0 0.0
    %4426 = vmatprep.subr.mxu0 0.0
    %4427 = vmatpush2.msra.mxu0 0.0
    %4428 = vmatprep.subr.mxu0 0.0
    %4429 = vmatpush2.msra.mxu0 0.0
    %4430 = vmatprep.subr.mxu0 0.0
    %4431 = vmatpush2.msra.mxu0 0.0
    %4432 = vmatprep.subr.mxu0 0.0
    %4433 = vmatpush2.msra.mxu0 0.0
    %4434 = vmatprep.subr.mxu0 0.0
    %4435 = vmatpush2.msra.mxu0 0.0
    %4436 = vmatprep.subr.mxu0 0.0
    %4437 = vmatpush2.msra.mxu0 0.0
    %4438 = vmatprep.mubr.f32.mxu0 0.0
    %4439 = vmatmul.mubr.f32.gmra.mxu0 %v4372
    %v4440 = vpop.f32.mrf.mxu0
    %v4441 = vadd.f32 0.0, %v4440
    %v4442 = vpop.f32.mrf.mxu0
    %4443 = vdwg.mxu0
    %4444 = vrot.lane.b32.xlu0 %v274, 112
    %v4445 = vpop.permute.xlu0 %4444
    %v4448 = vsel %vm495, %v3345, 0
    %4450 = vmatprep.subr.mxu0 0.0
    %4451 = vmatpush1.msra.mxu0 0.0
    %4452 = vmatprep.subr.mxu0 0.0
    %4453 = vmatpush1.msra.mxu0 0.0
    %4454 = vmatprep.subr.mxu0 0.0
    %4455 = vmatpush1.msra.mxu0 0.0
    %4456 = vmatprep.subr.mxu0 0.0
    %4457 = vmatpush1.msra.mxu0 0.0
    %4458 = vmatprep.subr.mxu0 0.0
    %4459 = vmatpush1.msra.mxu0 0.0
    %4460 = vmatprep.subr.mxu0 0.0
    %4461 = vmatpush1.msra.mxu0 0.0
    %4462 = vmatprep.subr.mxu0 0.0
    %4463 = vmatpush1.msra.mxu0 0.0
    %4464 = vmatprep.subr.mxu0 0.0
    %4465 = vmatpush1.msra.mxu0 0.0
    %4466 = vmatprep.subr.mxu0 0.0
    %4467 = vmatpush1.msra.mxu0 0.0
    %4468 = vmatprep.subr.mxu0 0.0
    %4469 = vmatpush1.msra.mxu0 0.0
    %4470 = vmatprep.subr.mxu0 0.0
    %4471 = vmatpush1.msra.mxu0 0.0
    %4472 = vmatprep.subr.mxu0 0.0
    %4473 = vmatpush1.msra.mxu0 0.0
    %4474 = vmatprep.subr.mxu0 0.0
    %4475 = vmatpush1.msra.mxu0 0.0
    %4476 = vmatprep.subr.mxu0 0.0
    %4477 = vmatpush1.msra.mxu0 0.0
    %4478 = vmatprep.subr.mxu0 0.0
    %4479 = vmatpush1.msra.mxu0 0.0
    %4480 = vmatprep.subr.mxu0 0.0
    %4481 = vmatpush1.msra.mxu0 %v4445
    %4482 = vmatprep.subr.mxu0 0.0
    %4483 = vmatpush2.msra.mxu0 0.0
    %4484 = vmatprep.subr.mxu0 0.0
    %4485 = vmatpush2.msra.mxu0 0.0
    %4486 = vmatprep.subr.mxu0 0.0
    %4487 = vmatpush2.msra.mxu0 0.0
    %4488 = vmatprep.subr.mxu0 0.0
    %4489 = vmatpush2.msra.mxu0 0.0
    %4490 = vmatprep.subr.mxu0 0.0
    %4491 = vmatpush2.msra.mxu0 0.0
    %4492 = vmatprep.subr.mxu0 0.0
    %4493 = vmatpush2.msra.mxu0 0.0
    %4494 = vmatprep.subr.mxu0 0.0
    %4495 = vmatpush2.msra.mxu0 0.0
    %4496 = vmatprep.subr.mxu0 0.0
    %4497 = vmatpush2.msra.mxu0 0.0
    %4498 = vmatprep.subr.mxu0 0.0
    %4499 = vmatpush2.msra.mxu0 0.0
    %4500 = vmatprep.subr.mxu0 0.0
    %4501 = vmatpush2.msra.mxu0 0.0
    %4502 = vmatprep.subr.mxu0 0.0
    %4503 = vmatpush2.msra.mxu0 0.0
    %4504 = vmatprep.subr.mxu0 0.0
    %4505 = vmatpush2.msra.mxu0 0.0
    %4506 = vmatprep.subr.mxu0 0.0
    %4507 = vmatpush2.msra.mxu0 0.0
    %4508 = vmatprep.subr.mxu0 0.0
    %4509 = vmatpush2.msra.mxu0 0.0
    %4510 = vmatprep.subr.mxu0 0.0
    %4511 = vmatpush2.msra.mxu0 0.0
    %4512 = vmatprep.subr.mxu0 0.0
    %4513 = vmatpush2.msra.mxu0 0.0
    %4514 = vmatprep.mubr.f32.mxu0 0.0
    %4515 = vmatmul.mubr.f32.gmra.mxu0 %v4448
    %v4516 = vpop.f32.mrf.mxu0
    %v4517 = vadd.f32 0.0, %v4516
    %v4518 = vpop.f32.mrf.mxu0
    %4519 = vdwg.mxu0
    %4520 = vrot.lane.b32.xlu0 %v279, 112
    %v4521 = vpop.permute.xlu0 %4520
    %v4524 = vsel %vm495, %v3347, 0
    %4526 = vmatprep.subr.mxu0 0.0
    %4527 = vmatpush1.msra.mxu0 0.0
    %4528 = vmatprep.subr.mxu0 0.0
    %4529 = vmatpush1.msra.mxu0 0.0
    %4530 = vmatprep.subr.mxu0 0.0
    %4531 = vmatpush1.msra.mxu0 0.0
    %4532 = vmatprep.subr.mxu0 0.0
    %4533 = vmatpush1.msra.mxu0 0.0
    %4534 = vmatprep.subr.mxu0 0.0
    %4535 = vmatpush1.msra.mxu0 0.0
    %4536 = vmatprep.subr.mxu0 0.0
    %4537 = vmatpush1.msra.mxu0 0.0
    %4538 = vmatprep.subr.mxu0 0.0
    %4539 = vmatpush1.msra.mxu0 0.0
    %4540 = vmatprep.subr.mxu0 0.0
    %4541 = vmatpush1.msra.mxu0 0.0
    %4542 = vmatprep.subr.mxu0 0.0
    %4543 = vmatpush1.msra.mxu0 0.0
    %4544 = vmatprep.subr.mxu0 0.0
    %4545 = vmatpush1.msra.mxu0 0.0
    %4546 = vmatprep.subr.mxu0 0.0
    %4547 = vmatpush1.msra.mxu0 0.0
    %4548 = vmatprep.subr.mxu0 0.0
    %4549 = vmatpush1.msra.mxu0 0.0
    %4550 = vmatprep.subr.mxu0 0.0
    %4551 = vmatpush1.msra.mxu0 0.0
    %4552 = vmatprep.subr.mxu0 0.0
    %4553 = vmatpush1.msra.mxu0 0.0
    %4554 = vmatprep.subr.mxu0 0.0
    %4555 = vmatpush1.msra.mxu0 0.0
    %4556 = vmatprep.subr.mxu0 0.0
    %4557 = vmatpush1.msra.mxu0 %v4521
    %4558 = vmatprep.subr.mxu0 0.0
    %4559 = vmatpush2.msra.mxu0 0.0
    %4560 = vmatprep.subr.mxu0 0.0
    %4561 = vmatpush2.msra.mxu0 0.0
    %4562 = vmatprep.subr.mxu0 0.0
    %4563 = vmatpush2.msra.mxu0 0.0
    %4564 = vmatprep.subr.mxu0 0.0
    %4565 = vmatpush2.msra.mxu0 0.0
    %4566 = vmatprep.subr.mxu0 0.0
    %4567 = vmatpush2.msra.mxu0 0.0
    %4568 = vmatprep.subr.mxu0 0.0
    %4569 = vmatpush2.msra.mxu0 0.0
    %4570 = vmatprep.subr.mxu0 0.0
    %4571 = vmatpush2.msra.mxu0 0.0
    %4572 = vmatprep.subr.mxu0 0.0
    %4573 = vmatpush2.msra.mxu0 0.0
    %4574 = vmatprep.subr.mxu0 0.0
    %4575 = vmatpush2.msra.mxu0 0.0
    %4576 = vmatprep.subr.mxu0 0.0
    %4577 = vmatpush2.msra.mxu0 0.0
    %4578 = vmatprep.subr.mxu0 0.0
    %4579 = vmatpush2.msra.mxu0 0.0
    %4580 = vmatprep.subr.mxu0 0.0
    %4581 = vmatpush2.msra.mxu0 0.0
    %4582 = vmatprep.subr.mxu0 0.0
    %4583 = vmatpush2.msra.mxu0 0.0
    %4584 = vmatprep.subr.mxu0 0.0
    %4585 = vmatpush2.msra.mxu0 0.0
    %4586 = vmatprep.subr.mxu0 0.0
    %4587 = vmatpush2.msra.mxu0 0.0
    %4588 = vmatprep.subr.mxu0 0.0
    %4589 = vmatpush2.msra.mxu0 0.0
    %4590 = vmatprep.mubr.f32.mxu0 0.0
    %4591 = vmatmul.mubr.f32.gmra.mxu0 %v4524
    %v4592 = vpop.f32.mrf.mxu0
    %v4593 = vadd.f32 0.0, %v4592
    %v4594 = vpop.f32.mrf.mxu0
    %4595 = vdwg.mxu0
    %4596 = vrot.lane.b32.xlu0 %v349, 112
    %v4597 = vpop.permute.xlu0 %4596
    %v4600 = vsel %vm495, %v3349, 0
    %4602 = vmatprep.subr.mxu0 0.0
    %4603 = vmatpush1.msra.mxu0 0.0
    %4604 = vmatprep.subr.mxu0 0.0
    %4605 = vmatpush1.msra.mxu0 0.0
    %4606 = vmatprep.subr.mxu0 0.0
    %4607 = vmatpush1.msra.mxu0 0.0
    %4608 = vmatprep.subr.mxu0 0.0
    %4609 = vmatpush1.msra.mxu0 0.0
    %4610 = vmatprep.subr.mxu0 0.0
    %4611 = vmatpush1.msra.mxu0 0.0
    %4612 = vmatprep.subr.mxu0 0.0
    %4613 = vmatpush1.msra.mxu0 0.0
    %4614 = vmatprep.subr.mxu0 0.0
    %4615 = vmatpush1.msra.mxu0 0.0
    %4616 = vmatprep.subr.mxu0 0.0
    %4617 = vmatpush1.msra.mxu0 0.0
    %4618 = vmatprep.subr.mxu0 0.0
    %4619 = vmatpush1.msra.mxu0 0.0
    %4620 = vmatprep.subr.mxu0 0.0
    %4621 = vmatpush1.msra.mxu0 0.0
    %4622 = vmatprep.subr.mxu0 0.0
    %4623 = vmatpush1.msra.mxu0 0.0
    %4624 = vmatprep.subr.mxu0 0.0
    %4625 = vmatpush1.msra.mxu0 0.0
    %4626 = vmatprep.subr.mxu0 0.0
    %4627 = vmatpush1.msra.mxu0 0.0
    %4628 = vmatprep.subr.mxu0 0.0
    %4629 = vmatpush1.msra.mxu0 0.0
    %4630 = vmatprep.subr.mxu0 0.0
    %4631 = vmatpush1.msra.mxu0 0.0
    %4632 = vmatprep.subr.mxu0 0.0
    %4633 = vmatpush1.msra.mxu0 %v4597
    %4634 = vmatprep.subr.mxu0 0.0
    %4635 = vmatpush2.msra.mxu0 0.0
    %4636 = vmatprep.subr.mxu0 0.0
    %4637 = vmatpush2.msra.mxu0 0.0
    %4638 = vmatprep.subr.mxu0 0.0
    %4639 = vmatpush2.msra.mxu0 0.0
    %4640 = vmatprep.subr.mxu0 0.0
    %4641 = vmatpush2.msra.mxu0 0.0
    %4642 = vmatprep.subr.mxu0 0.0
    %4643 = vmatpush2.msra.mxu0 0.0
    %4644 = vmatprep.subr.mxu0 0.0
    %4645 = vmatpush2.msra.mxu0 0.0
    %4646 = vmatprep.subr.mxu0 0.0
    %4647 = vmatpush2.msra.mxu0 0.0
    %4648 = vmatprep.subr.mxu0 0.0
    %4649 = vmatpush2.msra.mxu0 0.0
    %4650 = vmatprep.subr.mxu0 0.0
    %4651 = vmatpush2.msra.mxu0 0.0
    %4652 = vmatprep.subr.mxu0 0.0
    %4653 = vmatpush2.msra.mxu0 0.0
    %4654 = vmatprep.subr.mxu0 0.0
    %4655 = vmatpush2.msra.mxu0 0.0
    %4656 = vmatprep.subr.mxu0 0.0
    %4657 = vmatpush2.msra.mxu0 0.0
    %4658 = vmatprep.subr.mxu0 0.0
    %4659 = vmatpush2.msra.mxu0 0.0
    %4660 = vmatprep.subr.mxu0 0.0
    %4661 = vmatpush2.msra.mxu0 0.0
    %4662 = vmatprep.subr.mxu0 0.0
    %4663 = vmatpush2.msra.mxu0 0.0
    %4664 = vmatprep.subr.mxu0 0.0
    %4665 = vmatpush2.msra.mxu0 0.0
    %4666 = vmatprep.mubr.f32.mxu0 0.0
    %4667 = vmatmul.mubr.f32.gmra.mxu0 %v4600
    %v4668 = vpop.f32.mrf.mxu0
    %v4669 = vadd.f32 0.0, %v4668
    %v4670 = vpop.f32.mrf.mxu0
    %4671 = vdwg.mxu0
    %4672 = vrot.lane.b32.xlu0 %v354, 112
    %v4673 = vpop.permute.xlu0 %4672
    %v4676 = vsel %vm495, %v3351, 0
    %4678 = vmatprep.subr.mxu0 0.0
    %4679 = vmatpush1.msra.mxu0 0.0
    %4680 = vmatprep.subr.mxu0 0.0
    %4681 = vmatpush1.msra.mxu0 0.0
    %4682 = vmatprep.subr.mxu0 0.0
    %4683 = vmatpush1.msra.mxu0 0.0
    %4684 = vmatprep.subr.mxu0 0.0
    %4685 = vmatpush1.msra.mxu0 0.0
    %4686 = vmatprep.subr.mxu0 0.0
    %4687 = vmatpush1.msra.mxu0 0.0
    %4688 = vmatprep.subr.mxu0 0.0
    %4689 = vmatpush1.msra.mxu0 0.0
    %4690 = vmatprep.subr.mxu0 0.0
    %4691 = vmatpush1.msra.mxu0 0.0
    %4692 = vmatprep.subr.mxu0 0.0
    %4693 = vmatpush1.msra.mxu0 0.0
    %4694 = vmatprep.subr.mxu0 0.0
    %4695 = vmatpush1.msra.mxu0 0.0
    %4696 = vmatprep.subr.mxu0 0.0
    %4697 = vmatpush1.msra.mxu0 0.0
    %4698 = vmatprep.subr.mxu0 0.0
    %4699 = vmatpush1.msra.mxu0 0.0
    %4700 = vmatprep.subr.mxu0 0.0
    %4701 = vmatpush1.msra.mxu0 0.0
    %4702 = vmatprep.subr.mxu0 0.0
    %4703 = vmatpush1.msra.mxu0 0.0
    %4704 = vmatprep.subr.mxu0 0.0
    %4705 = vmatpush1.msra.mxu0 0.0
    %4706 = vmatprep.subr.mxu0 0.0
    %4707 = vmatpush1.msra.mxu0 0.0
    %4708 = vmatprep.subr.mxu0 0.0
    %4709 = vmatpush1.msra.mxu0 %v4673
    %4710 = vmatprep.subr.mxu0 0.0
    %4711 = vmatpush2.msra.mxu0 0.0
    %4712 = vmatprep.subr.mxu0 0.0
    %4713 = vmatpush2.msra.mxu0 0.0
    %4714 = vmatprep.subr.mxu0 0.0
    %4715 = vmatpush2.msra.mxu0 0.0
    %4716 = vmatprep.subr.mxu0 0.0
    %4717 = vmatpush2.msra.mxu0 0.0
    %4718 = vmatprep.subr.mxu0 0.0
    %4719 = vmatpush2.msra.mxu0 0.0
    %4720 = vmatprep.subr.mxu0 0.0
    %4721 = vmatpush2.msra.mxu0 0.0
    %4722 = vmatprep.subr.mxu0 0.0
    %4723 = vmatpush2.msra.mxu0 0.0
    %4724 = vmatprep.subr.mxu0 0.0
    %4725 = vmatpush2.msra.mxu0 0.0
    %4726 = vmatprep.subr.mxu0 0.0
    %4727 = vmatpush2.msra.mxu0 0.0
    %4728 = vmatprep.subr.mxu0 0.0
    %4729 = vmatpush2.msra.mxu0 0.0
    %4730 = vmatprep.subr.mxu0 0.0
    %4731 = vmatpush2.msra.mxu0 0.0
    %4732 = vmatprep.subr.mxu0 0.0
    %4733 = vmatpush2.msra.mxu0 0.0
    %4734 = vmatprep.subr.mxu0 0.0
    %4735 = vmatpush2.msra.mxu0 0.0
    %4736 = vmatprep.subr.mxu0 0.0
    %4737 = vmatpush2.msra.mxu0 0.0
    %4738 = vmatprep.subr.mxu0 0.0
    %4739 = vmatpush2.msra.mxu0 0.0
    %4740 = vmatprep.subr.mxu0 0.0
    %4741 = vmatpush2.msra.mxu0 0.0
    %4742 = vmatprep.mubr.f32.mxu0 0.0
    %4743 = vmatmul.mubr.f32.gmra.mxu0 %v4676
    %v4744 = vpop.f32.mrf.mxu0
    %v4745 = vadd.f32 0.0, %v4744
    %v4746 = vpop.f32.mrf.mxu0
    %4747 = vdwg.mxu0
    %4748 = vrot.lane.b32.xlu0 %v359, 112
    %v4749 = vpop.permute.xlu0 %4748
    %v4752 = vsel %vm495, %v3353, 0
    %4754 = vmatprep.subr.mxu0 0.0
    %4755 = vmatpush1.msra.mxu0 0.0
    %4756 = vmatprep.subr.mxu0 0.0
    %4757 = vmatpush1.msra.mxu0 0.0
    %4758 = vmatprep.subr.mxu0 0.0
    %4759 = vmatpush1.msra.mxu0 0.0
    %4760 = vmatprep.subr.mxu0 0.0
    %4761 = vmatpush1.msra.mxu0 0.0
    %4762 = vmatprep.subr.mxu0 0.0
    %4763 = vmatpush1.msra.mxu0 0.0
    %4764 = vmatprep.subr.mxu0 0.0
    %4765 = vmatpush1.msra.mxu0 0.0
    %4766 = vmatprep.subr.mxu0 0.0
    %4767 = vmatpush1.msra.mxu0 0.0
    %4768 = vmatprep.subr.mxu0 0.0
    %4769 = vmatpush1.msra.mxu0 0.0
    %4770 = vmatprep.subr.mxu0 0.0
    %4771 = vmatpush1.msra.mxu0 0.0
    %4772 = vmatprep.subr.mxu0 0.0
    %4773 = vmatpush1.msra.mxu0 0.0
    %4774 = vmatprep.subr.mxu0 0.0
    %4775 = vmatpush1.msra.mxu0 0.0
    %4776 = vmatprep.subr.mxu0 0.0
    %4777 = vmatpush1.msra.mxu0 0.0
    %4778 = vmatprep.subr.mxu0 0.0
    %4779 = vmatpush1.msra.mxu0 0.0
    %4780 = vmatprep.subr.mxu0 0.0
    %4781 = vmatpush1.msra.mxu0 0.0
    %4782 = vmatprep.subr.mxu0 0.0
    %4783 = vmatpush1.msra.mxu0 0.0
    %4784 = vmatprep.subr.mxu0 0.0
    %4785 = vmatpush1.msra.mxu0 %v4749
    %4786 = vmatprep.subr.mxu0 0.0
    %4787 = vmatpush2.msra.mxu0 0.0
    %4788 = vmatprep.subr.mxu0 0.0
    %4789 = vmatpush2.msra.mxu0 0.0
    %4790 = vmatprep.subr.mxu0 0.0
    %4791 = vmatpush2.msra.mxu0 0.0
    %4792 = vmatprep.subr.mxu0 0.0
    %4793 = vmatpush2.msra.mxu0 0.0
    %4794 = vmatprep.subr.mxu0 0.0
    %4795 = vmatpush2.msra.mxu0 0.0
    %4796 = vmatprep.subr.mxu0 0.0
    %4797 = vmatpush2.msra.mxu0 0.0
    %4798 = vmatprep.subr.mxu0 0.0
    %4799 = vmatpush2.msra.mxu0 0.0
    %4800 = vmatprep.subr.mxu0 0.0
    %4801 = vmatpush2.msra.mxu0 0.0
    %4802 = vmatprep.subr.mxu0 0.0
    %4803 = vmatpush2.msra.mxu0 0.0
    %4804 = vmatprep.subr.mxu0 0.0
    %4805 = vmatpush2.msra.mxu0 0.0
    %4806 = vmatprep.subr.mxu0 0.0
    %4807 = vmatpush2.msra.mxu0 0.0
    %4808 = vmatprep.subr.mxu0 0.0
    %4809 = vmatpush2.msra.mxu0 0.0
    %4810 = vmatprep.subr.mxu0 0.0
    %4811 = vmatpush2.msra.mxu0 0.0
    %4812 = vmatprep.subr.mxu0 0.0
    %4813 = vmatpush2.msra.mxu0 0.0
    %4814 = vmatprep.subr.mxu0 0.0
    %4815 = vmatpush2.msra.mxu0 0.0
    %4816 = vmatprep.subr.mxu0 0.0
    %4817 = vmatpush2.msra.mxu0 0.0
    %4818 = vmatprep.mubr.f32.mxu0 0.0
    %4819 = vmatmul.mubr.f32.gmra.mxu0 %v4752
    %v4820 = vpop.f32.mrf.mxu0
    %v4821 = vadd.f32 0.0, %v4820
    %v4822 = vpop.f32.mrf.mxu0
    %4823 = vdwg.mxu0
    %4824 = vrot.lane.b32.xlu0 %v364, 112
    %v4825 = vpop.permute.xlu0 %4824
    %v4828 = vsel %vm495, %v3355, 0
    %4830 = vmatprep.subr.mxu0 0.0
    %4831 = vmatpush1.msra.mxu0 0.0
    %4832 = vmatprep.subr.mxu0 0.0
    %4833 = vmatpush1.msra.mxu0 0.0
    %4834 = vmatprep.subr.mxu0 0.0
    %4835 = vmatpush1.msra.mxu0 0.0
    %4836 = vmatprep.subr.mxu0 0.0
    %4837 = vmatpush1.msra.mxu0 0.0
    %4838 = vmatprep.subr.mxu0 0.0
    %4839 = vmatpush1.msra.mxu0 0.0
    %4840 = vmatprep.subr.mxu0 0.0
    %4841 = vmatpush1.msra.mxu0 0.0
    %4842 = vmatprep.subr.mxu0 0.0
    %4843 = vmatpush1.msra.mxu0 0.0
    %4844 = vmatprep.subr.mxu0 0.0
    %4845 = vmatpush1.msra.mxu0 0.0
    %4846 = vmatprep.subr.mxu0 0.0
    %4847 = vmatpush1.msra.mxu0 0.0
    %4848 = vmatprep.subr.mxu0 0.0
    %4849 = vmatpush1.msra.mxu0 0.0
    %4850 = vmatprep.subr.mxu0 0.0
    %4851 = vmatpush1.msra.mxu0 0.0
    %4852 = vmatprep.subr.mxu0 0.0
    %4853 = vmatpush1.msra.mxu0 0.0
    %4854 = vmatprep.subr.mxu0 0.0
    %4855 = vmatpush1.msra.mxu0 0.0
    %4856 = vmatprep.subr.mxu0 0.0
    %4857 = vmatpush1.msra.mxu0 0.0
    %4858 = vmatprep.subr.mxu0 0.0
    %4859 = vmatpush1.msra.mxu0 0.0
    %4860 = vmatprep.subr.mxu0 0.0
    %4861 = vmatpush1.msra.mxu0 %v4825
    %4862 = vmatprep.subr.mxu0 0.0
    %4863 = vmatpush2.msra.mxu0 0.0
    %4864 = vmatprep.subr.mxu0 0.0
    %4865 = vmatpush2.msra.mxu0 0.0
    %4866 = vmatprep.subr.mxu0 0.0
    %4867 = vmatpush2.msra.mxu0 0.0
    %4868 = vmatprep.subr.mxu0 0.0
    %4869 = vmatpush2.msra.mxu0 0.0
    %4870 = vmatprep.subr.mxu0 0.0
    %4871 = vmatpush2.msra.mxu0 0.0
    %4872 = vmatprep.subr.mxu0 0.0
    %4873 = vmatpush2.msra.mxu0 0.0
    %4874 = vmatprep.subr.mxu0 0.0
    %4875 = vmatpush2.msra.mxu0 0.0
    %4876 = vmatprep.subr.mxu0 0.0
    %4877 = vmatpush2.msra.mxu0 0.0
    %4878 = vmatprep.subr.mxu0 0.0
    %4879 = vmatpush2.msra.mxu0 0.0
    %4880 = vmatprep.subr.mxu0 0.0
    %4881 = vmatpush2.msra.mxu0 0.0
    %4882 = vmatprep.subr.mxu0 0.0
    %4883 = vmatpush2.msra.mxu0 0.0
    %4884 = vmatprep.subr.mxu0 0.0
    %4885 = vmatpush2.msra.mxu0 0.0
    %4886 = vmatprep.subr.mxu0 0.0
    %4887 = vmatpush2.msra.mxu0 0.0
    %4888 = vmatprep.subr.mxu0 0.0
    %4889 = vmatpush2.msra.mxu0 0.0
    %4890 = vmatprep.subr.mxu0 0.0
    %4891 = vmatpush2.msra.mxu0 0.0
    %4892 = vmatprep.subr.mxu0 0.0
    %4893 = vmatpush2.msra.mxu0 0.0
    %4894 = vmatprep.mubr.f32.mxu0 0.0
    %4895 = vmatmul.mubr.f32.gmra.mxu0 %v4828
    %v4896 = vpop.f32.mrf.mxu0
    %v4897 = vadd.f32 0.0, %v4896
    %v4898 = vpop.f32.mrf.mxu0
    %4899 = vdwg.mxu0
    %4900 = vrot.lane.b32.xlu0 %v369, 112
    %v4901 = vpop.permute.xlu0 %4900
    %v4904 = vsel %vm495, %v3357, 0
    %4906 = vmatprep.subr.mxu0 0.0
    %4907 = vmatpush1.msra.mxu0 0.0
    %4908 = vmatprep.subr.mxu0 0.0
    %4909 = vmatpush1.msra.mxu0 0.0
    %4910 = vmatprep.subr.mxu0 0.0
    %4911 = vmatpush1.msra.mxu0 0.0
    %4912 = vmatprep.subr.mxu0 0.0
    %4913 = vmatpush1.msra.mxu0 0.0
    %4914 = vmatprep.subr.mxu0 0.0
    %4915 = vmatpush1.msra.mxu0 0.0
    %4916 = vmatprep.subr.mxu0 0.0
    %4917 = vmatpush1.msra.mxu0 0.0
    %4918 = vmatprep.subr.mxu0 0.0
    %4919 = vmatpush1.msra.mxu0 0.0
    %4920 = vmatprep.subr.mxu0 0.0
    %4921 = vmatpush1.msra.mxu0 0.0
    %4922 = vmatprep.subr.mxu0 0.0
    %4923 = vmatpush1.msra.mxu0 0.0
    %4924 = vmatprep.subr.mxu0 0.0
    %4925 = vmatpush1.msra.mxu0 0.0
    %4926 = vmatprep.subr.mxu0 0.0
    %4927 = vmatpush1.msra.mxu0 0.0
    %4928 = vmatprep.subr.mxu0 0.0
    %4929 = vmatpush1.msra.mxu0 0.0
    %4930 = vmatprep.subr.mxu0 0.0
    %4931 = vmatpush1.msra.mxu0 0.0
    %4932 = vmatprep.subr.mxu0 0.0
    %4933 = vmatpush1.msra.mxu0 0.0
    %4934 = vmatprep.subr.mxu0 0.0
    %4935 = vmatpush1.msra.mxu0 0.0
    %4936 = vmatprep.subr.mxu0 0.0
    %4937 = vmatpush1.msra.mxu0 %v4901
    %4938 = vmatprep.subr.mxu0 0.0
    %4939 = vmatpush2.msra.mxu0 0.0
    %4940 = vmatprep.subr.mxu0 0.0
    %4941 = vmatpush2.msra.mxu0 0.0
    %4942 = vmatprep.subr.mxu0 0.0
    %4943 = vmatpush2.msra.mxu0 0.0
    %4944 = vmatprep.subr.mxu0 0.0
    %4945 = vmatpush2.msra.mxu0 0.0
    %4946 = vmatprep.subr.mxu0 0.0
    %4947 = vmatpush2.msra.mxu0 0.0
    %4948 = vmatprep.subr.mxu0 0.0
    %4949 = vmatpush2.msra.mxu0 0.0
    %4950 = vmatprep.subr.mxu0 0.0
    %4951 = vmatpush2.msra.mxu0 0.0
    %4952 = vmatprep.subr.mxu0 0.0
    %4953 = vmatpush2.msra.mxu0 0.0
    %4954 = vmatprep.subr.mxu0 0.0
    %4955 = vmatpush2.msra.mxu0 0.0
    %4956 = vmatprep.subr.mxu0 0.0
    %4957 = vmatpush2.msra.mxu0 0.0
    %4958 = vmatprep.subr.mxu0 0.0
    %4959 = vmatpush2.msra.mxu0 0.0
    %4960 = vmatprep.subr.mxu0 0.0
    %4961 = vmatpush2.msra.mxu0 0.0
    %4962 = vmatprep.subr.mxu0 0.0
    %4963 = vmatpush2.msra.mxu0 0.0
    %4964 = vmatprep.subr.mxu0 0.0
    %4965 = vmatpush2.msra.mxu0 0.0
    %4966 = vmatprep.subr.mxu0 0.0
    %4967 = vmatpush2.msra.mxu0 0.0
    %4968 = vmatprep.subr.mxu0 0.0
    %4969 = vmatpush2.msra.mxu0 0.0
    %4970 = vmatprep.mubr.f32.mxu0 0.0
    %4971 = vmatmul.mubr.f32.gmra.mxu0 %v4904
    %v4972 = vpop.f32.mrf.mxu0
    %v4973 = vadd.f32 0.0, %v4972
    %v4974 = vpop.f32.mrf.mxu0
    %4975 = vdwg.mxu0
    %4976 = vrot.lane.b32.xlu0 %v374, 112
    %v4977 = vpop.permute.xlu0 %4976
    %v4980 = vsel %vm495, %v3359, 0
    %4982 = vmatprep.subr.mxu0 0.0
    %4983 = vmatpush1.msra.mxu0 0.0
    %4984 = vmatprep.subr.mxu0 0.0
    %4985 = vmatpush1.msra.mxu0 0.0
    %4986 = vmatprep.subr.mxu0 0.0
    %4987 = vmatpush1.msra.mxu0 0.0
    %4988 = vmatprep.subr.mxu0 0.0
    %4989 = vmatpush1.msra.mxu0 0.0
    %4990 = vmatprep.subr.mxu0 0.0
    %4991 = vmatpush1.msra.mxu0 0.0
    %4992 = vmatprep.subr.mxu0 0.0
    %4993 = vmatpush1.msra.mxu0 0.0
    %4994 = vmatprep.subr.mxu0 0.0
    %4995 = vmatpush1.msra.mxu0 0.0
    %4996 = vmatprep.subr.mxu0 0.0
    %4997 = vmatpush1.msra.mxu0 0.0
    %4998 = vmatprep.subr.mxu0 0.0
    %4999 = vmatpush1.msra.mxu0 0.0
    %5000 = vmatprep.subr.mxu0 0.0
    %5001 = vmatpush1.msra.mxu0 0.0
    %5002 = vmatprep.subr.mxu0 0.0
    %5003 = vmatpush1.msra.mxu0 0.0
    %5004 = vmatprep.subr.mxu0 0.0
    %5005 = vmatpush1.msra.mxu0 0.0
    %5006 = vmatprep.subr.mxu0 0.0
    %5007 = vmatpush1.msra.mxu0 0.0
    %5008 = vmatprep.subr.mxu0 0.0
    %5009 = vmatpush1.msra.mxu0 0.0
    %5010 = vmatprep.subr.mxu0 0.0
    %5011 = vmatpush1.msra.mxu0 0.0
    %5012 = vmatprep.subr.mxu0 0.0
    %5013 = vmatpush1.msra.mxu0 %v4977
    %5014 = vmatprep.subr.mxu0 0.0
    %5015 = vmatpush2.msra.mxu0 0.0
    %5016 = vmatprep.subr.mxu0 0.0
    %5017 = vmatpush2.msra.mxu0 0.0
    %5018 = vmatprep.subr.mxu0 0.0
    %5019 = vmatpush2.msra.mxu0 0.0
    %5020 = vmatprep.subr.mxu0 0.0
    %5021 = vmatpush2.msra.mxu0 0.0
    %5022 = vmatprep.subr.mxu0 0.0
    %5023 = vmatpush2.msra.mxu0 0.0
    %5024 = vmatprep.subr.mxu0 0.0
    %5025 = vmatpush2.msra.mxu0 0.0
    %5026 = vmatprep.subr.mxu0 0.0
    %5027 = vmatpush2.msra.mxu0 0.0
    %5028 = vmatprep.subr.mxu0 0.0
    %5029 = vmatpush2.msra.mxu0 0.0
    %5030 = vmatprep.subr.mxu0 0.0
    %5031 = vmatpush2.msra.mxu0 0.0
    %5032 = vmatprep.subr.mxu0 0.0
    %5033 = vmatpush2.msra.mxu0 0.0
    %5034 = vmatprep.subr.mxu0 0.0
    %5035 = vmatpush2.msra.mxu0 0.0
    %5036 = vmatprep.subr.mxu0 0.0
    %5037 = vmatpush2.msra.mxu0 0.0
    %5038 = vmatprep.subr.mxu0 0.0
    %5039 = vmatpush2.msra.mxu0 0.0
    %5040 = vmatprep.subr.mxu0 0.0
    %5041 = vmatpush2.msra.mxu0 0.0
    %5042 = vmatprep.subr.mxu0 0.0
    %5043 = vmatpush2.msra.mxu0 0.0
    %5044 = vmatprep.subr.mxu0 0.0
    %5045 = vmatpush2.msra.mxu0 0.0
    %5046 = vmatprep.mubr.f32.mxu0 0.0
    %5047 = vmatmul.mubr.f32.gmra.mxu0 %v4980
    %v5048 = vpop.f32.mrf.mxu0
    %v5049 = vadd.f32 0.0, %v5048
    %v5050 = vpop.f32.mrf.mxu0
    %5051 = vdwg.mxu0
    %5052 = vrot.lane.b32.xlu0 %v379, 112
    %v5053 = vpop.permute.xlu0 %5052
    %v5056 = vsel %vm495, %v3361, 0
    %5058 = vmatprep.subr.mxu0 0.0
    %5059 = vmatpush1.msra.mxu0 0.0
    %5060 = vmatprep.subr.mxu0 0.0
    %5061 = vmatpush1.msra.mxu0 0.0
    %5062 = vmatprep.subr.mxu0 0.0
    %5063 = vmatpush1.msra.mxu0 0.0
    %5064 = vmatprep.subr.mxu0 0.0
    %5065 = vmatpush1.msra.mxu0 0.0
    %5066 = vmatprep.subr.mxu0 0.0
    %5067 = vmatpush1.msra.mxu0 0.0
    %5068 = vmatprep.subr.mxu0 0.0
    %5069 = vmatpush1.msra.mxu0 0.0
    %5070 = vmatprep.subr.mxu0 0.0
    %5071 = vmatpush1.msra.mxu0 0.0
    %5072 = vmatprep.subr.mxu0 0.0
    %5073 = vmatpush1.msra.mxu0 0.0
    %5074 = vmatprep.subr.mxu0 0.0
    %5075 = vmatpush1.msra.mxu0 0.0
    %5076 = vmatprep.subr.mxu0 0.0
    %5077 = vmatpush1.msra.mxu0 0.0
    %5078 = vmatprep.subr.mxu0 0.0
    %5079 = vmatpush1.msra.mxu0 0.0
    %5080 = vmatprep.subr.mxu0 0.0
    %5081 = vmatpush1.msra.mxu0 0.0
    %5082 = vmatprep.subr.mxu0 0.0
    %5083 = vmatpush1.msra.mxu0 0.0
    %5084 = vmatprep.subr.mxu0 0.0
    %5085 = vmatpush1.msra.mxu0 0.0
    %5086 = vmatprep.subr.mxu0 0.0
    %5087 = vmatpush1.msra.mxu0 0.0
    %5088 = vmatprep.subr.mxu0 0.0
    %5089 = vmatpush1.msra.mxu0 %v5053
    %5090 = vmatprep.subr.mxu0 0.0
    %5091 = vmatpush2.msra.mxu0 0.0
    %5092 = vmatprep.subr.mxu0 0.0
    %5093 = vmatpush2.msra.mxu0 0.0
    %5094 = vmatprep.subr.mxu0 0.0
    %5095 = vmatpush2.msra.mxu0 0.0
    %5096 = vmatprep.subr.mxu0 0.0
    %5097 = vmatpush2.msra.mxu0 0.0
    %5098 = vmatprep.subr.mxu0 0.0
    %5099 = vmatpush2.msra.mxu0 0.0
    %5100 = vmatprep.subr.mxu0 0.0
    %5101 = vmatpush2.msra.mxu0 0.0
    %5102 = vmatprep.subr.mxu0 0.0
    %5103 = vmatpush2.msra.mxu0 0.0
    %5104 = vmatprep.subr.mxu0 0.0
    %5105 = vmatpush2.msra.mxu0 0.0
    %5106 = vmatprep.subr.mxu0 0.0
    %5107 = vmatpush2.msra.mxu0 0.0
    %5108 = vmatprep.subr.mxu0 0.0
    %5109 = vmatpush2.msra.mxu0 0.0
    %5110 = vmatprep.subr.mxu0 0.0
    %5111 = vmatpush2.msra.mxu0 0.0
    %5112 = vmatprep.subr.mxu0 0.0
    %5113 = vmatpush2.msra.mxu0 0.0
    %5114 = vmatprep.subr.mxu0 0.0
    %5115 = vmatpush2.msra.mxu0 0.0
    %5116 = vmatprep.subr.mxu0 0.0
    %5117 = vmatpush2.msra.mxu0 0.0
    %5118 = vmatprep.subr.mxu0 0.0
    %5119 = vmatpush2.msra.mxu0 0.0
    %5120 = vmatprep.subr.mxu0 0.0
    %5121 = vmatpush2.msra.mxu0 0.0
    %5122 = vmatprep.mubr.f32.mxu0 0.0
    %5123 = vmatmul.mubr.f32.gmra.mxu0 %v5056
    %v5124 = vpop.f32.mrf.mxu0
    %v5125 = vadd.f32 0.0, %v5124
    %v5126 = vpop.f32.mrf.mxu0
    %5127 = vdwg.mxu0
    %5128 = vrot.lane.b32.xlu0 %v384, 112
    %v5129 = vpop.permute.xlu0 %5128
    %v5132 = vsel %vm495, %v3363, 0
    %5134 = vmatprep.subr.mxu0 0.0
    %5135 = vmatpush1.msra.mxu0 0.0
    %5136 = vmatprep.subr.mxu0 0.0
    %5137 = vmatpush1.msra.mxu0 0.0
    %5138 = vmatprep.subr.mxu0 0.0
    %5139 = vmatpush1.msra.mxu0 0.0
    %5140 = vmatprep.subr.mxu0 0.0
    %5141 = vmatpush1.msra.mxu0 0.0
    %5142 = vmatprep.subr.mxu0 0.0
    %5143 = vmatpush1.msra.mxu0 0.0
    %5144 = vmatprep.subr.mxu0 0.0
    %5145 = vmatpush1.msra.mxu0 0.0
    %5146 = vmatprep.subr.mxu0 0.0
    %5147 = vmatpush1.msra.mxu0 0.0
    %5148 = vmatprep.subr.mxu0 0.0
    %5149 = vmatpush1.msra.mxu0 0.0
    %5150 = vmatprep.subr.mxu0 0.0
    %5151 = vmatpush1.msra.mxu0 0.0
    %5152 = vmatprep.subr.mxu0 0.0
    %5153 = vmatpush1.msra.mxu0 0.0
    %5154 = vmatprep.subr.mxu0 0.0
    %5155 = vmatpush1.msra.mxu0 0.0
    %5156 = vmatprep.subr.mxu0 0.0
    %5157 = vmatpush1.msra.mxu0 0.0
    %5158 = vmatprep.subr.mxu0 0.0
    %5159 = vmatpush1.msra.mxu0 0.0
    %5160 = vmatprep.subr.mxu0 0.0
    %5161 = vmatpush1.msra.mxu0 0.0
    %5162 = vmatprep.subr.mxu0 0.0
    %5163 = vmatpush1.msra.mxu0 0.0
    %5164 = vmatprep.subr.mxu0 0.0
    %5165 = vmatpush1.msra.mxu0 %v5129
    %5166 = vmatprep.subr.mxu0 0.0
    %5167 = vmatpush2.msra.mxu0 0.0
    %5168 = vmatprep.subr.mxu0 0.0
    %5169 = vmatpush2.msra.mxu0 0.0
    %5170 = vmatprep.subr.mxu0 0.0
    %5171 = vmatpush2.msra.mxu0 0.0
    %5172 = vmatprep.subr.mxu0 0.0
    %5173 = vmatpush2.msra.mxu0 0.0
    %5174 = vmatprep.subr.mxu0 0.0
    %5175 = vmatpush2.msra.mxu0 0.0
    %5176 = vmatprep.subr.mxu0 0.0
    %5177 = vmatpush2.msra.mxu0 0.0
    %5178 = vmatprep.subr.mxu0 0.0
    %5179 = vmatpush2.msra.mxu0 0.0
    %5180 = vmatprep.subr.mxu0 0.0
    %5181 = vmatpush2.msra.mxu0 0.0
    %5182 = vmatprep.subr.mxu0 0.0
    %5183 = vmatpush2.msra.mxu0 0.0
    %5184 = vmatprep.subr.mxu0 0.0
    %5185 = vmatpush2.msra.mxu0 0.0
    %5186 = vmatprep.subr.mxu0 0.0
    %5187 = vmatpush2.msra.mxu0 0.0
    %5188 = vmatprep.subr.mxu0 0.0
    %5189 = vmatpush2.msra.mxu0 0.0
    %5190 = vmatprep.subr.mxu0 0.0
    %5191 = vmatpush2.msra.mxu0 0.0
    %5192 = vmatprep.subr.mxu0 0.0
    %5193 = vmatpush2.msra.mxu0 0.0
    %5194 = vmatprep.subr.mxu0 0.0
    %5195 = vmatpush2.msra.mxu0 0.0
    %5196 = vmatprep.subr.mxu0 0.0
    %5197 = vmatpush2.msra.mxu0 0.0
    %5198 = vmatprep.mubr.f32.mxu0 0.0
    %5199 = vmatmul.mubr.f32.gmra.mxu0 %v5132
    %v5200 = vpop.f32.mrf.mxu0
    %v5201 = vadd.f32 0.0, %v5200
    %v5202 = vpop.f32.mrf.mxu0
    %5203 = vdwg.mxu0
    %5204 = vrot.lane.b32.xlu0 %v454, 112
    %v5205 = vpop.permute.xlu0 %5204
    %v5208 = vsel %vm495, %v3365, 0
    %5210 = vmatprep.subr.mxu0 0.0
    %5211 = vmatpush1.msra.mxu0 0.0
    %5212 = vmatprep.subr.mxu0 0.0
    %5213 = vmatpush1.msra.mxu0 0.0
    %5214 = vmatprep.subr.mxu0 0.0
    %5215 = vmatpush1.msra.mxu0 0.0
    %5216 = vmatprep.subr.mxu0 0.0
    %5217 = vmatpush1.msra.mxu0 0.0
    %5218 = vmatprep.subr.mxu0 0.0
    %5219 = vmatpush1.msra.mxu0 0.0
    %5220 = vmatprep.subr.mxu0 0.0
    %5221 = vmatpush1.msra.mxu0 0.0
    %5222 = vmatprep.subr.mxu0 0.0
    %5223 = vmatpush1.msra.mxu0 0.0
    %5224 = vmatprep.subr.mxu0 0.0
    %5225 = vmatpush1.msra.mxu0 0.0
    %5226 = vmatprep.subr.mxu0 0.0
    %5227 = vmatpush1.msra.mxu0 0.0
    %5228 = vmatprep.subr.mxu0 0.0
    %5229 = vmatpush1.msra.mxu0 0.0
    %5230 = vmatprep.subr.mxu0 0.0
    %5231 = vmatpush1.msra.mxu0 0.0
    %5232 = vmatprep.subr.mxu0 0.0
    %5233 = vmatpush1.msra.mxu0 0.0
    %5234 = vmatprep.subr.mxu0 0.0
    %5235 = vmatpush1.msra.mxu0 0.0
    %5236 = vmatprep.subr.mxu0 0.0
    %5237 = vmatpush1.msra.mxu0 0.0
    %5238 = vmatprep.subr.mxu0 0.0
    %5239 = vmatpush1.msra.mxu0 0.0
    %5240 = vmatprep.subr.mxu0 0.0
    %5241 = vmatpush1.msra.mxu0 %v5205
    %5242 = vmatprep.subr.mxu0 0.0
    %5243 = vmatpush2.msra.mxu0 0.0
    %5244 = vmatprep.subr.mxu0 0.0
    %5245 = vmatpush2.msra.mxu0 0.0
    %5246 = vmatprep.subr.mxu0 0.0
    %5247 = vmatpush2.msra.mxu0 0.0
    %5248 = vmatprep.subr.mxu0 0.0
    %5249 = vmatpush2.msra.mxu0 0.0
    %5250 = vmatprep.subr.mxu0 0.0
    %5251 = vmatpush2.msra.mxu0 0.0
    %5252 = vmatprep.subr.mxu0 0.0
    %5253 = vmatpush2.msra.mxu0 0.0
    %5254 = vmatprep.subr.mxu0 0.0
    %5255 = vmatpush2.msra.mxu0 0.0
    %5256 = vmatprep.subr.mxu0 0.0
    %5257 = vmatpush2.msra.mxu0 0.0
    %5258 = vmatprep.subr.mxu0 0.0
    %5259 = vmatpush2.msra.mxu0 0.0
    %5260 = vmatprep.subr.mxu0 0.0
    %5261 = vmatpush2.msra.mxu0 0.0
    %5262 = vmatprep.subr.mxu0 0.0
    %5263 = vmatpush2.msra.mxu0 0.0
    %5264 = vmatprep.subr.mxu0 0.0
    %5265 = vmatpush2.msra.mxu0 0.0
    %5266 = vmatprep.subr.mxu0 0.0
    %5267 = vmatpush2.msra.mxu0 0.0
    %5268 = vmatprep.subr.mxu0 0.0
    %5269 = vmatpush2.msra.mxu0 0.0
    %5270 = vmatprep.subr.mxu0 0.0
    %5271 = vmatpush2.msra.mxu0 0.0
    %5272 = vmatprep.subr.mxu0 0.0
    %5273 = vmatpush2.msra.mxu0 0.0
    %5274 = vmatprep.mubr.f32.mxu0 0.0
    %5275 = vmatmul.mubr.f32.gmra.mxu0 %v5208
    %v5276 = vpop.f32.mrf.mxu0
    %v5277 = vadd.f32 0.0, %v5276
    %v5278 = vpop.f32.mrf.mxu0
    %5279 = vdwg.mxu0
    %5280 = vrot.lane.b32.xlu0 %v459, 112
    %v5281 = vpop.permute.xlu0 %5280
    %v5284 = vsel %vm495, %v3367, 0
    %5286 = vmatprep.subr.mxu0 0.0
    %5287 = vmatpush1.msra.mxu0 0.0
    %5288 = vmatprep.subr.mxu0 0.0
    %5289 = vmatpush1.msra.mxu0 0.0
    %5290 = vmatprep.subr.mxu0 0.0
    %5291 = vmatpush1.msra.mxu0 0.0
    %5292 = vmatprep.subr.mxu0 0.0
    %5293 = vmatpush1.msra.mxu0 0.0
    %5294 = vmatprep.subr.mxu0 0.0
    %5295 = vmatpush1.msra.mxu0 0.0
    %5296 = vmatprep.subr.mxu0 0.0
    %5297 = vmatpush1.msra.mxu0 0.0
    %5298 = vmatprep.subr.mxu0 0.0
    %5299 = vmatpush1.msra.mxu0 0.0
    %5300 = vmatprep.subr.mxu0 0.0
    %5301 = vmatpush1.msra.mxu0 0.0
    %5302 = vmatprep.subr.mxu0 0.0
    %5303 = vmatpush1.msra.mxu0 0.0
    %5304 = vmatprep.subr.mxu0 0.0
    %5305 = vmatpush1.msra.mxu0 0.0
    %5306 = vmatprep.subr.mxu0 0.0
    %5307 = vmatpush1.msra.mxu0 0.0
    %5308 = vmatprep.subr.mxu0 0.0
    %5309 = vmatpush1.msra.mxu0 0.0
    %5310 = vmatprep.subr.mxu0 0.0
    %5311 = vmatpush1.msra.mxu0 0.0
    %5312 = vmatprep.subr.mxu0 0.0
    %5313 = vmatpush1.msra.mxu0 0.0
    %5314 = vmatprep.subr.mxu0 0.0
    %5315 = vmatpush1.msra.mxu0 0.0
    %5316 = vmatprep.subr.mxu0 0.0
    %5317 = vmatpush1.msra.mxu0 %v5281
    %5318 = vmatprep.subr.mxu0 0.0
    %5319 = vmatpush2.msra.mxu0 0.0
    %5320 = vmatprep.subr.mxu0 0.0
    %5321 = vmatpush2.msra.mxu0 0.0
    %5322 = vmatprep.subr.mxu0 0.0
    %5323 = vmatpush2.msra.mxu0 0.0
    %5324 = vmatprep.subr.mxu0 0.0
    %5325 = vmatpush2.msra.mxu0 0.0
    %5326 = vmatprep.subr.mxu0 0.0
    %5327 = vmatpush2.msra.mxu0 0.0
    %5328 = vmatprep.subr.mxu0 0.0
    %5329 = vmatpush2.msra.mxu0 0.0
    %5330 = vmatprep.subr.mxu0 0.0
    %5331 = vmatpush2.msra.mxu0 0.0
    %5332 = vmatprep.subr.mxu0 0.0
    %5333 = vmatpush2.msra.mxu0 0.0
    %5334 = vmatprep.subr.mxu0 0.0
    %5335 = vmatpush2.msra.mxu0 0.0
    %5336 = vmatprep.subr.mxu0 0.0
    %5337 = vmatpush2.msra.mxu0 0.0
    %5338 = vmatprep.subr.mxu0 0.0
    %5339 = vmatpush2.msra.mxu0 0.0
    %5340 = vmatprep.subr.mxu0 0.0
    %5341 = vmatpush2.msra.mxu0 0.0
    %5342 = vmatprep.subr.mxu0 0.0
    %5343 = vmatpush2.msra.mxu0 0.0
    %5344 = vmatprep.subr.mxu0 0.0
    %5345 = vmatpush2.msra.mxu0 0.0
    %5346 = vmatprep.subr.mxu0 0.0
    %5347 = vmatpush2.msra.mxu0 0.0
    %5348 = vmatprep.subr.mxu0 0.0
    %5349 = vmatpush2.msra.mxu0 0.0
    %5350 = vmatprep.mubr.f32.mxu0 0.0
    %5351 = vmatmul.mubr.f32.gmra.mxu0 %v5284
    %v5352 = vpop.f32.mrf.mxu0
    %v5353 = vadd.f32 0.0, %v5352
    %v5354 = vpop.f32.mrf.mxu0
    %5355 = vdwg.mxu0
    %5356 = vrot.lane.b32.xlu0 %v464, 112
    %v5357 = vpop.permute.xlu0 %5356
    %v5360 = vsel %vm495, %v3369, 0
    %5362 = vmatprep.subr.mxu0 0.0
    %5363 = vmatpush1.msra.mxu0 0.0
    %5364 = vmatprep.subr.mxu0 0.0
    %5365 = vmatpush1.msra.mxu0 0.0
    %5366 = vmatprep.subr.mxu0 0.0
    %5367 = vmatpush1.msra.mxu0 0.0
    %5368 = vmatprep.subr.mxu0 0.0
    %5369 = vmatpush1.msra.mxu0 0.0
    %5370 = vmatprep.subr.mxu0 0.0
    %5371 = vmatpush1.msra.mxu0 0.0
    %5372 = vmatprep.subr.mxu0 0.0
    %5373 = vmatpush1.msra.mxu0 0.0
    %5374 = vmatprep.subr.mxu0 0.0
    %5375 = vmatpush1.msra.mxu0 0.0
    %5376 = vmatprep.subr.mxu0 0.0
    %5377 = vmatpush1.msra.mxu0 0.0
    %5378 = vmatprep.subr.mxu0 0.0
    %5379 = vmatpush1.msra.mxu0 0.0
    %5380 = vmatprep.subr.mxu0 0.0
    %5381 = vmatpush1.msra.mxu0 0.0
    %5382 = vmatprep.subr.mxu0 0.0
    %5383 = vmatpush1.msra.mxu0 0.0
    %5384 = vmatprep.subr.mxu0 0.0
    %5385 = vmatpush1.msra.mxu0 0.0
    %5386 = vmatprep.subr.mxu0 0.0
    %5387 = vmatpush1.msra.mxu0 0.0
    %5388 = vmatprep.subr.mxu0 0.0
    %5389 = vmatpush1.msra.mxu0 0.0
    %5390 = vmatprep.subr.mxu0 0.0
    %5391 = vmatpush1.msra.mxu0 0.0
    %5392 = vmatprep.subr.mxu0 0.0
    %5393 = vmatpush1.msra.mxu0 %v5357
    %5394 = vmatprep.subr.mxu0 0.0
    %5395 = vmatpush2.msra.mxu0 0.0
    %5396 = vmatprep.subr.mxu0 0.0
    %5397 = vmatpush2.msra.mxu0 0.0
    %5398 = vmatprep.subr.mxu0 0.0
    %5399 = vmatpush2.msra.mxu0 0.0
    %5400 = vmatprep.subr.mxu0 0.0
    %5401 = vmatpush2.msra.mxu0 0.0
    %5402 = vmatprep.subr.mxu0 0.0
    %5403 = vmatpush2.msra.mxu0 0.0
    %5404 = vmatprep.subr.mxu0 0.0
    %5405 = vmatpush2.msra.mxu0 0.0
    %5406 = vmatprep.subr.mxu0 0.0
    %5407 = vmatpush2.msra.mxu0 0.0
    %5408 = vmatprep.subr.mxu0 0.0
    %5409 = vmatpush2.msra.mxu0 0.0
    %5410 = vmatprep.subr.mxu0 0.0
    %5411 = vmatpush2.msra.mxu0 0.0
    %5412 = vmatprep.subr.mxu0 0.0
    %5413 = vmatpush2.msra.mxu0 0.0
    %5414 = vmatprep.subr.mxu0 0.0
    %5415 = vmatpush2.msra.mxu0 0.0
    %5416 = vmatprep.subr.mxu0 0.0
    %5417 = vmatpush2.msra.mxu0 0.0
    %5418 = vmatprep.subr.mxu0 0.0
    %5419 = vmatpush2.msra.mxu0 0.0
    %5420 = vmatprep.subr.mxu0 0.0
    %5421 = vmatpush2.msra.mxu0 0.0
    %5422 = vmatprep.subr.mxu0 0.0
    %5423 = vmatpush2.msra.mxu0 0.0
    %5424 = vmatprep.subr.mxu0 0.0
    %5425 = vmatpush2.msra.mxu0 0.0
    %5426 = vmatprep.mubr.f32.mxu0 0.0
    %5427 = vmatmul.mubr.f32.gmra.mxu0 %v5360
    %v5428 = vpop.f32.mrf.mxu0
    %v5429 = vadd.f32 0.0, %v5428
    %v5430 = vpop.f32.mrf.mxu0
    %5431 = vdwg.mxu0
    %5432 = vrot.lane.b32.xlu0 %v469, 112
    %v5433 = vpop.permute.xlu0 %5432
    %v5436 = vsel %vm495, %v3371, 0
    %5438 = vmatprep.subr.mxu0 0.0
    %5439 = vmatpush1.msra.mxu0 0.0
    %5440 = vmatprep.subr.mxu0 0.0
    %5441 = vmatpush1.msra.mxu0 0.0
    %5442 = vmatprep.subr.mxu0 0.0
    %5443 = vmatpush1.msra.mxu0 0.0
    %5444 = vmatprep.subr.mxu0 0.0
    %5445 = vmatpush1.msra.mxu0 0.0
    %5446 = vmatprep.subr.mxu0 0.0
    %5447 = vmatpush1.msra.mxu0 0.0
    %5448 = vmatprep.subr.mxu0 0.0
    %5449 = vmatpush1.msra.mxu0 0.0
    %5450 = vmatprep.subr.mxu0 0.0
    %5451 = vmatpush1.msra.mxu0 0.0
    %5452 = vmatprep.subr.mxu0 0.0
    %5453 = vmatpush1.msra.mxu0 0.0
    %5454 = vmatprep.subr.mxu0 0.0
    %5455 = vmatpush1.msra.mxu0 0.0
    %5456 = vmatprep.subr.mxu0 0.0
    %5457 = vmatpush1.msra.mxu0 0.0
    %5458 = vmatprep.subr.mxu0 0.0
    %5459 = vmatpush1.msra.mxu0 0.0
    %5460 = vmatprep.subr.mxu0 0.0
    %5461 = vmatpush1.msra.mxu0 0.0
    %5462 = vmatprep.subr.mxu0 0.0
    %5463 = vmatpush1.msra.mxu0 0.0
    %5464 = vmatprep.subr.mxu0 0.0
    %5465 = vmatpush1.msra.mxu0 0.0
    %5466 = vmatprep.subr.mxu0 0.0
    %5467 = vmatpush1.msra.mxu0 0.0
    %5468 = vmatprep.subr.mxu0 0.0
    %5469 = vmatpush1.msra.mxu0 %v5433
    %5470 = vmatprep.subr.mxu0 0.0
    %5471 = vmatpush2.msra.mxu0 0.0
    %5472 = vmatprep.subr.mxu0 0.0
    %5473 = vmatpush2.msra.mxu0 0.0
    %5474 = vmatprep.subr.mxu0 0.0
    %5475 = vmatpush2.msra.mxu0 0.0
    %5476 = vmatprep.subr.mxu0 0.0
    %5477 = vmatpush2.msra.mxu0 0.0
    %5478 = vmatprep.subr.mxu0 0.0
    %5479 = vmatpush2.msra.mxu0 0.0
    %5480 = vmatprep.subr.mxu0 0.0
    %5481 = vmatpush2.msra.mxu0 0.0
    %5482 = vmatprep.subr.mxu0 0.0
    %5483 = vmatpush2.msra.mxu0 0.0
    %5484 = vmatprep.subr.mxu0 0.0
    %5485 = vmatpush2.msra.mxu0 0.0
    %5486 = vmatprep.subr.mxu0 0.0
    %5487 = vmatpush2.msra.mxu0 0.0
    %5488 = vmatprep.subr.mxu0 0.0
    %5489 = vmatpush2.msra.mxu0 0.0
    %5490 = vmatprep.subr.mxu0 0.0
    %5491 = vmatpush2.msra.mxu0 0.0
    %5492 = vmatprep.subr.mxu0 0.0
    %5493 = vmatpush2.msra.mxu0 0.0
    %5494 = vmatprep.subr.mxu0 0.0
    %5495 = vmatpush2.msra.mxu0 0.0
    %5496 = vmatprep.subr.mxu0 0.0
    %5497 = vmatpush2.msra.mxu0 0.0
    %5498 = vmatprep.subr.mxu0 0.0
    %5499 = vmatpush2.msra.mxu0 0.0
    %5500 = vmatprep.subr.mxu0 0.0
    %5501 = vmatpush2.msra.mxu0 0.0
    %5502 = vmatprep.mubr.f32.mxu0 0.0
    %5503 = vmatmul.mubr.f32.gmra.mxu0 %v5436
    %v5504 = vpop.f32.mrf.mxu0
    %v5505 = vadd.f32 0.0, %v5504
    %v5506 = vpop.f32.mrf.mxu0
    %5507 = vdwg.mxu0
    %5508 = vrot.lane.b32.xlu0 %v474, 112
    %v5509 = vpop.permute.xlu0 %5508
    %v5512 = vsel %vm495, %v3373, 0
    %5514 = vmatprep.subr.mxu0 0.0
    %5515 = vmatpush1.msra.mxu0 0.0
    %5516 = vmatprep.subr.mxu0 0.0
    %5517 = vmatpush1.msra.mxu0 0.0
    %5518 = vmatprep.subr.mxu0 0.0
    %5519 = vmatpush1.msra.mxu0 0.0
    %5520 = vmatprep.subr.mxu0 0.0
    %5521 = vmatpush1.msra.mxu0 0.0
    %5522 = vmatprep.subr.mxu0 0.0
    %5523 = vmatpush1.msra.mxu0 0.0
    %5524 = vmatprep.subr.mxu0 0.0
    %5525 = vmatpush1.msra.mxu0 0.0
    %5526 = vmatprep.subr.mxu0 0.0
    %5527 = vmatpush1.msra.mxu0 0.0
    %5528 = vmatprep.subr.mxu0 0.0
    %5529 = vmatpush1.msra.mxu0 0.0
    %5530 = vmatprep.subr.mxu0 0.0
    %5531 = vmatpush1.msra.mxu0 0.0
    %5532 = vmatprep.subr.mxu0 0.0
    %5533 = vmatpush1.msra.mxu0 0.0
    %5534 = vmatprep.subr.mxu0 0.0
    %5535 = vmatpush1.msra.mxu0 0.0
    %5536 = vmatprep.subr.mxu0 0.0
    %5537 = vmatpush1.msra.mxu0 0.0
    %5538 = vmatprep.subr.mxu0 0.0
    %5539 = vmatpush1.msra.mxu0 0.0
    %5540 = vmatprep.subr.mxu0 0.0
    %5541 = vmatpush1.msra.mxu0 0.0
    %5542 = vmatprep.subr.mxu0 0.0
    %5543 = vmatpush1.msra.mxu0 0.0
    %5544 = vmatprep.subr.mxu0 0.0
    %5545 = vmatpush1.msra.mxu0 %v5509
    %5546 = vmatprep.subr.mxu0 0.0
    %5547 = vmatpush2.msra.mxu0 0.0
    %5548 = vmatprep.subr.mxu0 0.0
    %5549 = vmatpush2.msra.mxu0 0.0
    %5550 = vmatprep.subr.mxu0 0.0
    %5551 = vmatpush2.msra.mxu0 0.0
    %5552 = vmatprep.subr.mxu0 0.0
    %5553 = vmatpush2.msra.mxu0 0.0
    %5554 = vmatprep.subr.mxu0 0.0
    %5555 = vmatpush2.msra.mxu0 0.0
    %5556 = vmatprep.subr.mxu0 0.0
    %5557 = vmatpush2.msra.mxu0 0.0
    %5558 = vmatprep.subr.mxu0 0.0
    %5559 = vmatpush2.msra.mxu0 0.0
    %5560 = vmatprep.subr.mxu0 0.0
    %5561 = vmatpush2.msra.mxu0 0.0
    %5562 = vmatprep.subr.mxu0 0.0
    %5563 = vmatpush2.msra.mxu0 0.0
    %5564 = vmatprep.subr.mxu0 0.0
    %5565 = vmatpush2.msra.mxu0 0.0
    %5566 = vmatprep.subr.mxu0 0.0
    %5567 = vmatpush2.msra.mxu0 0.0
    %5568 = vmatprep.subr.mxu0 0.0
    %5569 = vmatpush2.msra.mxu0 0.0
    %5570 = vmatprep.subr.mxu0 0.0
    %5571 = vmatpush2.msra.mxu0 0.0
    %5572 = vmatprep.subr.mxu0 0.0
    %5573 = vmatpush2.msra.mxu0 0.0
    %5574 = vmatprep.subr.mxu0 0.0
    %5575 = vmatpush2.msra.mxu0 0.0
    %5576 = vmatprep.subr.mxu0 0.0
    %5577 = vmatpush2.msra.mxu0 0.0
    %5578 = vmatprep.mubr.f32.mxu0 0.0
    %5579 = vmatmul.mubr.f32.gmra.mxu0 %v5512
    %v5580 = vpop.f32.mrf.mxu0
    %v5581 = vadd.f32 0.0, %v5580
    %v5582 = vpop.f32.mrf.mxu0
    %5583 = vdwg.mxu0
    %5584 = vrot.lane.b32.xlu0 %v479, 112
    %v5585 = vpop.permute.xlu0 %5584
    %v5588 = vsel %vm495, %v3375, 0
    %5590 = vmatprep.subr.mxu0 0.0
    %5591 = vmatpush1.msra.mxu0 0.0
    %5592 = vmatprep.subr.mxu0 0.0
    %5593 = vmatpush1.msra.mxu0 0.0
    %5594 = vmatprep.subr.mxu0 0.0
    %5595 = vmatpush1.msra.mxu0 0.0
    %5596 = vmatprep.subr.mxu0 0.0
    %5597 = vmatpush1.msra.mxu0 0.0
    %5598 = vmatprep.subr.mxu0 0.0
    %5599 = vmatpush1.msra.mxu0 0.0
    %5600 = vmatprep.subr.mxu0 0.0
    %5601 = vmatpush1.msra.mxu0 0.0
    %5602 = vmatprep.subr.mxu0 0.0
    %5603 = vmatpush1.msra.mxu0 0.0
    %5604 = vmatprep.subr.mxu0 0.0
    %5605 = vmatpush1.msra.mxu0 0.0
    %5606 = vmatprep.subr.mxu0 0.0
    %5607 = vmatpush1.msra.mxu0 0.0
    %5608 = vmatprep.subr.mxu0 0.0
    %5609 = vmatpush1.msra.mxu0 0.0
    %5610 = vmatprep.subr.mxu0 0.0
    %5611 = vmatpush1.msra.mxu0 0.0
    %5612 = vmatprep.subr.mxu0 0.0
    %5613 = vmatpush1.msra.mxu0 0.0
    %5614 = vmatprep.subr.mxu0 0.0
    %5615 = vmatpush1.msra.mxu0 0.0
    %5616 = vmatprep.subr.mxu0 0.0
    %5617 = vmatpush1.msra.mxu0 0.0
    %5618 = vmatprep.subr.mxu0 0.0
    %5619 = vmatpush1.msra.mxu0 0.0
    %5620 = vmatprep.subr.mxu0 0.0
    %5621 = vmatpush1.msra.mxu0 %v5585
    %5622 = vmatprep.subr.mxu0 0.0
    %5623 = vmatpush2.msra.mxu0 0.0
    %5624 = vmatprep.subr.mxu0 0.0
    %5625 = vmatpush2.msra.mxu0 0.0
    %5626 = vmatprep.subr.mxu0 0.0
    %5627 = vmatpush2.msra.mxu0 0.0
    %5628 = vmatprep.subr.mxu0 0.0
    %5629 = vmatpush2.msra.mxu0 0.0
    %5630 = vmatprep.subr.mxu0 0.0
    %5631 = vmatpush2.msra.mxu0 0.0
    %5632 = vmatprep.subr.mxu0 0.0
    %5633 = vmatpush2.msra.mxu0 0.0
    %5634 = vmatprep.subr.mxu0 0.0
    %5635 = vmatpush2.msra.mxu0 0.0
    %5636 = vmatprep.subr.mxu0 0.0
    %5637 = vmatpush2.msra.mxu0 0.0
    %5638 = vmatprep.subr.mxu0 0.0
    %5639 = vmatpush2.msra.mxu0 0.0
    %5640 = vmatprep.subr.mxu0 0.0
    %5641 = vmatpush2.msra.mxu0 0.0
    %5642 = vmatprep.subr.mxu0 0.0
    %5643 = vmatpush2.msra.mxu0 0.0
    %5644 = vmatprep.subr.mxu0 0.0
    %5645 = vmatpush2.msra.mxu0 0.0
    %5646 = vmatprep.subr.mxu0 0.0
    %5647 = vmatpush2.msra.mxu0 0.0
    %5648 = vmatprep.subr.mxu0 0.0
    %5649 = vmatpush2.msra.mxu0 0.0
    %5650 = vmatprep.subr.mxu0 0.0
    %5651 = vmatpush2.msra.mxu0 0.0
    %5652 = vmatprep.subr.mxu0 0.0
    %5653 = vmatpush2.msra.mxu0 0.0
    %5654 = vmatprep.mubr.f32.mxu0 0.0
    %5655 = vmatmul.mubr.f32.gmra.mxu0 %v5588
    %v5656 = vpop.f32.mrf.mxu0
    %v5657 = vadd.f32 0.0, %v5656
    %v5658 = vpop.f32.mrf.mxu0
    %5659 = vdwg.mxu0
    %5660 = vrot.lane.b32.xlu0 %v484, 112
    %v5661 = vpop.permute.xlu0 %5660
    %v5664 = vsel %vm495, %v3377, 0
    %5666 = vmatprep.subr.mxu0 0.0
    %5667 = vmatpush1.msra.mxu0 0.0
    %5668 = vmatprep.subr.mxu0 0.0
    %5669 = vmatpush1.msra.mxu0 0.0
    %5670 = vmatprep.subr.mxu0 0.0
    %5671 = vmatpush1.msra.mxu0 0.0
    %5672 = vmatprep.subr.mxu0 0.0
    %5673 = vmatpush1.msra.mxu0 0.0
    %5674 = vmatprep.subr.mxu0 0.0
    %5675 = vmatpush1.msra.mxu0 0.0
    %5676 = vmatprep.subr.mxu0 0.0
    %5677 = vmatpush1.msra.mxu0 0.0
    %5678 = vmatprep.subr.mxu0 0.0
    %5679 = vmatpush1.msra.mxu0 0.0
    %5680 = vmatprep.subr.mxu0 0.0
    %5681 = vmatpush1.msra.mxu0 0.0
    %5682 = vmatprep.subr.mxu0 0.0
    %5683 = vmatpush1.msra.mxu0 0.0
    %5684 = vmatprep.subr.mxu0 0.0
    %5685 = vmatpush1.msra.mxu0 0.0
    %5686 = vmatprep.subr.mxu0 0.0
    %5687 = vmatpush1.msra.mxu0 0.0
    %5688 = vmatprep.subr.mxu0 0.0
    %5689 = vmatpush1.msra.mxu0 0.0
    %5690 = vmatprep.subr.mxu0 0.0
    %5691 = vmatpush1.msra.mxu0 0.0
    %5692 = vmatprep.subr.mxu0 0.0
    %5693 = vmatpush1.msra.mxu0 0.0
    %5694 = vmatprep.subr.mxu0 0.0
    %5695 = vmatpush1.msra.mxu0 0.0
    %5696 = vmatprep.subr.mxu0 0.0
    %5697 = vmatpush1.msra.mxu0 %v5661
    %5698 = vmatprep.subr.mxu0 0.0
    %5699 = vmatpush2.msra.mxu0 0.0
    %5700 = vmatprep.subr.mxu0 0.0
    %5701 = vmatpush2.msra.mxu0 0.0
    %5702 = vmatprep.subr.mxu0 0.0
    %5703 = vmatpush2.msra.mxu0 0.0
    %5704 = vmatprep.subr.mxu0 0.0
    %5705 = vmatpush2.msra.mxu0 0.0
    %5706 = vmatprep.subr.mxu0 0.0
    %5707 = vmatpush2.msra.mxu0 0.0
    %5708 = vmatprep.subr.mxu0 0.0
    %5709 = vmatpush2.msra.mxu0 0.0
    %5710 = vmatprep.subr.mxu0 0.0
    %5711 = vmatpush2.msra.mxu0 0.0
    %5712 = vmatprep.subr.mxu0 0.0
    %5713 = vmatpush2.msra.mxu0 0.0
    %5714 = vmatprep.subr.mxu0 0.0
    %5715 = vmatpush2.msra.mxu0 0.0
    %5716 = vmatprep.subr.mxu0 0.0
    %5717 = vmatpush2.msra.mxu0 0.0
    %5718 = vmatprep.subr.mxu0 0.0
    %5719 = vmatpush2.msra.mxu0 0.0
    %5720 = vmatprep.subr.mxu0 0.0
    %5721 = vmatpush2.msra.mxu0 0.0
    %5722 = vmatprep.subr.mxu0 0.0
    %5723 = vmatpush2.msra.mxu0 0.0
    %5724 = vmatprep.subr.mxu0 0.0
    %5725 = vmatpush2.msra.mxu0 0.0
    %5726 = vmatprep.subr.mxu0 0.0
    %5727 = vmatpush2.msra.mxu0 0.0
    %5728 = vmatprep.subr.mxu0 0.0
    %5729 = vmatpush2.msra.mxu0 0.0
    %5730 = vmatprep.mubr.f32.mxu0 0.0
    %5731 = vmatmul.mubr.f32.gmra.mxu0 %v5664
    %v5732 = vpop.f32.mrf.mxu0
    %v5733 = vadd.f32 0.0, %v5732
    %v5734 = vpop.f32.mrf.mxu0
    %5735 = vdwg.mxu0
    %5736 = vrot.lane.b32.xlu0 %v489, 112
    %v5737 = vpop.permute.xlu0 %5736
    %v5740 = vsel %vm495, %v3379, 0
    %5742 = vmatprep.subr.mxu0 0.0
    %5743 = vmatpush1.msra.mxu0 0.0
    %5744 = vmatprep.subr.mxu0 0.0
    %5745 = vmatpush1.msra.mxu0 0.0
    %5746 = vmatprep.subr.mxu0 0.0
    %5747 = vmatpush1.msra.mxu0 0.0
    %5748 = vmatprep.subr.mxu0 0.0
    %5749 = vmatpush1.msra.mxu0 0.0
    %5750 = vmatprep.subr.mxu0 0.0
    %5751 = vmatpush1.msra.mxu0 0.0
    %5752 = vmatprep.subr.mxu0 0.0
    %5753 = vmatpush1.msra.mxu0 0.0
    %5754 = vmatprep.subr.mxu0 0.0
    %5755 = vmatpush1.msra.mxu0 0.0
    %5756 = vmatprep.subr.mxu0 0.0
    %5757 = vmatpush1.msra.mxu0 0.0
    %5758 = vmatprep.subr.mxu0 0.0
    %5759 = vmatpush1.msra.mxu0 0.0
    %5760 = vmatprep.subr.mxu0 0.0
    %5761 = vmatpush1.msra.mxu0 0.0
    %5762 = vmatprep.subr.mxu0 0.0
    %5763 = vmatpush1.msra.mxu0 0.0
    %5764 = vmatprep.subr.mxu0 0.0
    %5765 = vmatpush1.msra.mxu0 0.0
    %5766 = vmatprep.subr.mxu0 0.0
    %5767 = vmatpush1.msra.mxu0 0.0
    %5768 = vmatprep.subr.mxu0 0.0
    %5769 = vmatpush1.msra.mxu0 0.0
    %5770 = vmatprep.subr.mxu0 0.0
    %5771 = vmatpush1.msra.mxu0 0.0
    %5772 = vmatprep.subr.mxu0 0.0
    %5773 = vmatpush1.msra.mxu0 %v5737
    %5774 = vmatprep.subr.mxu0 0.0
    %5775 = vmatpush2.msra.mxu0 0.0
    %5776 = vmatprep.subr.mxu0 0.0
    %5777 = vmatpush2.msra.mxu0 0.0
    %5778 = vmatprep.subr.mxu0 0.0
    %5779 = vmatpush2.msra.mxu0 0.0
    %5780 = vmatprep.subr.mxu0 0.0
    %5781 = vmatpush2.msra.mxu0 0.0
    %5782 = vmatprep.subr.mxu0 0.0
    %5783 = vmatpush2.msra.mxu0 0.0
    %5784 = vmatprep.subr.mxu0 0.0
    %5785 = vmatpush2.msra.mxu0 0.0
    %5786 = vmatprep.subr.mxu0 0.0
    %5787 = vmatpush2.msra.mxu0 0.0
    %5788 = vmatprep.subr.mxu0 0.0
    %5789 = vmatpush2.msra.mxu0 0.0
    %5790 = vmatprep.subr.mxu0 0.0
    %5791 = vmatpush2.msra.mxu0 0.0
    %5792 = vmatprep.subr.mxu0 0.0
    %5793 = vmatpush2.msra.mxu0 0.0
    %5794 = vmatprep.subr.mxu0 0.0
    %5795 = vmatpush2.msra.mxu0 0.0
    %5796 = vmatprep.subr.mxu0 0.0
    %5797 = vmatpush2.msra.mxu0 0.0
    %5798 = vmatprep.subr.mxu0 0.0
    %5799 = vmatpush2.msra.mxu0 0.0
    %5800 = vmatprep.subr.mxu0 0.0
    %5801 = vmatpush2.msra.mxu0 0.0
    %5802 = vmatprep.subr.mxu0 0.0
    %5803 = vmatpush2.msra.mxu0 0.0
    %5804 = vmatprep.subr.mxu0 0.0
    %5805 = vmatpush2.msra.mxu0 0.0
    %5806 = vmatprep.mubr.f32.mxu0 0.0
    %5807 = vmatmul.mubr.f32.gmra.mxu0 %v5740
    %v5808 = vpop.f32.mrf.mxu0
    %v5809 = vadd.f32 0.0, %v5808
    %v5810 = vpop.f32.mrf.mxu0
    %5811 = vdwg.mxu0
    %v5812 = vld [vmem:[#allocation2] sm:$0xff]
    %v5813 = vld [vmem:[#allocation2 + $0x8] sm:$0xff]
    %v5814 = vld [vmem:[#allocation2 + $0x10] sm:$0xff]
    %v5815 = vld [vmem:[#allocation2 + $0x18] sm:$0xff]
    %v5817 = vsel %vm495, %v3453, 0
    %v5820 = vsel %vm495, %v3529, 0
    %v5823 = vsel %vm495, %v3605, 0
    %v5826 = vsel %vm495, %v3681, 0
    %v5829 = vsel %vm495, %v3757, 0
    %v5832 = vsel %vm495, %v3833, 0
    %v5835 = vsel %vm495, %v3909, 0
    %v5838 = vsel %vm495, %v3985, 0
    %5840 = vmatprep.subr.mxu0 0.0
    %5841 = vmatpush1.msra.mxu0 0.0
    %5842 = vmatprep.subr.mxu0 0.0
    %5843 = vmatpush1.msra.mxu0 0.0
    %5844 = vmatprep.subr.mxu0 0.0
    %5845 = vmatpush1.msra.mxu0 0.0
    %5846 = vmatprep.subr.mxu0 0.0
    %5847 = vmatpush1.msra.mxu0 0.0
    %5848 = vmatprep.subr.mxu0 0.0
    %5849 = vmatpush1.msra.mxu0 0.0
    %5850 = vmatprep.subr.mxu0 0.0
    %5851 = vmatpush1.msra.mxu0 0.0
    %5852 = vmatprep.subr.mxu0 0.0
    %5853 = vmatpush1.msra.mxu0 0.0
    %5854 = vmatprep.subr.mxu0 0.0
    %5855 = vmatpush1.msra.mxu0 0.0
    %5856 = vmatprep.subr.mxu0 0.0
    %5857 = vmatpush1.msra.mxu0 0.0
    %5858 = vmatprep.subr.mxu0 0.0
    %5859 = vmatpush1.msra.mxu0 0.0
    %5860 = vmatprep.subr.mxu0 0.0
    %5861 = vmatpush1.msra.mxu0 0.0
    %5862 = vmatprep.subr.mxu0 0.0
    %5863 = vmatpush1.msra.mxu0 0.0
    %5864 = vmatprep.subr.mxu0 0.0
    %5865 = vmatpush1.msra.mxu0 0.0
    %5866 = vmatprep.subr.mxu0 0.0
    %5867 = vmatpush1.msra.mxu0 0.0
    %5868 = vmatprep.subr.mxu0 0.0
    %5869 = vmatpush1.msra.mxu0 0.0
    %5870 = vmatprep.subr.mxu0 0.0
    %5871 = vmatpush1.msra.mxu0 %v5812
    %5872 = vmatprep.subr.mxu0 0.0
    %5873 = vmatpush2.msra.mxu0 0.0
    %5874 = vmatprep.subr.mxu0 0.0
    %5875 = vmatpush2.msra.mxu0 0.0
    %5876 = vmatprep.subr.mxu0 0.0
    %5877 = vmatpush2.msra.mxu0 0.0
    %5878 = vmatprep.subr.mxu0 0.0
    %5879 = vmatpush2.msra.mxu0 0.0
    %5880 = vmatprep.subr.mxu0 0.0
    %5881 = vmatpush2.msra.mxu0 0.0
    %5882 = vmatprep.subr.mxu0 0.0
    %5883 = vmatpush2.msra.mxu0 0.0
    %5884 = vmatprep.subr.mxu0 0.0
    %5885 = vmatpush2.msra.mxu0 0.0
    %5886 = vmatprep.subr.mxu0 0.0
    %5887 = vmatpush2.msra.mxu0 0.0
    %5888 = vmatprep.subr.mxu0 0.0
    %5889 = vmatpush2.msra.mxu0 0.0
    %5890 = vmatprep.subr.mxu0 0.0
    %5891 = vmatpush2.msra.mxu0 0.0
    %5892 = vmatprep.subr.mxu0 0.0
    %5893 = vmatpush2.msra.mxu0 0.0
    %5894 = vmatprep.subr.mxu0 0.0
    %5895 = vmatpush2.msra.mxu0 0.0
    %5896 = vmatprep.subr.mxu0 0.0
    %5897 = vmatpush2.msra.mxu0 0.0
    %5898 = vmatprep.subr.mxu0 0.0
    %5899 = vmatpush2.msra.mxu0 0.0
    %5900 = vmatprep.subr.mxu0 0.0
    %5901 = vmatpush2.msra.mxu0 0.0
    %5902 = vmatprep.subr.mxu0 0.0
    %5903 = vmatpush2.msra.mxu0 0.0
    %5904 = vmatprep.mubr.f32.mxu0 0.0
    %5905 = vmatmul.mubr.f32.gmra.mxu0 %v5817
    %v5906 = vpop.f32.mrf.mxu0
    %v5907 = vadd.f32 0.0, %v5906
    %v5908 = vpop.f32.mrf.mxu0
    %5909 = vmatprep.mubr.f32.mxu0 0.0
    %5910 = vmatmul.mubr.f32.gmra.mxu0 %v5820
    %v5911 = vpop.f32.mrf.mxu0
    %v5912 = vadd.f32 0.0, %v5911
    %v5913 = vpop.f32.mrf.mxu0
    %5914 = vmatprep.mubr.f32.mxu0 0.0
    %5915 = vmatmul.mubr.f32.gmra.mxu0 %v5823
    %v5916 = vpop.f32.mrf.mxu0
    %v5917 = vadd.f32 0.0, %v5916
    %v5918 = vpop.f32.mrf.mxu0
    %5919 = vmatprep.mubr.f32.mxu0 0.0
    %5920 = vmatmul.mubr.f32.gmra.mxu0 %v5826
    %v5921 = vpop.f32.mrf.mxu0
    %v5922 = vadd.f32 0.0, %v5921
    %v5923 = vpop.f32.mrf.mxu0
    %5924 = vmatprep.mubr.f32.mxu0 0.0
    %5925 = vmatmul.mubr.f32.gmra.mxu0 %v5829
    %v5926 = vpop.f32.mrf.mxu0
    %v5927 = vadd.f32 0.0, %v5926
    %v5928 = vpop.f32.mrf.mxu0
    %5929 = vmatprep.mubr.f32.mxu0 0.0
    %5930 = vmatmul.mubr.f32.gmra.mxu0 %v5832
    %v5931 = vpop.f32.mrf.mxu0
    %v5932 = vadd.f32 0.0, %v5931
    %v5933 = vpop.f32.mrf.mxu0
    %5934 = vmatprep.mubr.f32.mxu0 0.0
    %5935 = vmatmul.mubr.f32.gmra.mxu0 %v5835
    %v5936 = vpop.f32.mrf.mxu0
    %v5937 = vadd.f32 0.0, %v5936
    %v5938 = vpop.f32.mrf.mxu0
    %5939 = vmatprep.mubr.f32.mxu0 0.0
    %5940 = vmatmul.mubr.f32.gmra.mxu0 %v5838
    %v5941 = vpop.f32.mrf.mxu0
    %v5942 = vadd.f32 0.0, %v5941
    %v5943 = vpop.f32.mrf.mxu0
    %5944 = vdwg.mxu0
    %v5946 = vsel %vm495, %v4061, 0
    %v5949 = vsel %vm495, %v4137, 0
    %v5952 = vsel %vm495, %v4213, 0
    %v5955 = vsel %vm495, %v4289, 0
    %v5958 = vsel %vm495, %v4365, 0
    %v5961 = vsel %vm495, %v4441, 0
    %v5964 = vsel %vm495, %v4517, 0
    %v5967 = vsel %vm495, %v4593, 0
    %5969 = vmatprep.subr.mxu0 0.0
    %5970 = vmatpush1.msra.mxu0 0.0
    %5971 = vmatprep.subr.mxu0 0.0
    %5972 = vmatpush1.msra.mxu0 0.0
    %5973 = vmatprep.subr.mxu0 0.0
    %5974 = vmatpush1.msra.mxu0 0.0
    %5975 = vmatprep.subr.mxu0 0.0
    %5976 = vmatpush1.msra.mxu0 0.0
    %5977 = vmatprep.subr.mxu0 0.0
    %5978 = vmatpush1.msra.mxu0 0.0
    %5979 = vmatprep.subr.mxu0 0.0
    %5980 = vmatpush1.msra.mxu0 0.0
    %5981 = vmatprep.subr.mxu0 0.0
    %5982 = vmatpush1.msra.mxu0 0.0
    %5983 = vmatprep.subr.mxu0 0.0
    %5984 = vmatpush1.msra.mxu0 0.0
    %5985 = vmatprep.subr.mxu0 0.0
    %5986 = vmatpush1.msra.mxu0 0.0
    %5987 = vmatprep.subr.mxu0 0.0
    %5988 = vmatpush1.msra.mxu0 0.0
    %5989 = vmatprep.subr.mxu0 0.0
    %5990 = vmatpush1.msra.mxu0 0.0
    %5991 = vmatprep.subr.mxu0 0.0
    %5992 = vmatpush1.msra.mxu0 0.0
    %5993 = vmatprep.subr.mxu0 0.0
    %5994 = vmatpush1.msra.mxu0 0.0
    %5995 = vmatprep.subr.mxu0 0.0
    %5996 = vmatpush1.msra.mxu0 0.0
    %5997 = vmatprep.subr.mxu0 0.0
    %5998 = vmatpush1.msra.mxu0 0.0
    %5999 = vmatprep.subr.mxu0 0.0
    %6000 = vmatpush1.msra.mxu0 %v5813
    %6001 = vmatprep.subr.mxu0 0.0
    %6002 = vmatpush2.msra.mxu0 0.0
    %6003 = vmatprep.subr.mxu0 0.0
    %6004 = vmatpush2.msra.mxu0 0.0
    %6005 = vmatprep.subr.mxu0 0.0
    %6006 = vmatpush2.msra.mxu0 0.0
    %6007 = vmatprep.subr.mxu0 0.0
    %6008 = vmatpush2.msra.mxu0 0.0
    %6009 = vmatprep.subr.mxu0 0.0
    %6010 = vmatpush2.msra.mxu0 0.0
    %6011 = vmatprep.subr.mxu0 0.0
    %6012 = vmatpush2.msra.mxu0 0.0
    %6013 = vmatprep.subr.mxu0 0.0
    %6014 = vmatpush2.msra.mxu0 0.0
    %6015 = vmatprep.subr.mxu0 0.0
    %6016 = vmatpush2.msra.mxu0 0.0
    %6017 = vmatprep.subr.mxu0 0.0
    %6018 = vmatpush2.msra.mxu0 0.0
    %6019 = vmatprep.subr.mxu0 0.0
    %6020 = vmatpush2.msra.mxu0 0.0
    %6021 = vmatprep.subr.mxu0 0.0
    %6022 = vmatpush2.msra.mxu0 0.0
    %6023 = vmatprep.subr.mxu0 0.0
    %6024 = vmatpush2.msra.mxu0 0.0
    %6025 = vmatprep.subr.mxu0 0.0
    %6026 = vmatpush2.msra.mxu0 0.0
    %6027 = vmatprep.subr.mxu0 0.0
    %6028 = vmatpush2.msra.mxu0 0.0
    %6029 = vmatprep.subr.mxu0 0.0
    %6030 = vmatpush2.msra.mxu0 0.0
    %6031 = vmatprep.subr.mxu0 0.0
    %6032 = vmatpush2.msra.mxu0 0.0
    %6033 = vmatprep.mubr.f32.mxu0 0.0
    %6034 = vmatmul.mubr.f32.gmra.mxu0 %v5946
    %v6035 = vpop.f32.mrf.mxu0
    %v6036 = vadd.f32 0.0, %v6035
    %v6037 = vpop.f32.mrf.mxu0
    %6038 = vmatprep.mubr.f32.mxu0 0.0
    %6039 = vmatmul.mubr.f32.gmra.mxu0 %v5949
    %v6040 = vpop.f32.mrf.mxu0
    %v6041 = vadd.f32 0.0, %v6040
    %v6042 = vpop.f32.mrf.mxu0
    %6043 = vmatprep.mubr.f32.mxu0 0.0
    %6044 = vmatmul.mubr.f32.gmra.mxu0 %v5952
    %v6045 = vpop.f32.mrf.mxu0
    %v6046 = vadd.f32 0.0, %v6045
    %v6047 = vpop.f32.mrf.mxu0
    %6048 = vmatprep.mubr.f32.mxu0 0.0
    %6049 = vmatmul.mubr.f32.gmra.mxu0 %v5955
    %v6050 = vpop.f32.mrf.mxu0
    %v6051 = vadd.f32 0.0, %v6050
    %v6052 = vpop.f32.mrf.mxu0
    %6053 = vmatprep.mubr.f32.mxu0 0.0
    %6054 = vmatmul.mubr.f32.gmra.mxu0 %v5958
    %v6055 = vpop.f32.mrf.mxu0
    %v6056 = vadd.f32 0.0, %v6055
    %v6057 = vpop.f32.mrf.mxu0
    %6058 = vmatprep.mubr.f32.mxu0 0.0
    %6059 = vmatmul.mubr.f32.gmra.mxu0 %v5961
    %v6060 = vpop.f32.mrf.mxu0
    %v6061 = vadd.f32 0.0, %v6060
    %v6062 = vpop.f32.mrf.mxu0
    %6063 = vmatprep.mubr.f32.mxu0 0.0
    %6064 = vmatmul.mubr.f32.gmra.mxu0 %v5964
    %v6065 = vpop.f32.mrf.mxu0
    %v6066 = vadd.f32 0.0, %v6065
    %v6067 = vpop.f32.mrf.mxu0
    %6068 = vmatprep.mubr.f32.mxu0 0.0
    %6069 = vmatmul.mubr.f32.gmra.mxu0 %v5967
    %v6070 = vpop.f32.mrf.mxu0
    %v6071 = vadd.f32 0.0, %v6070
    %v6072 = vpop.f32.mrf.mxu0
    %6073 = vdwg.mxu0
    %v6075 = vsel %vm495, %v4669, 0
    %v6078 = vsel %vm495, %v4745, 0
    %v6081 = vsel %vm495, %v4821, 0
    %v6084 = vsel %vm495, %v4897, 0
    %v6087 = vsel %vm495, %v4973, 0
    %v6090 = vsel %vm495, %v5049, 0
    %v6093 = vsel %vm495, %v5125, 0
    %v6096 = vsel %vm495, %v5201, 0
    %6098 = vmatprep.subr.mxu0 0.0
    %6099 = vmatpush1.msra.mxu0 0.0
    %6100 = vmatprep.subr.mxu0 0.0
    %6101 = vmatpush1.msra.mxu0 0.0
    %6102 = vmatprep.subr.mxu0 0.0
    %6103 = vmatpush1.msra.mxu0 0.0
    %6104 = vmatprep.subr.mxu0 0.0
    %6105 = vmatpush1.msra.mxu0 0.0
    %6106 = vmatprep.subr.mxu0 0.0
    %6107 = vmatpush1.msra.mxu0 0.0
    %6108 = vmatprep.subr.mxu0 0.0
    %6109 = vmatpush1.msra.mxu0 0.0
    %6110 = vmatprep.subr.mxu0 0.0
    %6111 = vmatpush1.msra.mxu0 0.0
    %6112 = vmatprep.subr.mxu0 0.0
    %6113 = vmatpush1.msra.mxu0 0.0
    %6114 = vmatprep.subr.mxu0 0.0
    %6115 = vmatpush1.msra.mxu0 0.0
    %6116 = vmatprep.subr.mxu0 0.0
    %6117 = vmatpush1.msra.mxu0 0.0
    %6118 = vmatprep.subr.mxu0 0.0
    %6119 = vmatpush1.msra.mxu0 0.0
    %6120 = vmatprep.subr.mxu0 0.0
    %6121 = vmatpush1.msra.mxu0 0.0
    %6122 = vmatprep.subr.mxu0 0.0
    %6123 = vmatpush1.msra.mxu0 0.0
    %6124 = vmatprep.subr.mxu0 0.0
    %6125 = vmatpush1.msra.mxu0 0.0
    %6126 = vmatprep.subr.mxu0 0.0
    %6127 = vmatpush1.msra.mxu0 0.0
    %6128 = vmatprep.subr.mxu0 0.0
    %6129 = vmatpush1.msra.mxu0 %v5814
    %6130 = vmatprep.subr.mxu0 0.0
    %6131 = vmatpush2.msra.mxu0 0.0
    %6132 = vmatprep.subr.mxu0 0.0
    %6133 = vmatpush2.msra.mxu0 0.0
    %6134 = vmatprep.subr.mxu0 0.0
    %6135 = vmatpush2.msra.mxu0 0.0
    %6136 = vmatprep.subr.mxu0 0.0
    %6137 = vmatpush2.msra.mxu0 0.0
    %6138 = vmatprep.subr.mxu0 0.0
    %6139 = vmatpush2.msra.mxu0 0.0
    %6140 = vmatprep.subr.mxu0 0.0
    %6141 = vmatpush2.msra.mxu0 0.0
    %6142 = vmatprep.subr.mxu0 0.0
    %6143 = vmatpush2.msra.mxu0 0.0
    %6144 = vmatprep.subr.mxu0 0.0
    %6145 = vmatpush2.msra.mxu0 0.0
    %6146 = vmatprep.subr.mxu0 0.0
    %6147 = vmatpush2.msra.mxu0 0.0
    %6148 = vmatprep.subr.mxu0 0.0
    %6149 = vmatpush2.msra.mxu0 0.0
    %6150 = vmatprep.subr.mxu0 0.0
    %6151 = vmatpush2.msra.mxu0 0.0
    %6152 = vmatprep.subr.mxu0 0.0
    %6153 = vmatpush2.msra.mxu0 0.0
    %6154 = vmatprep.subr.mxu0 0.0
    %6155 = vmatpush2.msra.mxu0 0.0
    %6156 = vmatprep.subr.mxu0 0.0
    %6157 = vmatpush2.msra.mxu0 0.0
    %6158 = vmatprep.subr.mxu0 0.0
    %6159 = vmatpush2.msra.mxu0 0.0
    %6160 = vmatprep.subr.mxu0 0.0
    %6161 = vmatpush2.msra.mxu0 0.0
    %6162 = vmatprep.mubr.f32.mxu0 0.0
    %6163 = vmatmul.mubr.f32.gmra.mxu0 %v6075
    %v6164 = vpop.f32.mrf.mxu0
    %v6165 = vadd.f32 0.0, %v6164
    %v6166 = vpop.f32.mrf.mxu0
    %6167 = vmatprep.mubr.f32.mxu0 0.0
    %6168 = vmatmul.mubr.f32.gmra.mxu0 %v6078
    %v6169 = vpop.f32.mrf.mxu0
    %v6170 = vadd.f32 0.0, %v6169
    %v6171 = vpop.f32.mrf.mxu0
    %6172 = vmatprep.mubr.f32.mxu0 0.0
    %6173 = vmatmul.mubr.f32.gmra.mxu0 %v6081
    %v6174 = vpop.f32.mrf.mxu0
    %v6175 = vadd.f32 0.0, %v6174
    %v6176 = vpop.f32.mrf.mxu0
    %6177 = vmatprep.mubr.f32.mxu0 0.0
    %6178 = vmatmul.mubr.f32.gmra.mxu0 %v6084
    %v6179 = vpop.f32.mrf.mxu0
    %v6180 = vadd.f32 0.0, %v6179
    %v6181 = vpop.f32.mrf.mxu0
    %6182 = vmatprep.mubr.f32.mxu0 0.0
    %6183 = vmatmul.mubr.f32.gmra.mxu0 %v6087
    %v6184 = vpop.f32.mrf.mxu0
    %v6185 = vadd.f32 0.0, %v6184
    %v6186 = vpop.f32.mrf.mxu0
    %6187 = vmatprep.mubr.f32.mxu0 0.0
    %6188 = vmatmul.mubr.f32.gmra.mxu0 %v6090
    %v6189 = vpop.f32.mrf.mxu0
    %v6190 = vadd.f32 0.0, %v6189
    %v6191 = vpop.f32.mrf.mxu0
    %6192 = vmatprep.mubr.f32.mxu0 0.0
    %6193 = vmatmul.mubr.f32.gmra.mxu0 %v6093
    %v6194 = vpop.f32.mrf.mxu0
    %v6195 = vadd.f32 0.0, %v6194
    %v6196 = vpop.f32.mrf.mxu0
    %6197 = vmatprep.mubr.f32.mxu0 0.0
    %6198 = vmatmul.mubr.f32.gmra.mxu0 %v6096
    %v6199 = vpop.f32.mrf.mxu0
    %v6200 = vadd.f32 0.0, %v6199
    %v6201 = vpop.f32.mrf.mxu0
    %6202 = vdwg.mxu0
    %v6204 = vsel %vm495, %v5277, 0
    %v6207 = vsel %vm495, %v5353, 0
    %v6210 = vsel %vm495, %v5429, 0
    %v6213 = vsel %vm495, %v5505, 0
    %v6216 = vsel %vm495, %v5581, 0
    %v6219 = vsel %vm495, %v5657, 0
    %v6222 = vsel %vm495, %v5733, 0
    %v6225 = vsel %vm495, %v5809, 0
    %6227 = vmatprep.subr.mxu0 0.0
    %6228 = vmatpush1.msra.mxu0 0.0
    %6229 = vmatprep.subr.mxu0 0.0
    %6230 = vmatpush1.msra.mxu0 0.0
    %6231 = vmatprep.subr.mxu0 0.0
    %6232 = vmatpush1.msra.mxu0 0.0
    %6233 = vmatprep.subr.mxu0 0.0
    %6234 = vmatpush1.msra.mxu0 0.0
    %6235 = vmatprep.subr.mxu0 0.0
    %6236 = vmatpush1.msra.mxu0 0.0
    %6237 = vmatprep.subr.mxu0 0.0
    %6238 = vmatpush1.msra.mxu0 0.0
    %6239 = vmatprep.subr.mxu0 0.0
    %6240 = vmatpush1.msra.mxu0 0.0
    %6241 = vmatprep.subr.mxu0 0.0
    %6242 = vmatpush1.msra.mxu0 0.0
    %6243 = vmatprep.subr.mxu0 0.0
    %6244 = vmatpush1.msra.mxu0 0.0
    %6245 = vmatprep.subr.mxu0 0.0
    %6246 = vmatpush1.msra.mxu0 0.0
    %6247 = vmatprep.subr.mxu0 0.0
    %6248 = vmatpush1.msra.mxu0 0.0
    %6249 = vmatprep.subr.mxu0 0.0
    %6250 = vmatpush1.msra.mxu0 0.0
    %6251 = vmatprep.subr.mxu0 0.0
    %6252 = vmatpush1.msra.mxu0 0.0
    %6253 = vmatprep.subr.mxu0 0.0
    %6254 = vmatpush1.msra.mxu0 0.0
    %6255 = vmatprep.subr.mxu0 0.0
    %6256 = vmatpush1.msra.mxu0 0.0
    %6257 = vmatprep.subr.mxu0 0.0
    %6258 = vmatpush1.msra.mxu0 %v5815
    %6259 = vmatprep.subr.mxu0 0.0
    %6260 = vmatpush2.msra.mxu0 0.0
    %6261 = vmatprep.subr.mxu0 0.0
    %6262 = vmatpush2.msra.mxu0 0.0
    %6263 = vmatprep.subr.mxu0 0.0
    %6264 = vmatpush2.msra.mxu0 0.0
    %6265 = vmatprep.subr.mxu0 0.0
    %6266 = vmatpush2.msra.mxu0 0.0
    %6267 = vmatprep.subr.mxu0 0.0
    %6268 = vmatpush2.msra.mxu0 0.0
    %6269 = vmatprep.subr.mxu0 0.0
    %6270 = vmatpush2.msra.mxu0 0.0
    %6271 = vmatprep.subr.mxu0 0.0
    %6272 = vmatpush2.msra.mxu0 0.0
    %6273 = vmatprep.subr.mxu0 0.0
    %6274 = vmatpush2.msra.mxu0 0.0
    %6275 = vmatprep.subr.mxu0 0.0
    %6276 = vmatpush2.msra.mxu0 0.0
    %6277 = vmatprep.subr.mxu0 0.0
    %6278 = vmatpush2.msra.mxu0 0.0
    %6279 = vmatprep.subr.mxu0 0.0
    %6280 = vmatpush2.msra.mxu0 0.0
    %6281 = vmatprep.subr.mxu0 0.0
    %6282 = vmatpush2.msra.mxu0 0.0
    %6283 = vmatprep.subr.mxu0 0.0
    %6284 = vmatpush2.msra.mxu0 0.0
    %6285 = vmatprep.subr.mxu0 0.0
    %6286 = vmatpush2.msra.mxu0 0.0
    %6287 = vmatprep.subr.mxu0 0.0
    %6288 = vmatpush2.msra.mxu0 0.0
    %6289 = vmatprep.subr.mxu0 0.0
    %6290 = vmatpush2.msra.mxu0 0.0
    %6291 = vmatprep.mubr.f32.mxu0 0.0
    %6292 = vmatmul.mubr.f32.gmra.mxu0 %v6204
    %v6293 = vpop.f32.mrf.mxu0
    %v6294 = vadd.f32 0.0, %v6293
    %v6295 = vpop.f32.mrf.mxu0
    %6296 = vmatprep.mubr.f32.mxu0 0.0
    %6297 = vmatmul.mubr.f32.gmra.mxu0 %v6207
    %v6298 = vpop.f32.mrf.mxu0
    %v6299 = vadd.f32 0.0, %v6298
    %v6300 = vpop.f32.mrf.mxu0
    %6301 = vmatprep.mubr.f32.mxu0 0.0
    %6302 = vmatmul.mubr.f32.gmra.mxu0 %v6210
    %v6303 = vpop.f32.mrf.mxu0
    %v6304 = vadd.f32 0.0, %v6303
    %v6305 = vpop.f32.mrf.mxu0
    %6306 = vmatprep.mubr.f32.mxu0 0.0
    %6307 = vmatmul.mubr.f32.gmra.mxu0 %v6213
    %v6308 = vpop.f32.mrf.mxu0
    %v6309 = vadd.f32 0.0, %v6308
    %v6310 = vpop.f32.mrf.mxu0
    %6311 = vmatprep.mubr.f32.mxu0 0.0
    %6312 = vmatmul.mubr.f32.gmra.mxu0 %v6216
    %v6313 = vpop.f32.mrf.mxu0
    %v6314 = vadd.f32 0.0, %v6313
    %v6315 = vpop.f32.mrf.mxu0
    %6316 = vmatprep.mubr.f32.mxu0 0.0
    %6317 = vmatmul.mubr.f32.gmra.mxu0 %v6219
    %v6318 = vpop.f32.mrf.mxu0
    %v6319 = vadd.f32 0.0, %v6318
    %v6320 = vpop.f32.mrf.mxu0
    %6321 = vmatprep.mubr.f32.mxu0 0.0
    %6322 = vmatmul.mubr.f32.gmra.mxu0 %v6222
    %v6323 = vpop.f32.mrf.mxu0
    %v6324 = vadd.f32 0.0, %v6323
    %v6325 = vpop.f32.mrf.mxu0
    %6326 = vmatprep.mubr.f32.mxu0 0.0
    %6327 = vmatmul.mubr.f32.gmra.mxu0 %v6225
    %v6328 = vpop.f32.mrf.mxu0
    %v6329 = vadd.f32 0.0, %v6328
    %v6330 = vpop.f32.mrf.mxu0
    %6331 = vdwg.mxu0
    %vm6332 = vcmask 261120
    %v6333 = vsel %vm6332, %v5907, 0.0
    %v6334 = vsel %vm6332, %v6036, 0.0
    %v6335 = vadd.f32 %v6333, %v6334
    %v6336 = vsel %vm6332, %v6165, 0.0
    %v6337 = vadd.f32 %v6335, %v6336
    %v6338 = vsel %vm6332, %v6294, 0.0
    %v6339 = vadd.f32 %v6337, %v6338
    %v6340 = vsel %vm6332, %v5912, 0.0
    %v6341 = vsel %vm6332, %v6041, 0.0
    %v6342 = vadd.f32 %v6340, %v6341
    %v6343 = vsel %vm6332, %v6170, 0.0
    %v6344 = vadd.f32 %v6342, %v6343
    %v6345 = vsel %vm6332, %v6299, 0.0
    %v6346 = vadd.f32 %v6344, %v6345
    %v6347 = vsel %vm6332, %v5917, 0.0
    %v6348 = vsel %vm6332, %v6046, 0.0
    %v6349 = vadd.f32 %v6347, %v6348
    %v6350 = vsel %vm6332, %v6175, 0.0
    %v6351 = vadd.f32 %v6349, %v6350
    %v6352 = vsel %vm6332, %v6304, 0.0
    %v6353 = vadd.f32 %v6351, %v6352
    %v6354 = vsel %vm6332, %v5922, 0.0
    %v6355 = vsel %vm6332, %v6051, 0.0
    %v6356 = vadd.f32 %v6354, %v6355
    %v6357 = vsel %vm6332, %v6180, 0.0
    %v6358 = vadd.f32 %v6356, %v6357
    %v6359 = vsel %vm6332, %v6309, 0.0
    %v6360 = vadd.f32 %v6358, %v6359
    %v6361 = vsel %vm6332, %v5927, 0.0
    %v6362 = vsel %vm6332, %v6056, 0.0
    %v6363 = vadd.f32 %v6361, %v6362
    %v6364 = vsel %vm6332, %v6185, 0.0
    %v6365 = vadd.f32 %v6363, %v6364
    %v6366 = vsel %vm6332, %v6314, 0.0
    %v6367 = vadd.f32 %v6365, %v6366
    %v6368 = vsel %vm6332, %v5932, 0.0
    %v6369 = vsel %vm6332, %v6061, 0.0
    %v6370 = vadd.f32 %v6368, %v6369
    %v6371 = vsel %vm6332, %v6190, 0.0
    %v6372 = vadd.f32 %v6370, %v6371
    %v6373 = vsel %vm6332, %v6319, 0.0
    %v6374 = vadd.f32 %v6372, %v6373
    %v6375 = vsel %vm6332, %v5937, 0.0
    %v6376 = vsel %vm6332, %v6066, 0.0
    %v6377 = vadd.f32 %v6375, %v6376
    %v6378 = vsel %vm6332, %v6195, 0.0
    %v6379 = vadd.f32 %v6377, %v6378
    %v6380 = vsel %vm6332, %v6324, 0.0
    %v6381 = vadd.f32 %v6379, %v6380
    %v6382 = vsel %vm6332, %v5942, 0.0
    %v6383 = vsel %vm6332, %v6071, 0.0
    %v6384 = vadd.f32 %v6382, %v6383
    %v6385 = vsel %vm6332, %v6200, 0.0
    %v6386 = vadd.f32 %v6384, %v6385
    %v6387 = vsel %vm6332, %v6329, 0.0
    %v6388 = vadd.f32 %v6386, %v6387
    %v6389 = vld [vmem:[%s3] sm:$0x1]
    %v6391 = vlaneseq
    %v6392 = vshrl.u32 %v6391, 7
    %v6393 = vsub.s32 0, %v6392
    %v6394 = vrot.slane %v6389, %v6393
    %v6396 = vadd.f32 %v6339, %v6394
    %v6397 = vadd.f32 %v6346, %v6394
    %v6398 = vadd.f32 %v6353, %v6394
    %v6399 = vadd.f32 %v6360, %v6394
    %v6400 = vadd.f32 %v6367, %v6394
    %v6401 = vadd.f32 %v6374, %v6394
    %v6402 = vadd.f32 %v6381, %v6394
    %v6403 = vadd.f32 %v6388, %v6394
    %6404 = vst.msk [vmem:[%s4] sm:$0xff] %vm6332, %v6396
    %6405 = vst.msk [vmem:[%s4 + $0x8] sm:$0xff] %vm6332, %v6397
    %6406 = vst.msk [vmem:[%s4 + $0x10] sm:$0xff] %vm6332, %v6398
    %6407 = vst.msk [vmem:[%s4 + $0x18] sm:$0xff] %vm6332, %v6399
    %6408 = vst.msk [vmem:[%s4 + $0x20] sm:$0xff] %vm6332, %v6400
    %6409 = vst.msk [vmem:[%s4 + $0x28] sm:$0xff] %vm6332, %v6401
    %6410 = vst.msk [vmem:[%s4 + $0x30] sm:$0xff] %vm6332, %v6402
    %6411 = vst.msk [vmem:[%s4 + $0x38] sm:$0xff] %vm6332, %v6403
    // Predicated region
    $region22: #{tpu_custom_call.1} parent=1 // pred_check
      _
    $region23: #{tpu_custom_call.1} parent=1 // pred_check_branch
      %6413 = sbr.rel (0) target = $region25
    $region24: #{tpu_custom_call.1} parent=1 // pred_region
      _
    $region25: #{tpu_custom_call.1} parent=1 // pred_fallthru
      _
    // Predicated region
    $region26: #{tpu_custom_call.1} parent=1 // pred_check
      _
    $region27: #{tpu_custom_call.1} parent=1 // pred_check_branch
      %6415 = sbr.rel (0) target = $region29
    $region28: #{tpu_custom_call.1} parent=1 // pred_region
      _
    $region29: #{tpu_custom_call.1} parent=1 // pred_fallthru
      _
    %6416 = vsyncpa [#allocation3], 1

</llo_original>
